<compile_context>
chip_gen: v6e
topology: v6e:2x2x1
jax: 0.10.0
libtpu: 0.0.40
codegen_flags: <defaults>
</compile_context>

<pallas_src>
import functools
import math

import jax
import jax.numpy as jnp
from jax.experimental import pallas as pl
from jax.experimental.pallas import tpu as pltpu


# ----------------------------------------------------------------------------
# small helpers
# ----------------------------------------------------------------------------
def _round_up(x, m):
    return ((x + m - 1) // m) * m


def _dot_bf16(a, b):
    # MXU matmul: bf16 operands, f32 accumulation.
    return jnp.dot(a.astype(jnp.bfloat16), b.astype(jnp.bfloat16),
                   preferred_element_type=jnp.float32)


def _batchnorm(y, g, b, eps):
    # BatchNorm1d, training-mode batch statistics (biased variance), f32.
    mu = jnp.mean(y, axis=0, keepdims=True)
    var = jnp.mean((y - mu) ** 2, axis=0, keepdims=True)
    return (y - mu) * jax.lax.rsqrt(var + eps) * g + b


def _pad_rows(x, rows):
    m = x.shape[0]
    return x if rows == m else jnp.pad(x, ((0, rows - m), (0, 0)))


def _row_tiles(m, tile_m):
    mp = _round_up(max(m, 8), 8)
    tile = min(tile_m, mp)
    mp = _round_up(mp, tile)
    return mp, tile


# ----------------------------------------------------------------------------
# row-tiled linear kernels (embeddings / fused QKV / E projections)
# ----------------------------------------------------------------------------
def _linear_bias_kernel(x_ref, w_ref, b_ref, o_ref):
    o_ref[...] = _dot_bf16(x_ref[...], w_ref[...]) + b_ref[...]


def _linear_nobias_kernel(x_ref, w_ref, o_ref):
    o_ref[...] = _dot_bf16(x_ref[...], w_ref[...])


def pallas_linear(x, w, b=None, tile_m=256):
    """x(M,K) @ w(K,N) (+ b). Row-tiled, pipelined, bias path skipped if None."""
    M, K = x.shape
    _, N = w.shape
    Mp, tile = _row_tiles(M, tile_m)
    xp = _pad_rows(x, Mp)
    cp = pltpu.CompilerParams(dimension_semantics=("parallel",))
    if b is not None:
        out = pl.pallas_call(
            _linear_bias_kernel,
            out_shape=jax.ShapeDtypeStruct((Mp, N), jnp.float32),
            grid=(Mp // tile,),
            in_specs=[pl.BlockSpec((tile, K), lambda i: (i, 0)),
                      pl.BlockSpec((K, N), lambda i: (0, 0)),
                      pl.BlockSpec((1, N), lambda i: (0, 0))],
            out_specs=pl.BlockSpec((tile, N), lambda i: (i, 0)),
            compiler_params=cp,
        )(xp, w, b.reshape(1, N))
    else:
        out = pl.pallas_call(
            _linear_nobias_kernel,
            out_shape=jax.ShapeDtypeStruct((Mp, N), jnp.float32),
            grid=(Mp // tile,),
            in_specs=[pl.BlockSpec((tile, K), lambda i: (i, 0)),
                      pl.BlockSpec((K, N), lambda i: (0, 0))],
            out_specs=pl.BlockSpec((tile, N), lambda i: (i, 0)),
            compiler_params=cp,
        )(xp, w)
    return out[:M] if Mp != M else out


def _embed_h_kernel(n_ref, wn_ref, bn_ref, p_ref, wp_ref, bp_ref, o_ref):
    # h = emb_h(nodes) + emb_pe(pos_enc), fused (two matmuls, one HBM write)
    o_ref[...] = (_dot_bf16(n_ref[...], wn_ref[...]) + bn_ref[...]
                  + _dot_bf16(p_ref[...], wp_ref[...]) + bp_ref[...])


def pallas_embed_h(nodes, Wn, bn, pe, Wp, bp, tile_m=256):
    M, Kn = nodes.shape
    _, Kp = pe.shape
    D = Wn.shape[1]
    Mp, tile = _row_tiles(M, tile_m)
    out = pl.pallas_call(
        _embed_h_kernel,
        out_shape=jax.ShapeDtypeStruct((Mp, D), jnp.float32),
        grid=(Mp // tile,),
        in_specs=[pl.BlockSpec((tile, Kn), lambda i: (i, 0)),
                  pl.BlockSpec((Kn, D), lambda i: (0, 0)),
                  pl.BlockSpec((1, D), lambda i: (0, 0)),
                  pl.BlockSpec((tile, Kp), lambda i: (i, 0)),
                  pl.BlockSpec((Kp, D), lambda i: (0, 0)),
                  pl.BlockSpec((1, D), lambda i: (0, 0))],
        out_specs=pl.BlockSpec((tile, D), lambda i: (i, 0)),
        compiler_params=pltpu.CompilerParams(dimension_semantics=("parallel",)),
    )(_pad_rows(nodes, Mp), Wn, bn.reshape(1, D),
      _pad_rows(pe, Mp), Wp, bp.reshape(1, D))
    return out[:M] if Mp != M else out


# ----------------------------------------------------------------------------
# edge gather kernel: indexed DMA via scalar-prefetch index maps
#   e_out = K[src] * Q[dst] * E_e / sqrt(C) ; also copies V[dst] per edge
# ----------------------------------------------------------------------------
def _edge_gather_kernel(src_ref, dst_ref, k_ref, q_ref, e_ref, v_ref,
                        eo_ref, vo_ref, *, inv_sqrt_c):
    del src_ref, dst_ref  # consumed by the index maps
    eo_ref[...] = k_ref[...] * q_ref[...] * e_ref[...] * inv_sqrt_c
    vo_ref[...] = v_ref[...]


def pallas_edge_gather(Kh, Qh, Vh, Ee, src, dst, head_dim):
    Nn, D = Kh.shape
    Etot = Ee.shape[0]
    # middle singleton dim keeps the last-two block dims equal to the array dims
    k3 = Kh.reshape(Nn, 1, D)
    q3 = Qh.reshape(Nn, 1, D)
    v3 = Vh.reshape(Nn, 1, D)
    e3 = Ee.reshape(Etot, 1, D)
    grid_spec = pltpu.PrefetchScalarGridSpec(
        num_scalar_prefetch=2,
        grid=(Etot,),
        in_specs=[
            pl.BlockSpec((1, 1, D), lambda i, s, d: (s[i], 0, 0)),   # K[src]
            pl.BlockSpec((1, 1, D), lambda i, s, d: (d[i], 0, 0)),   # Q[dst]
            pl.BlockSpec((1, 1, D), lambda i, s, d: (i, 0, 0)),      # E_e
            pl.BlockSpec((1, 1, D), lambda i, s, d: (d[i], 0, 0)),   # V[dst]
        ],
        out_specs=[
            pl.BlockSpec((1, 1, D), lambda i, s, d: (i, 0, 0)),
            pl.BlockSpec((1, 1, D), lambda i, s, d: (i, 0, 0)),
        ],
    )
    e_out3, v_dst3 = pl.pallas_call(
        functools.partial(_edge_gather_kernel,
                          inv_sqrt_c=1.0 / math.sqrt(head_dim)),
        out_shape=(jax.ShapeDtypeStruct((Etot, 1, D), jnp.float32),
                   jax.ShapeDtypeStruct((Etot, 1, D), jnp.float32)),
        grid_spec=grid_spec,
        compiler_params=pltpu.CompilerParams(dimension_semantics=("arbitrary",)),
    )(src, dst, k3, q3, e3, v3)
    return e_out3.reshape(Etot, D), v_dst3.reshape(Etot, D)


# ----------------------------------------------------------------------------
# fused h path: scatter_softmax + scatter_sum + O_h + res + BN1 + FFN + res + BN2
# ----------------------------------------------------------------------------
def _h_path_kernel(eo_ref, vd_ref, oht_ref, hsum_ref, hexp_ref,
                   wo_ref, bo_ref, res_ref, g1_ref, b1_ref,
                   w1_ref, bf1_ref, w2_ref, bf2_ref, g2_ref, b2_ref,
                   o_ref, *, eps):
    prod = eo_ref[...]                                                   # (E, H*C)
    # per-head score = sum over the C channels of each head (block-diag ones)
    s = jnp.dot(prod, hsum_ref[...], preferred_element_type=jnp.float32)  # (E, H)
    # TODO(synk): scatter_softmax uses a per-source-group max; the per-head
    # global max used here is mathematically equivalent but groups far below
    # the global max can underflow (guarded to 0 below instead of NaN).
    m = jnp.max(s, axis=0, keepdims=True)
    p = jnp.exp(s - m)                                                   # (E, H)
    pw = jnp.dot(p, hexp_ref[...], preferred_element_type=jnp.float32)   # (E, H*C)
    w = pw * vd_ref[...]                                                 # exp * V[dst]
    oht = oht_ref[...]                                                   # (N, E)
    denom = jnp.dot(oht, p, preferred_element_type=jnp.float32)          # (N, H)
    num = jnp.dot(oht, w, preferred_element_type=jnp.float32)            # (N, H*C)
    inv = jnp.where(denom > 0.0, pl.reciprocal(denom, approx=True), 0.0)
    h_att = num * jnp.dot(inv, hexp_ref[...],
                          preferred_element_type=jnp.float32)            # (N, H*C)
    # O_h + residual + BN1
    y = _dot_bf16(h_att, wo_ref[...]) + bo_ref[...] + res_ref[...]
    y = _batchnorm(y, g1_ref[...], b1_ref[...], eps)
    # FFN + residual + BN2
    h1 = jnp.maximum(_dot_bf16(y, w1_ref[...]) + bf1_ref[...], 0.0)
    y2 = _dot_bf16(h1, w2_ref[...]) + bf2_ref[...] + y
    o_ref[...] = _batchnorm(y2, g2_ref[...], b2_ref[...], eps)


def pallas_h_path(e_att, v_dst, ohT, hsum, hexp, lp, h_res, eps=1e-5):
    Etot, D = e_att.shape
    Nn = h_res.shape[0]
    H = hsum.shape[1]
    Dh = lp["Wffn_h1"].shape[1]
    full = lambda shp: pl.BlockSpec(shp, lambda i: (0,) * len(shp))
    return pl.pallas_call(
        functools.partial(_h_path_kernel, eps=eps),
        out_shape=jax.ShapeDtypeStruct((Nn, D), jnp.float32),
        grid=(1,),
        in_specs=[full((Etot, D)), full((Etot, D)), full((Nn, Etot)),
                  full((D, H)), full((H, D)),
                  full((D, D)), full((1, D)), full((Nn, D)),
                  full((1, D)), full((1, D)),
                  full((D, Dh)), full((1, Dh)), full((Dh, D)), full((1, D)),
                  full((1, D)), full((1, D))],
        out_specs=full((Nn, D)),
    )(e_att, v_dst, ohT, hsum, hexp,
      lp["Wo_h"], lp["bo_h"].reshape(1, D), h_res,
      lp["bn1_h_g"].reshape(1, D), lp["bn1_h_b"].reshape(1, D),
      lp["Wffn_h1"], lp["bffn_h1"].reshape(1, Dh),
      lp["Wffn_h2"], lp["bffn_h2"].reshape(1, D),
      lp["bn2_h_g"].reshape(1, D), lp["bn2_h_b"].reshape(1, D))


# ----------------------------------------------------------------------------
# fused e path: O_e + res + BN1 + FFN + res + BN2
# ----------------------------------------------------------------------------
def _e_path_kernel(x_ref, wo_ref, bo_ref, res_ref, g1_ref, b1_ref,
                   w1_ref, bf1_ref, w2_ref, bf2_ref, g2_ref, b2_ref,
                   o_ref, *, eps):
    y = _dot_bf16(x_ref[...], wo_ref[...]) + bo_ref[...] + res_ref[...]
    y = _batchnorm(y, g1_ref[...], b1_ref[...], eps)
    h1 = jnp.maximum(_dot_bf16(y, w1_ref[...]) + bf1_ref[...], 0.0)
    y2 = _dot_bf16(h1, w2_ref[...]) + bf2_ref[...] + y
    o_ref[...] = _batchnorm(y2, g2_ref[...], b2_ref[...], eps)


def pallas_e_path(e_att, lp, e_res, eps=1e-5):
    M, D = e_att.shape
    Dh = lp["Wffn_e1"].shape[1]
    full = lambda shp: pl.BlockSpec(shp, lambda i: (0, 0))
    return pl.pallas_call(
        functools.partial(_e_path_kernel, eps=eps),
        out_shape=jax.ShapeDtypeStruct((M, D), jnp.float32),
        grid=(1,),
        in_specs=[full((M, D)), full((D, D)), full((1, D)), full((M, D)),
                  full((1, D)), full((1, D)),
                  full((D, Dh)), full((1, Dh)), full((Dh, D)), full((1, D)),
                  full((1, D)), full((1, D))],
        out_specs=full((M, D)),
    )(e_att, lp["Wo_e"], lp["bo_e"].reshape(1, D), e_res,
      lp["bn1_e_g"].reshape(1, D), lp["bn1_e_b"].reshape(1, D),
      lp["Wffn_e1"], lp["bffn_e1"].reshape(1, Dh),
      lp["Wffn_e2"], lp["bffn_e2"].reshape(1, D),
      lp["bn2_e_g"].reshape(1, D), lp["bn2_e_b"].reshape(1, D))


# ----------------------------------------------------------------------------
# fused: graph mean-pool + LayerNorm + MLPReadout (L=2)
# ----------------------------------------------------------------------------
def _pool_ln_mlp_kernel(h_ref, g_ref, b_ref, w0_ref, b0_ref, w1_ref, b1_ref,
                        w2_ref, b2_ref, o_ref, *, eps):
    hg = jnp.mean(h_ref[...], axis=-1)                       # (B, D) mean over nodes
    mu = jnp.mean(hg, axis=-1, keepdims=True)
    var = jnp.mean((hg - mu) ** 2, axis=-1, keepdims=True)
    hg = (hg - mu) * jax.lax.rsqrt(var + eps) * g_ref[...] + b_ref[...]
    y = jnp.maximum(jnp.dot(hg, w0_ref[...],
                            preferred_element_type=jnp.float32) + b0_ref[...], 0.0)
    y = jnp.maximum(jnp.dot(y, w1_ref[...],
                            preferred_element_type=jnp.float32) + b1_ref[...], 0.0)
    o_ref[...] = jnp.dot(y, w2_ref[...],
                         preferred_element_type=jnp.float32) + b2_ref[...]


def pallas_pool_ln_mlp(h3, g, b, w0, b0, w1, b1, w2, b2, eps=1e-5):
    # h3 is (B, D, N): mean over the last (node) axis is a lane reduction.
    B, D, N = h3.shape
    D2, D4, Do = w0.shape[1], w1.shape[1], w2.shape[1]
    return pl.pallas_call(
        functools.partial(_pool_ln_mlp_kernel, eps=eps),
        out_shape=jax.ShapeDtypeStruct((B, Do), jnp.float32),
        grid=(1,),
        in_specs=[pl.BlockSpec((B, D, N), lambda i: (0, 0, 0)),
                  pl.BlockSpec((1, D), lambda i: (0, 0)),
                  pl.BlockSpec((1, D), lambda i: (0, 0)),
                  pl.BlockSpec((D, D2), lambda i: (0, 0)),
                  pl.BlockSpec((1, D2), lambda i: (0, 0)),
                  pl.BlockSpec((D2, D4), lambda i: (0, 0)),
                  pl.BlockSpec((1, D4), lambda i: (0, 0)),
                  pl.BlockSpec((D4, Do), lambda i: (0, 0)),
                  pl.BlockSpec((1, Do), lambda i: (0, 0))],
        out_specs=pl.BlockSpec((B, Do), lambda i: (0, 0)),
    )(h3, g.reshape(1, D), b.reshape(1, D), w0, b0.reshape(1, D2),
      w1, b1.reshape(1, D4), w2, b2.reshape(1, Do))


# ----------------------------------------------------------------------------
# model (glue calling Pallas kernels)
# ----------------------------------------------------------------------------
def gt_layer(p, h, e, src, dst, ohT, hsum, hexp, head_dim):
    D = h.shape[1]
    qkv = pallas_linear(h, p["Wqkv"])                  # fused Q|K|V projection
    Qh, Kh, Vh = qkv[:, :D], qkv[:, D:2 * D], qkv[:, 2 * D:]
    Ee = pallas_linear(e, p["We"])
    # indexed-DMA gather of K[src], Q[dst], V[dst]; e_att = K*Q*E/sqrt(C)
    e_att, v_dst = pallas_edge_gather(Kh, Qh, Vh, Ee, src, dst, head_dim)
    # h path: softmax-scatter + O_h + res + BN1 + FFN + res + BN2 (one kernel)
    h = pallas_h_path(e_att, v_dst, ohT, hsum, hexp, p, h)
    # e path: O_e + res + BN1 + FFN + res + BN2 (one kernel)
    e = pallas_e_path(e_att, p, e)
    return h, e


def encoder_forward(params, nodes, edges, edge_index, pos_enc, *, n_heads):
    B, N, _ = nodes.shape
    _, E, _ = edges.shape
    D = params["emb_h_W"].shape[1]
    C = D // n_heads

    nodes_f = nodes.reshape(B * N, -1)
    edges_f = edges.reshape(B * E, -1)
    pe_f = pos_enc.reshape(B * N, -1)

    h = pallas_embed_h(nodes_f, params["emb_h_W"], params["emb_h_b"],
                       pe_f, params["emb_pe_W"], params["emb_pe_b"])
    e = pallas_linear(edges_f, params["emb_e_W"], params["emb_e_b"])

    # edge_index[0].repeat(1, batch_size): graph-0 edges tiled, no batch offset
    # (faithful to the torch reference).
    ei = jnp.tile(edge_index[0], (1, B))
    src = ei[0].astype(jnp.int32)
    dst = ei[1].astype(jnp.int32)
    Nn = B * N

    # single (Nn, Etot) one-hot, used only for the two segment sums inside the
    # fused attention kernel (gathers use indexed DMA; no transpose is built).
    ohT = (jnp.arange(Nn, dtype=jnp.int32)[:, None] == src[None, :]).astype(jnp.float32)
    # per-head sum / per-head broadcast matrices (block-diagonal ones)
    hsum = jnp.repeat(jnp.eye(n_heads, dtype=jnp.float32), C, axis=0)   # (D, H)
    hexp = jnp.repeat(jnp.eye(n_heads, dtype=jnp.float32), C, axis=1)   # (H, D)

    for lp in params["layers"]:
        h, e = gt_layer(lp, h, e, src, dst, ohT, hsum, hexp, C)

    h3 = h.reshape(B, N, D).transpose(0, 2, 1)          # (B, D, N) lane-reduce pool
    return pallas_pool_ln_mlp(h3, params["ln_g"], params["ln_b"],
                              params["mlp_W0"], params["mlp_b0"],
                              params["mlp_W1"], params["mlp_b1"],
                              params["mlp_W2"], params["mlp_b2"])


# ----------------------------------------------------------------------------
# deterministic parameter init (torch Linear-style uniform(+-1/sqrt(fan_in)))
# ----------------------------------------------------------------------------
def init_linear(key, fan_in, fan_out, bias=True):
    k1, k2 = jax.random.split(key)
    lim = 1.0 / math.sqrt(fan_in)
    W = jax.random.uniform(k1, (fan_in, fan_out), jnp.float32, -lim, lim)
    b = jax.random.uniform(k2, (fan_out,), jnp.float32, -lim, lim) if bias else None
    return W, b


def init_params(key, node_f, edge_f, emb, n_heads, n_layers, pe_dims):
    keys = iter(jax.random.split(key, 8 + 10 * n_layers))
    p = {}
    p["emb_h_W"], p["emb_h_b"] = init_linear(next(keys), node_f, emb)
    p["emb_e_W"], p["emb_e_b"] = init_linear(next(keys), edge_f, emb)
    p["emb_pe_W"], p["emb_pe_b"] = init_linear(next(keys), pe_dims, emb)

    layers = []
    for _ in range(n_layers):
        lp = {}
        Wq, _ = init_linear(next(keys), emb, emb, bias=False)   # use_bias=False
        Wk, _ = init_linear(next(keys), emb, emb, bias=False)
        Wv, _ = init_linear(next(keys), emb, emb, bias=False)
        lp["Wqkv"] = jnp.concatenate([Wq, Wk, Wv], axis=1)      # fused (D, 3D)
        lp["We"], _ = init_linear(next(keys), emb, emb, bias=False)
        lp["Wo_h"], lp["bo_h"] = init_linear(next(keys), emb, emb)
        lp["Wo_e"], lp["bo_e"] = init_linear(next(keys), emb, emb)
        lp["Wffn_h1"], lp["bffn_h1"] = init_linear(next(keys), emb, 2 * emb)
        lp["Wffn_h2"], lp["bffn_h2"] = init_linear(next(keys), 2 * emb, emb)
        lp["Wffn_e1"], lp["bffn_e1"] = init_linear(next(keys), emb, 2 * emb)
        lp["Wffn_e2"], lp["bffn_e2"] = init_linear(next(keys), 2 * emb, emb)
        for name in ("bn1_h", "bn1_e", "bn2_h", "bn2_e"):
            lp[name + "_g"] = jnp.ones((emb,), jnp.float32)
            lp[name + "_b"] = jnp.zeros((emb,), jnp.float32)
        layers.append(lp)
    p["layers"] = layers

    p["ln_g"] = jnp.ones((emb,), jnp.float32)
    p["ln_b"] = jnp.zeros((emb,), jnp.float32)
    p["mlp_W0"], p["mlp_b0"] = init_linear(next(keys), emb, emb // 2)
    p["mlp_W1"], p["mlp_b1"] = init_linear(next(keys), emb // 2, emb // 4)
    p["mlp_W2"], p["mlp_b2"] = init_linear(next(keys), emb // 4, emb)
    return p


# ----------------------------------------------------------------------------
if __name__ == "__main__":
    B, N, E = 2, 8, 16
    NODE_F, EDGE_F, PE_DIMS = 6, 4, 10
    EMB, N_HEADS, N_LAYERS = 32, 4, 2

    key = jax.random.PRNGKey(0)
    k_p, k_n, k_e, k_ei, k_pe = jax.random.split(key, 5)

    params = init_params(k_p, NODE_F, EDGE_F, EMB, N_HEADS, N_LAYERS, PE_DIMS)

    nodes = jax.random.normal(k_n, (B, N, NODE_F), jnp.float32)
    edges = jax.random.normal(k_e, (B, E, EDGE_F), jnp.float32)
    edge_index = jax.random.randint(k_ei, (B, 2, E), 0, N, dtype=jnp.int32)
    pos_enc = jax.random.normal(k_pe, (B, N, PE_DIMS), jnp.float32)

    fwd = jax.jit(functools.partial(encoder_forward, n_heads=N_HEADS))
    out = fwd(params, nodes, edges, edge_index, pos_enc)
    out = jax.block_until_ready(out)
    assert out.shape == (B, EMB) and bool(jnp.all(jnp.isfinite(out)))
    print("KERNEL_OK")
</pallas_src>

<mosaic_0001>
module attributes {stable_mosaic.version = 11 : i64} {
  func.func @_linear_nobias_kernel(%arg0: i32, %arg1: memref<16x32xf32, #tpu.memory_space<vmem>>, %arg2: memref<32x96xf32, #tpu.memory_space<vmem>>, %arg3: memref<16x96xf32, #tpu.memory_space<vmem>>) attributes {dimension_semantics = [#tpu.dimension_semantics<parallel>], iteration_bounds = array<i64: 1>, scalar_prefetch = 0 : i64, scratch_operands = 0 : i64, tpu.core_type = #tpu.core_type<tc>, window_params = [{transform_indices = @transform_0, window_bounds = array<i64: 16, 32>}, {pipeline_mode = #tpu.pipeline_mode<synchronous>, transform_indices = @transform_1, window_bounds = array<i64: 32, 96>}, {transform_indices = @transform_2, window_bounds = array<i64: 16, 96>}]} {
    %c0 = arith.constant 0 : index
    %c0_0 = arith.constant 0 : index
    %0 = vector.load %arg1[%c0, %c0_0] : memref<16x32xf32, #tpu.memory_space<vmem>>, vector<16x32xf32>
    %c0_1 = arith.constant 0 : index
    %c0_2 = arith.constant 0 : index
    %1 = vector.load %arg2[%c0_1, %c0_2] : memref<32x96xf32, #tpu.memory_space<vmem>>, vector<32x96xf32>
    %2 = arith.truncf %0 : vector<16x32xf32> to vector<16x32xbf16>
    %3 = arith.truncf %1 : vector<32x96xf32> to vector<32x96xbf16>
    %cst = arith.constant dense<0.000000e+00> : vector<16x96xf32>
    %4 = tpu.matmul %2, %3, %cst {dimension_numbers = #tpu.dot_dimension_numbers<[1], [0], [0], [1], [0, 0, 1, 1], [], []>} : vector<16x32xbf16>, vector<32x96xbf16>, vector<16x96xf32> -> vector<16x96xf32>
    %c0_3 = arith.constant 0 : index
    %c0_4 = arith.constant 0 : index
    %5 = vector.load %arg3[%c0_3, %c0_4] : memref<16x96xf32, #tpu.memory_space<vmem>>, vector<16x96xf32>
    tpu.vector_store %arg3[%c0_3, %c0_4], %4 {strides = array<i32>} : memref<16x96xf32, #tpu.memory_space<vmem>>, vector<16x96xf32>,
    return
  }
  func.func @transform_0(%arg0: i32) -> (i32, i32) {
    %c0_i32 = arith.constant 0 : i32
    %c0_i32_0 = arith.constant 0 : i32
    return %arg0, %c0_i32 : i32, i32
  }
  func.func @transform_1(%arg0: i32) -> (i32, i32) {
    %c0_i32 = arith.constant 0 : i32
    %c0_i32_0 = arith.constant 0 : i32
    %c0_i32_1 = arith.constant 0 : i32
    return %c0_i32, %c0_i32_0 : i32, i32
  }
  func.func @transform_2(%arg0: i32) -> (i32, i32) {
    %c0_i32 = arith.constant 0 : i32
    %c0_i32_0 = arith.constant 0 : i32
    return %arg0, %c0_i32 : i32, i32
  }
}

module attributes {stable_mosaic.version = 11 : i64} {
  func.func @_embed_h_kernel(%arg0: i32, %arg1: memref<16x6xf32, #tpu.memory_space<vmem>>, %arg2: memref<6x32xf32, #tpu.memory_space<vmem>>, %arg3: memref<1x32xf32, #tpu.memory_space<vmem>>, %arg4: memref<16x10xf32, #tpu.memory_space<vmem>>, %arg5: memref<10x32xf32, #tpu.memory_space<vmem>>, %arg6: memref<1x32xf32, #tpu.memory_space<vmem>>, %arg7: memref<16x32xf32, #tpu.memory_space<vmem>>) attributes {dimension_semantics = [#tpu.dimension_semantics<parallel>], iteration_bounds = array<i64: 1>, scalar_prefetch = 0 : i64, scratch_operands = 0 : i64, tpu.core_type = #tpu.core_type<tc>, window_params = [{transform_indices = @transform_0, window_bounds = array<i64: 16, 6>}, {pipeline_mode = #tpu.pipeline_mode<synchronous>, transform_indices = @transform_1, window_bounds = array<i64: 6, 32>}, {pipeline_mode = #tpu.pipeline_mode<synchronous>, transform_indices = @transform_2, window_bounds = array<i64: 1, 32>}, {transform_indices = @transform_3, window_bounds = array<i64: 16, 10>}, {pipeline_mode = #tpu.pipeline_mode<synchronous>, transform_indices = @transform_4, window_bounds = array<i64: 10, 32>}, {pipeline_mode = #tpu.pipeline_mode<synchronous>, transform_indices = @transform_5, window_bounds = array<i64: 1, 32>}, {transform_indices = @transform_6, window_bounds = array<i64: 16, 32>}]} {
    %c0 = arith.constant 0 : index
    %c0_0 = arith.constant 0 : index
    %0 = vector.load %arg1[%c0, %c0_0] : memref<16x6xf32, #tpu.memory_space<vmem>>, vector<16x6xf32>
    %c0_1 = arith.constant 0 : index
    %c0_2 = arith.constant 0 : index
    %1 = vector.load %arg2[%c0_1, %c0_2] : memref<6x32xf32, #tpu.memory_space<vmem>>, vector<6x32xf32>
    %2 = arith.truncf %0 : vector<16x6xf32> to vector<16x6xbf16>
    %3 = arith.truncf %1 : vector<6x32xf32> to vector<6x32xbf16>
    %cst = arith.constant dense<0.000000e+00> : vector<16x32xf32>
    %4 = tpu.matmul %2, %3, %cst {dimension_numbers = #tpu.dot_dimension_numbers<[1], [0], [0], [1], [0, 0, 1, 1], [], []>} : vector<16x6xbf16>, vector<6x32xbf16>, vector<16x32xf32> -> vector<16x32xf32>
    %c0_3 = arith.constant 0 : index
    %c0_4 = arith.constant 0 : index
    %5 = vector.load %arg3[%c0_3, %c0_4] : memref<1x32xf32, #tpu.memory_space<vmem>>, vector<1x32xf32>
    %6 = vector.broadcast %5 : vector<1x32xf32> to vector<16x32xf32>
    %7 = arith.addf %4, %6 : vector<16x32xf32>
    %c0_5 = arith.constant 0 : index
    %c0_6 = arith.constant 0 : index
    %8 = vector.load %arg4[%c0_5, %c0_6] : memref<16x10xf32, #tpu.memory_space<vmem>>, vector<16x10xf32>
    %c0_7 = arith.constant 0 : index
    %c0_8 = arith.constant 0 : index
    %9 = vector.load %arg5[%c0_7, %c0_8] : memref<10x32xf32, #tpu.memory_space<vmem>>, vector<10x32xf32>
    %10 = arith.truncf %8 : vector<16x10xf32> to vector<16x10xbf16>
    %11 = arith.truncf %9 : vector<10x32xf32> to vector<10x32xbf16>
    %cst_9 = arith.constant dense<0.000000e+00> : vector<16x32xf32>
    %12 = tpu.matmul %10, %11, %cst_9 {dimension_numbers = #tpu.dot_dimension_numbers<[1], [0], [0], [1], [0, 0, 1, 1], [], []>} : vector<16x10xbf16>, vector<10x32xbf16>, vector<16x32xf32> -> vector<16x32xf32>
    %13 = arith.addf %7, %12 : vector<16x32xf32>
    %c0_10 = arith.constant 0 : index
    %c0_11 = arith.constant 0 : index
    %14 = vector.load %arg6[%c0_10, %c0_11] : memref<1x32xf32, #tpu.memory_space<vmem>>, vector<1x32xf32>
    %15 = vector.broadcast %14 : vector<1x32xf32> to vector<16x32xf32>
    %16 = arith.addf %13, %15 : vector<16x32xf32>
    %c0_12 = arith.constant 0 : index
    %c0_13 = arith.constant 0 : index
    %17 = vector.load %arg7[%c0_12, %c0_13] : memref<16x32xf32, #tpu.memory_space<vmem>>, vector<16x32xf32>
    tpu.vector_store %arg7[%c0_12, %c0_13], %16 {strides = array<i32>} : memref<16x32xf32, #tpu.memory_space<vmem>>, vector<16x32xf32>,
    return
  }
  func.func @transform_0(%arg0: i32) -> (i32, i32) {
    %c0_i32 = arith.constant 0 : i32
    %c0_i32_0 = arith.constant 0 : i32
    return %arg0, %c0_i32 : i32, i32
  }
  func.func @transform_1(%arg0: i32) -> (i32, i32) {
    %c0_i32 = arith.constant 0 : i32
    %c0_i32_0 = arith.constant 0 : i32
    %c0_i32_1 = arith.constant 0 : i32
    return %c0_i32, %c0_i32_0 : i32, i32
  }
  func.func @transform_2(%arg0: i32) -> (i32, i32) {
    %c0_i32 = arith.constant 0 : i32
    %c0_i32_0 = arith.constant 0 : i32
    %c0_i32_1 = arith.constant 0 : i32
    return %c0_i32, %c0_i32_0 : i32, i32
  }
  func.func @transform_3(%arg0: i32) -> (i32, i32) {
    %c0_i32 = arith.constant 0 : i32
    %c0_i32_0 = arith.constant 0 : i32
    return %arg0, %c0_i32 : i32, i32
  }
  func.func @transform_4(%arg0: i32) -> (i32, i32) {
    %c0_i32 = arith.constant 0 : i32
    %c0_i32_0 = arith.constant 0 : i32
    %c0_i32_1 = arith.constant 0 : i32
    return %c0_i32, %c0_i32_0 : i32, i32
  }
  func.func @transform_5(%arg0: i32) -> (i32, i32) {
    %c0_i32 = arith.constant 0 : i32
    %c0_i32_0 = arith.constant 0 : i32
    %c0_i32_1 = arith.constant 0 : i32
    return %c0_i32, %c0_i32_0 : i32, i32
  }
  func.func @transform_6(%arg0: i32) -> (i32, i32) {
    %c0_i32 = arith.constant 0 : i32
    %c0_i32_0 = arith.constant 0 : i32
    return %arg0, %c0_i32 : i32, i32
  }
}

module attributes {stable_mosaic.version = 11 : i64} {
  func.func @_linear_nobias_kernel(%arg0: i32, %arg1: memref<32x32xf32, #tpu.memory_space<vmem>>, %arg2: memref<32x32xf32, #tpu.memory_space<vmem>>, %arg3: memref<32x32xf32, #tpu.memory_space<vmem>>) attributes {dimension_semantics = [#tpu.dimension_semantics<parallel>], iteration_bounds = array<i64: 1>, scalar_prefetch = 0 : i64, scratch_operands = 0 : i64, tpu.core_type = #tpu.core_type<tc>, window_params = [{transform_indices = @transform_0, window_bounds = array<i64: 32, 32>}, {pipeline_mode = #tpu.pipeline_mode<synchronous>, transform_indices = @transform_1, window_bounds = array<i64: 32, 32>}, {transform_indices = @transform_2, window_bounds = array<i64: 32, 32>}]} {
    %c0 = arith.constant 0 : index
    %c0_0 = arith.constant 0 : index
    %0 = vector.load %arg1[%c0, %c0_0] : memref<32x32xf32, #tpu.memory_space<vmem>>, vector<32x32xf32>
    %c0_1 = arith.constant 0 : index
    %c0_2 = arith.constant 0 : index
    %1 = vector.load %arg2[%c0_1, %c0_2] : memref<32x32xf32, #tpu.memory_space<vmem>>, vector<32x32xf32>
    %2 = arith.truncf %0 : vector<32x32xf32> to vector<32x32xbf16>
    %3 = arith.truncf %1 : vector<32x32xf32> to vector<32x32xbf16>
    %cst = arith.constant dense<0.000000e+00> : vector<32x32xf32>
    %4 = tpu.matmul %2, %3, %cst {dimension_numbers = #tpu.dot_dimension_numbers<[1], [0], [0], [1], [0, 0, 1, 1], [], []>} : vector<32x32xbf16>, vector<32x32xbf16>, vector<32x32xf32> -> vector<32x32xf32>
    %c0_3 = arith.constant 0 : index
    %c0_4 = arith.constant 0 : index
    %5 = vector.load %arg3[%c0_3, %c0_4] : memref<32x32xf32, #tpu.memory_space<vmem>>, vector<32x32xf32>
    tpu.vector_store %arg3[%c0_3, %c0_4], %4 {strides = array<i32>} : memref<32x32xf32, #tpu.memory_space<vmem>>, vector<32x32xf32>,
    return
  }
  func.func @transform_0(%arg0: i32) -> (i32, i32) {
    %c0_i32 = arith.constant 0 : i32
    %c0_i32_0 = arith.constant 0 : i32
    return %arg0, %c0_i32 : i32, i32
  }
  func.func @transform_1(%arg0: i32) -> (i32, i32) {
    %c0_i32 = arith.constant 0 : i32
    %c0_i32_0 = arith.constant 0 : i32
    %c0_i32_1 = arith.constant 0 : i32
    return %c0_i32, %c0_i32_0 : i32, i32
  }
  func.func @transform_2(%arg0: i32) -> (i32, i32) {
    %c0_i32 = arith.constant 0 : i32
    %c0_i32_0 = arith.constant 0 : i32
    return %arg0, %c0_i32 : i32, i32
  }
}

module attributes {stable_mosaic.version = 11 : i64} {
  func.func @_linear_bias_kernel(%arg0: i32, %arg1: memref<32x4xf32, #tpu.memory_space<vmem>>, %arg2: memref<4x32xf32, #tpu.memory_space<vmem>>, %arg3: memref<1x32xf32, #tpu.memory_space<vmem>>, %arg4: memref<32x32xf32, #tpu.memory_space<vmem>>) attributes {dimension_semantics = [#tpu.dimension_semantics<parallel>], iteration_bounds = array<i64: 1>, scalar_prefetch = 0 : i64, scratch_operands = 0 : i64, tpu.core_type = #tpu.core_type<tc>, window_params = [{transform_indices = @transform_0, window_bounds = array<i64: 32, 4>}, {pipeline_mode = #tpu.pipeline_mode<synchronous>, transform_indices = @transform_1, window_bounds = array<i64: 4, 32>}, {pipeline_mode = #tpu.pipeline_mode<synchronous>, transform_indices = @transform_2, window_bounds = array<i64: 1, 32>}, {transform_indices = @transform_3, window_bounds = array<i64: 32, 32>}]} {
    %c0 = arith.constant 0 : index
    %c0_0 = arith.constant 0 : index
    %0 = vector.load %arg1[%c0, %c0_0] : memref<32x4xf32, #tpu.memory_space<vmem>>, vector<32x4xf32>
    %c0_1 = arith.constant 0 : index
    %c0_2 = arith.constant 0 : index
    %1 = vector.load %arg2[%c0_1, %c0_2] : memref<4x32xf32, #tpu.memory_space<vmem>>, vector<4x32xf32>
    %2 = arith.truncf %0 : vector<32x4xf32> to vector<32x4xbf16>
    %3 = arith.truncf %1 : vector<4x32xf32> to vector<4x32xbf16>
    %cst = arith.constant dense<0.000000e+00> : vector<32x32xf32>
    %4 = tpu.matmul %2, %3, %cst {dimension_numbers = #tpu.dot_dimension_numbers<[1], [0], [0], [1], [0, 0, 1, 1], [], []>} : vector<32x4xbf16>, vector<4x32xbf16>, vector<32x32xf32> -> vector<32x32xf32>
    %c0_3 = arith.constant 0 : index
    %c0_4 = arith.constant 0 : index
    %5 = vector.load %arg3[%c0_3, %c0_4] : memref<1x32xf32, #tpu.memory_space<vmem>>, vector<1x32xf32>
    %6 = vector.broadcast %5 : vector<1x32xf32> to vector<32x32xf32>
    %7 = arith.addf %4, %6 : vector<32x32xf32>
    %c0_5 = arith.constant 0 : index
    %c0_6 = arith.constant 0 : index
    %8 = vector.load %arg4[%c0_5, %c0_6] : memref<32x32xf32, #tpu.memory_space<vmem>>, vector<32x32xf32>
    tpu.vector_store %arg4[%c0_5, %c0_6], %7 {strides = array<i32>} : memref<32x32xf32, #tpu.memory_space<vmem>>, vector<32x32xf32>,
    return
  }
  func.func @transform_0(%arg0: i32) -> (i32, i32) {
    %c0_i32 = arith.constant 0 : i32
    %c0_i32_0 = arith.constant 0 : i32
    return %arg0, %c0_i32 : i32, i32
  }
  func.func @transform_1(%arg0: i32) -> (i32, i32) {
    %c0_i32 = arith.constant 0 : i32
    %c0_i32_0 = arith.constant 0 : i32
    %c0_i32_1 = arith.constant 0 : i32
    return %c0_i32, %c0_i32_0 : i32, i32
  }
  func.func @transform_2(%arg0: i32) -> (i32, i32) {
    %c0_i32 = arith.constant 0 : i32
    %c0_i32_0 = arith.constant 0 : i32
    %c0_i32_1 = arith.constant 0 : i32
    return %c0_i32, %c0_i32_0 : i32, i32
  }
  func.func @transform_3(%arg0: i32) -> (i32, i32) {
    %c0_i32 = arith.constant 0 : i32
    %c0_i32_0 = arith.constant 0 : i32
    return %arg0, %c0_i32 : i32, i32
  }
}

module attributes {stable_mosaic.version = 11 : i64} {
  func.func @_edge_gather_kernel(%arg0: i32, %arg1: memref<32xi32, #tpu.memory_space<smem>>, %arg2: memref<32xi32, #tpu.memory_space<smem>>, %arg3: memref<1x1x32xf32, #tpu.memory_space<vmem>>, %arg4: memref<1x1x32xf32, #tpu.memory_space<vmem>>, %arg5: memref<1x1x32xf32, #tpu.memory_space<vmem>>, %arg6: memref<1x1x32xf32, #tpu.memory_space<vmem>>, %arg7: memref<1x1x32xf32, #tpu.memory_space<vmem>>, %arg8: memref<1x1x32xf32, #tpu.memory_space<vmem>>) attributes {dimension_semantics = [#tpu.dimension_semantics<arbitrary>], iteration_bounds = array<i64: 32>, scalar_prefetch = 2 : i64, scratch_operands = 0 : i64, tpu.core_type = #tpu.core_type<tc>, window_params = [{transform_indices = @transform_0, window_bounds = array<i64: 1, 1, 32>}, {transform_indices = @transform_1, window_bounds = array<i64: 1, 1, 32>}, {transform_indices = @transform_2, window_bounds = array<i64: 1, 1, 32>}, {transform_indices = @transform_3, window_bounds = array<i64: 1, 1, 32>}, {transform_indices = @transform_4, window_bounds = array<i64: 1, 1, 32>}, {transform_indices = @transform_5, window_bounds = array<i64: 1, 1, 32>}]} {
    %c0 = arith.constant 0 : index
    %c0_0 = arith.constant 0 : index
    %c0_1 = arith.constant 0 : index
    %0 = vector.load %arg3[%c0, %c0_0, %c0_1] : memref<1x1x32xf32, #tpu.memory_space<vmem>>, vector<1x1x32xf32>
    %c0_2 = arith.constant 0 : index
    %c0_3 = arith.constant 0 : index
    %c0_4 = arith.constant 0 : index
    %1 = vector.load %arg4[%c0_2, %c0_3, %c0_4] : memref<1x1x32xf32, #tpu.memory_space<vmem>>, vector<1x1x32xf32>
    %2 = arith.mulf %0, %1 : vector<1x1x32xf32>
    %c0_5 = arith.constant 0 : index
    %c0_6 = arith.constant 0 : index
    %c0_7 = arith.constant 0 : index
    %3 = vector.load %arg5[%c0_5, %c0_6, %c0_7] : memref<1x1x32xf32, #tpu.memory_space<vmem>>, vector<1x1x32xf32>
    %4 = arith.mulf %2, %3 : vector<1x1x32xf32>
    %cst = arith.constant 0.353553385 : f32
    %5 = vector.broadcast %cst : f32 to vector<1x1x32xf32>
    %6 = arith.mulf %4, %5 : vector<1x1x32xf32>
    %c0_8 = arith.constant 0 : index
    %c0_9 = arith.constant 0 : index
    %c0_10 = arith.constant 0 : index
    %7 = vector.load %arg7[%c0_8, %c0_9, %c0_10] : memref<1x1x32xf32, #tpu.memory_space<vmem>>, vector<1x1x32xf32>
    tpu.vector_store %arg7[%c0_8, %c0_9, %c0_10], %6 {strides = array<i32>} : memref<1x1x32xf32, #tpu.memory_space<vmem>>, vector<1x1x32xf32>,
    %c0_11 = arith.constant 0 : index
    %c0_12 = arith.constant 0 : index
    %c0_13 = arith.constant 0 : index
    %8 = vector.load %arg6[%c0_11, %c0_12, %c0_13] : memref<1x1x32xf32, #tpu.memory_space<vmem>>, vector<1x1x32xf32>
    %c0_14 = arith.constant 0 : index
    %c0_15 = arith.constant 0 : index
    %c0_16 = arith.constant 0 : index
    %9 = vector.load %arg8[%c0_14, %c0_15, %c0_16] : memref<1x1x32xf32, #tpu.memory_space<vmem>>, vector<1x1x32xf32>
    tpu.vector_store %arg8[%c0_14, %c0_15, %c0_16], %8 {strides = array<i32>} : memref<1x1x32xf32, #tpu.memory_space<vmem>>, vector<1x1x32xf32>,
    return
  }
  func.func @transform_0(%arg0: i32, %arg1: memref<32xi32, #tpu.memory_space<smem>>, %arg2: memref<32xi32, #tpu.memory_space<smem>>) -> (i32, i32, i32) {
    %0 = arith.index_cast %arg0 : i32 to index
    %1 = memref.load %arg1[%0] : memref<32xi32, #tpu.memory_space<smem>>
    %c0_i32 = arith.constant 0 : i32
    %c0_i32_0 = arith.constant 0 : i32
    %c0_i32_1 = arith.constant 0 : i32
    return %1, %c0_i32, %c0_i32_0 : i32, i32, i32
  }
  func.func @transform_1(%arg0: i32, %arg1: memref<32xi32, #tpu.memory_space<smem>>, %arg2: memref<32xi32, #tpu.memory_space<smem>>) -> (i32, i32, i32) {
    %0 = arith.index_cast %arg0 : i32 to index
    %1 = memref.load %arg2[%0] : memref<32xi32, #tpu.memory_space<smem>>
    %c0_i32 = arith.constant 0 : i32
    %c0_i32_0 = arith.constant 0 : i32
    %c0_i32_1 = arith.constant 0 : i32
    return %1, %c0_i32, %c0_i32_0 : i32, i32, i32
  }
  func.func @transform_2(%arg0: i32, %arg1: memref<32xi32, #tpu.memory_space<smem>>, %arg2: memref<32xi32, #tpu.memory_space<smem>>) -> (i32, i32, i32) {
    %c0_i32 = arith.constant 0 : i32
    %c0_i32_0 = arith.constant 0 : i32
    %c0_i32_1 = arith.constant 0 : i32
    return %arg0, %c0_i32, %c0_i32_0 : i32, i32, i32
  }
  func.func @transform_3(%arg0: i32, %arg1: memref<32xi32, #tpu.memory_space<smem>>, %arg2: memref<32xi32, #tpu.memory_space<smem>>) -> (i32, i32, i32) {
    %0 = arith.index_cast %arg0 : i32 to index
    %1 = memref.load %arg2[%0] : memref<32xi32, #tpu.memory_space<smem>>
    %c0_i32 = arith.constant 0 : i32
    %c0_i32_0 = arith.constant 0 : i32
    %c0_i32_1 = arith.constant 0 : i32
    return %1, %c0_i32, %c0_i32_0 : i32, i32, i32
  }
  func.func @transform_4(%arg0: i32, %arg1: memref<32xi32, #tpu.memory_space<smem>>, %arg2: memref<32xi32, #tpu.memory_space<smem>>) -> (i32, i32, i32) {
    %c0_i32 = arith.constant 0 : i32
    %c0_i32_0 = arith.constant 0 : i32
    %c0_i32_1 = arith.constant 0 : i32
    return %arg0, %c0_i32, %c0_i32_0 : i32, i32, i32
  }
  func.func @transform_5(%arg0: i32, %arg1: memref<32xi32, #tpu.memory_space<smem>>, %arg2: memref<32xi32, #tpu.memory_space<smem>>) -> (i32, i32, i32) {
    %c0_i32 = arith.constant 0 : i32
    %c0_i32_0 = arith.constant 0 : i32
    %c0_i32_1 = arith.constant 0 : i32
    return %arg0, %c0_i32, %c0_i32_0 : i32, i32, i32
  }
}

module attributes {stable_mosaic.version = 11 : i64} {
  func.func @_h_path_kernel(%arg0: i32, %arg1: memref<32x32xf32, #tpu.memory_space<vmem>>, %arg2: memref<32x32xf32, #tpu.memory_space<vmem>>, %arg3: memref<16x32xf32, #tpu.memory_space<vmem>>, %arg4: memref<32x4xf32, #tpu.memory_space<vmem>>, %arg5: memref<4x32xf32, #tpu.memory_space<vmem>>, %arg6: memref<32x32xf32, #tpu.memory_space<vmem>>, %arg7: memref<1x32xf32, #tpu.memory_space<vmem>>, %arg8: memref<16x32xf32, #tpu.memory_space<vmem>>, %arg9: memref<1x32xf32, #tpu.memory_space<vmem>>, %arg10: memref<1x32xf32, #tpu.memory_space<vmem>>, %arg11: memref<32x64xf32, #tpu.memory_space<vmem>>, %arg12: memref<1x64xf32, #tpu.memory_space<vmem>>, %arg13: memref<64x32xf32, #tpu.memory_space<vmem>>, %arg14: memref<1x32xf32, #tpu.memory_space<vmem>>, %arg15: memref<1x32xf32, #tpu.memory_space<vmem>>, %arg16: memref<1x32xf32, #tpu.memory_space<vmem>>, %arg17: memref<16x32xf32, #tpu.memory_space<vmem>>) attributes {dimension_semantics = [#tpu.dimension_semantics<arbitrary>], iteration_bounds = array<i64: 1>, scalar_prefetch = 0 : i64, scratch_operands = 0 : i64, tpu.core_type = #tpu.core_type<tc>, window_params = [{pipeline_mode = #tpu.pipeline_mode<synchronous>, transform_indices = @transform_0, window_bounds = array<i64: 32, 32>}, {pipeline_mode = #tpu.pipeline_mode<synchronous>, transform_indices = @transform_1, window_bounds = array<i64: 32, 32>}, {pipeline_mode = #tpu.pipeline_mode<synchronous>, transform_indices = @transform_2, window_bounds = array<i64: 16, 32>}, {pipeline_mode = #tpu.pipeline_mode<synchronous>, transform_indices = @transform_3, window_bounds = array<i64: 32, 4>}, {pipeline_mode = #tpu.pipeline_mode<synchronous>, transform_indices = @transform_4, window_bounds = array<i64: 4, 32>}, {pipeline_mode = #tpu.pipeline_mode<synchronous>, transform_indices = @transform_5, window_bounds = array<i64: 32, 32>}, {pipeline_mode = #tpu.pipeline_mode<synchronous>, transform_indices = @transform_6, window_bounds = array<i64: 1, 32>}, {pipeline_mode = #tpu.pipeline_mode<synchronous>, transform_indices = @transform_7, window_bounds = array<i64: 16, 32>}, {pipeline_mode = #tpu.pipeline_mode<synchronous>, transform_indices = @transform_8, window_bounds = array<i64: 1, 32>}, {pipeline_mode = #tpu.pipeline_mode<synchronous>, transform_indices = @transform_9, window_bounds = array<i64: 1, 32>}, {pipeline_mode = #tpu.pipeline_mode<synchronous>, transform_indices = @transform_10, window_bounds = array<i64: 32, 64>}, {pipeline_mode = #tpu.pipeline_mode<synchronous>, transform_indices = @transform_11, window_bounds = array<i64: 1, 64>}, {pipeline_mode = #tpu.pipeline_mode<synchronous>, transform_indices = @transform_12, window_bounds = array<i64: 64, 32>}, {pipeline_mode = #tpu.pipeline_mode<synchronous>, transform_indices = @transform_13, window_bounds = array<i64: 1, 32>}, {pipeline_mode = #tpu.pipeline_mode<synchronous>, transform_indices = @transform_14, window_bounds = array<i64: 1, 32>}, {pipeline_mode = #tpu.pipeline_mode<synchronous>, transform_indices = @transform_15, window_bounds = array<i64: 1, 32>}, {pipeline_mode = #tpu.pipeline_mode<synchronous>, transform_indices = @transform_16, window_bounds = array<i64: 16, 32>}]} {
    %c0 = arith.constant 0 : index
    %c0_0 = arith.constant 0 : index
    %0 = vector.load %arg1[%c0, %c0_0] : memref<32x32xf32, #tpu.memory_space<vmem>>, vector<32x32xf32>
    %c0_1 = arith.constant 0 : index
    %c0_2 = arith.constant 0 : index
    %1 = vector.load %arg4[%c0_1, %c0_2] : memref<32x4xf32, #tpu.memory_space<vmem>>, vector<32x4xf32>
    %cst = arith.constant dense<0.000000e+00> : vector<32x4xf32>
    %2 = tpu.matmul %0, %1, %cst {dimension_numbers = #tpu.dot_dimension_numbers<[1], [0], [0], [1], [0, 0, 1, 1], [], []>} : vector<32x32xf32>, vector<32x4xf32>, vector<32x4xf32> -> vector<32x4xf32>
    %cst_3 = arith.constant dense<0xFF800000> : vector<4xf32>
    %3 = vector.multi_reduction <maximumf>, %2, %cst_3 [0] : vector<32x4xf32> to vector<4xf32>
    %4 = vector.shape_cast %3 : vector<4xf32> to vector<1x4xf32>
    %5 = vector.broadcast %4 : vector<1x4xf32> to vector<32x4xf32>
    %6 = arith.subf %2, %5 : vector<32x4xf32>
    %7 = math.exp %6 : vector<32x4xf32>
    %c0_4 = arith.constant 0 : index
    %c0_5 = arith.constant 0 : index
    %8 = vector.load %arg5[%c0_4, %c0_5] : memref<4x32xf32, #tpu.memory_space<vmem>>, vector<4x32xf32>
    %cst_6 = arith.constant dense<0.000000e+00> : vector<32x32xf32>
    %9 = tpu.matmul %7, %8, %cst_6 {dimension_numbers = #tpu.dot_dimension_numbers<[1], [0], [0], [1], [0, 0, 1, 1], [], []>} : vector<32x4xf32>, vector<4x32xf32>, vector<32x32xf32> -> vector<32x32xf32>
    %c0_7 = arith.constant 0 : index
    %c0_8 = arith.constant 0 : index
    %10 = vector.load %arg2[%c0_7, %c0_8] : memref<32x32xf32, #tpu.memory_space<vmem>>, vector<32x32xf32>
    %11 = arith.mulf %9, %10 : vector<32x32xf32>
    %c0_9 = arith.constant 0 : index
    %c0_10 = arith.constant 0 : index
    %12 = vector.load %arg3[%c0_9, %c0_10] : memref<16x32xf32, #tpu.memory_space<vmem>>, vector<16x32xf32>
    %cst_11 = arith.constant dense<0.000000e+00> : vector<16x4xf32>
    %13 = tpu.matmul %12, %7, %cst_11 {dimension_numbers = #tpu.dot_dimension_numbers<[1], [0], [0], [1], [0, 0, 1, 1], [], []>} : vector<16x32xf32>, vector<32x4xf32>, vector<16x4xf32> -> vector<16x4xf32>
    %cst_12 = arith.constant dense<0.000000e+00> : vector<16x32xf32>
    %14 = tpu.matmul %12, %11, %cst_12 {dimension_numbers = #tpu.dot_dimension_numbers<[1], [0], [0], [1], [0, 0, 1, 1], [], []>} : vector<16x32xf32>, vector<32x32xf32>, vector<16x32xf32> -> vector<16x32xf32>
    %cst_13 = arith.constant 0.000000e+00 : f32
    %15 = vector.broadcast %cst_13 : f32 to vector<16x4xf32>
    %16 = arith.cmpf ogt, %13, %15 : vector<16x4xf32>
    %17 = tpu.reciprocal %13 {approx = true} : vector<16x4xf32> -> vector<16x4xf32>
    %cst_14 = arith.constant 0.000000e+00 : f32
    %18 = vector.broadcast %cst_14 : f32 to vector<16x4xf32>
    %19 = arith.select %16, %17, %18 : vector<16x4xi1>, vector<16x4xf32>
    %c0_15 = arith.constant 0 : index
    %c0_16 = arith.constant 0 : index
    %20 = vector.load %arg5[%c0_15, %c0_16] : memref<4x32xf32, #tpu.memory_space<vmem>>, vector<4x32xf32>
    %cst_17 = arith.constant dense<0.000000e+00> : vector<16x32xf32>
    %21 = tpu.matmul %19, %20, %cst_17 {dimension_numbers = #tpu.dot_dimension_numbers<[1], [0], [0], [1], [0, 0, 1, 1], [], []>} : vector<16x4xf32>, vector<4x32xf32>, vector<16x32xf32> -> vector<16x32xf32>
    %22 = arith.mulf %14, %21 : vector<16x32xf32>
    %c0_18 = arith.constant 0 : index
    %c0_19 = arith.constant 0 : index
    %23 = vector.load %arg6[%c0_18, %c0_19] : memref<32x32xf32, #tpu.memory_space<vmem>>, vector<32x32xf32>
    %24 = arith.truncf %22 : vector<16x32xf32> to vector<16x32xbf16>
    %25 = arith.truncf %23 : vector<32x32xf32> to vector<32x32xbf16>
    %cst_20 = arith.constant dense<0.000000e+00> : vector<16x32xf32>
    %26 = tpu.matmul %24, %25, %cst_20 {dimension_numbers = #tpu.dot_dimension_numbers<[1], [0], [0], [1], [0, 0, 1, 1], [], []>} : vector<16x32xbf16>, vector<32x32xbf16>, vector<16x32xf32> -> vector<16x32xf32>
    %c0_21 = arith.constant 0 : index
    %c0_22 = arith.constant 0 : index
    %27 = vector.load %arg7[%c0_21, %c0_22] : memref<1x32xf32, #tpu.memory_space<vmem>>, vector<1x32xf32>
    %28 = vector.broadcast %27 : vector<1x32xf32> to vector<16x32xf32>
    %29 = arith.addf %26, %28 : vector<16x32xf32>
    %c0_23 = arith.constant 0 : index
    %c0_24 = arith.constant 0 : index
    %30 = vector.load %arg8[%c0_23, %c0_24] : memref<16x32xf32, #tpu.memory_space<vmem>>, vector<16x32xf32>
    %31 = arith.addf %29, %30 : vector<16x32xf32>
    %c0_25 = arith.constant 0 : index
    %c0_26 = arith.constant 0 : index
    %32 = vector.load %arg9[%c0_25, %c0_26] : memref<1x32xf32, #tpu.memory_space<vmem>>, vector<1x32xf32>
    %c0_27 = arith.constant 0 : index
    %c0_28 = arith.constant 0 : index
    %33 = vector.load %arg10[%c0_27, %c0_28] : memref<1x32xf32, #tpu.memory_space<vmem>>, vector<1x32xf32>
    %cst_29 = arith.constant dense<0.000000e+00> : vector<32xf32>
    %34 = vector.multi_reduction <add>, %31, %cst_29 [0] : vector<16x32xf32> to vector<32xf32>
    %35 = vector.shape_cast %34 : vector<32xf32> to vector<1x32xf32>
    %cst_30 = arith.constant 1.600000e+01 : f32
    %36 = vector.broadcast %cst_30 : f32 to vector<1x32xf32>
    %37 = arith.divf %35, %36 : vector<1x32xf32>
    %38 = vector.broadcast %37 : vector<1x32xf32> to vector<16x32xf32>
    %39 = arith.subf %31, %38 : vector<16x32xf32>
    %40 = arith.mulf %39, %39 : vector<16x32xf32>
    %cst_31 = arith.constant dense<0.000000e+00> : vector<32xf32>
    %41 = vector.multi_reduction <add>, %40, %cst_31 [0] : vector<16x32xf32> to vector<32xf32>
    %42 = vector.shape_cast %41 : vector<32xf32> to vector<1x32xf32>
    %cst_32 = arith.constant 1.600000e+01 : f32
    %43 = vector.broadcast %cst_32 : f32 to vector<1x32xf32>
    %44 = arith.divf %42, %43 : vector<1x32xf32>
    %45 = vector.broadcast %37 : vector<1x32xf32> to vector<16x32xf32>
    %46 = arith.subf %31, %45 : vector<16x32xf32>
    %cst_33 = arith.constant 9.99999974E-6 : f32
    %47 = vector.broadcast %cst_33 : f32 to vector<1x32xf32>
    %48 = arith.addf %44, %47 : vector<1x32xf32>
    %49 = math.rsqrt %48 : vector<1x32xf32>
    %50 = vector.broadcast %49 : vector<1x32xf32> to vector<16x32xf32>
    %51 = arith.mulf %46, %50 : vector<16x32xf32>
    %52 = vector.broadcast %32 : vector<1x32xf32> to vector<16x32xf32>
    %53 = arith.mulf %51, %52 : vector<16x32xf32>
    %54 = vector.broadcast %33 : vector<1x32xf32> to vector<16x32xf32>
    %55 = arith.addf %53, %54 : vector<16x32xf32>
    %c0_34 = arith.constant 0 : index
    %c0_35 = arith.constant 0 : index
    %56 = vector.load %arg11[%c0_34, %c0_35] : memref<32x64xf32, #tpu.memory_space<vmem>>, vector<32x64xf32>
    %57 = arith.truncf %55 : vector<16x32xf32> to vector<16x32xbf16>
    %58 = arith.truncf %56 : vector<32x64xf32> to vector<32x64xbf16>
    %cst_36 = arith.constant dense<0.000000e+00> : vector<16x64xf32>
    %59 = tpu.matmul %57, %58, %cst_36 {dimension_numbers = #tpu.dot_dimension_numbers<[1], [0], [0], [1], [0, 0, 1, 1], [], []>} : vector<16x32xbf16>, vector<32x64xbf16>, vector<16x64xf32> -> vector<16x64xf32>
    %c0_37 = arith.constant 0 : index
    %c0_38 = arith.constant 0 : index
    %60 = vector.load %arg12[%c0_37, %c0_38] : memref<1x64xf32, #tpu.memory_space<vmem>>, vector<1x64xf32>
    %61 = vector.broadcast %60 : vector<1x64xf32> to vector<16x64xf32>
    %62 = arith.addf %59, %61 : vector<16x64xf32>
    %cst_39 = arith.constant 0.000000e+00 : f32
    %63 = vector.broadcast %cst_39 : f32 to vector<16x64xf32>
    %64 = arith.maximumf %62, %63 : vector<16x64xf32>
    %c0_40 = arith.constant 0 : index
    %c0_41 = arith.constant 0 : index
    %65 = vector.load %arg13[%c0_40, %c0_41] : memref<64x32xf32, #tpu.memory_space<vmem>>, vector<64x32xf32>
    %66 = arith.truncf %64 : vector<16x64xf32> to vector<16x64xbf16>
    %67 = arith.truncf %65 : vector<64x32xf32> to vector<64x32xbf16>
    %cst_42 = arith.constant dense<0.000000e+00> : vector<16x32xf32>
    %68 = tpu.matmul %66, %67, %cst_42 {dimension_numbers = #tpu.dot_dimension_numbers<[1], [0], [0], [1], [0, 0, 1, 1], [], []>} : vector<16x64xbf16>, vector<64x32xbf16>, vector<16x32xf32> -> vector<16x32xf32>
    %c0_43 = arith.constant 0 : index
    %c0_44 = arith.constant 0 : index
    %69 = vector.load %arg14[%c0_43, %c0_44] : memref<1x32xf32, #tpu.memory_space<vmem>>, vector<1x32xf32>
    %70 = vector.broadcast %69 : vector<1x32xf32> to vector<16x32xf32>
    %71 = arith.addf %68, %70 : vector<16x32xf32>
    %72 = arith.addf %71, %55 : vector<16x32xf32>
    %c0_45 = arith.constant 0 : index
    %c0_46 = arith.constant 0 : index
    %73 = vector.load %arg15[%c0_45, %c0_46] : memref<1x32xf32, #tpu.memory_space<vmem>>, vector<1x32xf32>
    %c0_47 = arith.constant 0 : index
    %c0_48 = arith.constant 0 : index
    %74 = vector.load %arg16[%c0_47, %c0_48] : memref<1x32xf32, #tpu.memory_space<vmem>>, vector<1x32xf32>
    %cst_49 = arith.constant dense<0.000000e+00> : vector<32xf32>
    %75 = vector.multi_reduction <add>, %72, %cst_49 [0] : vector<16x32xf32> to vector<32xf32>
    %76 = vector.shape_cast %75 : vector<32xf32> to vector<1x32xf32>
    %cst_50 = arith.constant 1.600000e+01 : f32
    %77 = vector.broadcast %cst_50 : f32 to vector<1x32xf32>
    %78 = arith.divf %76, %77 : vector<1x32xf32>
    %79 = vector.broadcast %78 : vector<1x32xf32> to vector<16x32xf32>
    %80 = arith.subf %72, %79 : vector<16x32xf32>
    %81 = arith.mulf %80, %80 : vector<16x32xf32>
    %cst_51 = arith.constant dense<0.000000e+00> : vector<32xf32>
    %82 = vector.multi_reduction <add>, %81, %cst_51 [0] : vector<16x32xf32> to vector<32xf32>
    %83 = vector.shape_cast %82 : vector<32xf32> to vector<1x32xf32>
    %cst_52 = arith.constant 1.600000e+01 : f32
    %84 = vector.broadcast %cst_52 : f32 to vector<1x32xf32>
    %85 = arith.divf %83, %84 : vector<1x32xf32>
    %86 = vector.broadcast %78 : vector<1x32xf32> to vector<16x32xf32>
    %87 = arith.subf %72, %86 : vector<16x32xf32>
    %cst_53 = arith.constant 9.99999974E-6 : f32
    %88 = vector.broadcast %cst_53 : f32 to vector<1x32xf32>
    %89 = arith.addf %85, %88 : vector<1x32xf32>
    %90 = math.rsqrt %89 : vector<1x32xf32>
    %91 = vector.broadcast %90 : vector<1x32xf32> to vector<16x32xf32>
    %92 = arith.mulf %87, %91 : vector<16x32xf32>
    %93 = vector.broadcast %73 : vector<1x32xf32> to vector<16x32xf32>
    %94 = arith.mulf %92, %93 : vector<16x32xf32>
    %95 = vector.broadcast %74 : vector<1x32xf32> to vector<16x32xf32>
    %96 = arith.addf %94, %95 : vector<16x32xf32>
    %c0_54 = arith.constant 0 : index
    %c0_55 = arith.constant 0 : index
    %97 = vector.load %arg17[%c0_54, %c0_55] : memref<16x32xf32, #tpu.memory_space<vmem>>, vector<16x32xf32>
    tpu.vector_store %arg17[%c0_54, %c0_55], %96 {strides = array<i32>} : memref<16x32xf32, #tpu.memory_space<vmem>>, vector<16x32xf32>,
    return
  }
  func.func @transform_0(%arg0: i32) -> (i32, i32) {
    %c0_i32 = arith.constant 0 : i32
    %c0_i32_0 = arith.constant 0 : i32
    %c0_i32_1 = arith.constant 0 : i32
    return %c0_i32, %c0_i32_0 : i32, i32
  }
  func.func @transform_1(%arg0: i32) -> (i32, i32) {
    %c0_i32 = arith.constant 0 : i32
    %c0_i32_0 = arith.constant 0 : i32
    %c0_i32_1 = arith.constant 0 : i32
    return %c0_i32, %c0_i32_0 : i32, i32
  }
  func.func @transform_2(%arg0: i32) -> (i32, i32) {
    %c0_i32 = arith.constant 0 : i32
    %c0_i32_0 = arith.constant 0 : i32
    %c0_i32_1 = arith.constant 0 : i32
    return %c0_i32, %c0_i32_0 : i32, i32
  }
  func.func @transform_3(%arg0: i32) -> (i32, i32) {
    %c0_i32 = arith.constant 0 : i32
    %c0_i32_0 = arith.constant 0 : i32
    %c0_i32_1 = arith.constant 0 : i32
    return %c0_i32, %c0_i32_0 : i32, i32
  }
  func.func @transform_4(%arg0: i32) -> (i32, i32) {
    %c0_i32 = arith.constant 0 : i32
    %c0_i32_0 = arith.constant 0 : i32
    %c0_i32_1 = arith.constant 0 : i32
    return %c0_i32, %c0_i32_0 : i32, i32
  }
  func.func @transform_5(%arg0: i32) -> (i32, i32) {
    %c0_i32 = arith.constant 0 : i32
    %c0_i32_0 = arith.constant 0 : i32
    %c0_i32_1 = arith.constant 0 : i32
    return %c0_i32, %c0_i32_0 : i32, i32
  }
  func.func @transform_6(%arg0: i32) -> (i32, i32) {
    %c0_i32 = arith.constant 0 : i32
    %c0_i32_0 = arith.constant 0 : i32
    %c0_i32_1 = arith.constant 0 : i32
    return %c0_i32, %c0_i32_0 : i32, i32
  }
  func.func @transform_7(%arg0: i32) -> (i32, i32) {
    %c0_i32 = arith.constant 0 : i32
    %c0_i32_0 = arith.constant 0 : i32
    %c0_i32_1 = arith.constant 0 : i32
    return %c0_i32, %c0_i32_0 : i32, i32
  }
  func.func @transform_8(%arg0: i32) -> (i32, i32) {
    %c0_i32 = arith.constant 0 : i32
    %c0_i32_0 = arith.constant 0 : i32
    %c0_i32_1 = arith.constant 0 : i32
    return %c0_i32, %c0_i32_0 : i32, i32
  }
  func.func @transform_9(%arg0: i32) -> (i32, i32) {
    %c0_i32 = arith.constant 0 : i32
    %c0_i32_0 = arith.constant 0 : i32
    %c0_i32_1 = arith.constant 0 : i32
    return %c0_i32, %c0_i32_0 : i32, i32
  }
  func.func @transform_10(%arg0: i32) -> (i32, i32) {
    %c0_i32 = arith.constant 0 : i32
    %c0_i32_0 = arith.constant 0 : i32
    %c0_i32_1 = arith.constant 0 : i32
    return %c0_i32, %c0_i32_0 : i32, i32
  }
  func.func @transform_11(%arg0: i32) -> (i32, i32) {
    %c0_i32 = arith.constant 0 : i32
    %c0_i32_0 = arith.constant 0 : i32
    %c0_i32_1 = arith.constant 0 : i32
    return %c0_i32, %c0_i32_0 : i32, i32
  }
  func.func @transform_12(%arg0: i32) -> (i32, i32) {
    %c0_i32 = arith.constant 0 : i32
    %c0_i32_0 = arith.constant 0 : i32
    %c0_i32_1 = arith.constant 0 : i32
    return %c0_i32, %c0_i32_0 : i32, i32
  }
  func.func @transform_13(%arg0: i32) -> (i32, i32) {
    %c0_i32 = arith.constant 0 : i32
    %c0_i32_0 = arith.constant 0 : i32
    %c0_i32_1 = arith.constant 0 : i32
    return %c0_i32, %c0_i32_0 : i32, i32
  }
  func.func @transform_14(%arg0: i32) -> (i32, i32) {
    %c0_i32 = arith.constant 0 : i32
    %c0_i32_0 = arith.constant 0 : i32
    %c0_i32_1 = arith.constant 0 : i32
    return %c0_i32, %c0_i32_0 : i32, i32
  }
  func.func @transform_15(%arg0: i32) -> (i32, i32) {
    %c0_i32 = arith.constant 0 : i32
    %c0_i32_0 = arith.constant 0 : i32
    %c0_i32_1 = arith.constant 0 : i32
    return %c0_i32, %c0_i32_0 : i32, i32
  }
  func.func @transform_16(%arg0: i32) -> (i32, i32) {
    %c0_i32 = arith.constant 0 : i32
    %c0_i32_0 = arith.constant 0 : i32
    %c0_i32_1 = arith.constant 0 : i32
    return %c0_i32, %c0_i32_0 : i32, i32
  }
}

module attributes {stable_mosaic.version = 11 : i64} {
  func.func @_e_path_kernel(%arg0: i32, %arg1: memref<32x32xf32, #tpu.memory_space<vmem>>, %arg2: memref<32x32xf32, #tpu.memory_space<vmem>>, %arg3: memref<1x32xf32, #tpu.memory_space<vmem>>, %arg4: memref<32x32xf32, #tpu.memory_space<vmem>>, %arg5: memref<1x32xf32, #tpu.memory_space<vmem>>, %arg6: memref<1x32xf32, #tpu.memory_space<vmem>>, %arg7: memref<32x64xf32, #tpu.memory_space<vmem>>, %arg8: memref<1x64xf32, #tpu.memory_space<vmem>>, %arg9: memref<64x32xf32, #tpu.memory_space<vmem>>, %arg10: memref<1x32xf32, #tpu.memory_space<vmem>>, %arg11: memref<1x32xf32, #tpu.memory_space<vmem>>, %arg12: memref<1x32xf32, #tpu.memory_space<vmem>>, %arg13: memref<32x32xf32, #tpu.memory_space<vmem>>) attributes {dimension_semantics = [#tpu.dimension_semantics<arbitrary>], iteration_bounds = array<i64: 1>, scalar_prefetch = 0 : i64, scratch_operands = 0 : i64, tpu.core_type = #tpu.core_type<tc>, window_params = [{pipeline_mode = #tpu.pipeline_mode<synchronous>, transform_indices = @transform_0, window_bounds = array<i64: 32, 32>}, {pipeline_mode = #tpu.pipeline_mode<synchronous>, transform_indices = @transform_1, window_bounds = array<i64: 32, 32>}, {pipeline_mode = #tpu.pipeline_mode<synchronous>, transform_indices = @transform_2, window_bounds = array<i64: 1, 32>}, {pipeline_mode = #tpu.pipeline_mode<synchronous>, transform_indices = @transform_3, window_bounds = array<i64: 32, 32>}, {pipeline_mode = #tpu.pipeline_mode<synchronous>, transform_indices = @transform_4, window_bounds = array<i64: 1, 32>}, {pipeline_mode = #tpu.pipeline_mode<synchronous>, transform_indices = @transform_5, window_bounds = array<i64: 1, 32>}, {pipeline_mode = #tpu.pipeline_mode<synchronous>, transform_indices = @transform_6, window_bounds = array<i64: 32, 64>}, {pipeline_mode = #tpu.pipeline_mode<synchronous>, transform_indices = @transform_7, window_bounds = array<i64: 1, 64>}, {pipeline_mode = #tpu.pipeline_mode<synchronous>, transform_indices = @transform_8, window_bounds = array<i64: 64, 32>}, {pipeline_mode = #tpu.pipeline_mode<synchronous>, transform_indices = @transform_9, window_bounds = array<i64: 1, 32>}, {pipeline_mode = #tpu.pipeline_mode<synchronous>, transform_indices = @transform_10, window_bounds = array<i64: 1, 32>}, {pipeline_mode = #tpu.pipeline_mode<synchronous>, transform_indices = @transform_11, window_bounds = array<i64: 1, 32>}, {pipeline_mode = #tpu.pipeline_mode<synchronous>, transform_indices = @transform_12, window_bounds = array<i64: 32, 32>}]} {
    %c0 = arith.constant 0 : index
    %c0_0 = arith.constant 0 : index
    %0 = vector.load %arg1[%c0, %c0_0] : memref<32x32xf32, #tpu.memory_space<vmem>>, vector<32x32xf32>
    %c0_1 = arith.constant 0 : index
    %c0_2 = arith.constant 0 : index
    %1 = vector.load %arg2[%c0_1, %c0_2] : memref<32x32xf32, #tpu.memory_space<vmem>>, vector<32x32xf32>
    %2 = arith.truncf %0 : vector<32x32xf32> to vector<32x32xbf16>
    %3 = arith.truncf %1 : vector<32x32xf32> to vector<32x32xbf16>
    %cst = arith.constant dense<0.000000e+00> : vector<32x32xf32>
    %4 = tpu.matmul %2, %3, %cst {dimension_numbers = #tpu.dot_dimension_numbers<[1], [0], [0], [1], [0, 0, 1, 1], [], []>} : vector<32x32xbf16>, vector<32x32xbf16>, vector<32x32xf32> -> vector<32x32xf32>
    %c0_3 = arith.constant 0 : index
    %c0_4 = arith.constant 0 : index
    %5 = vector.load %arg3[%c0_3, %c0_4] : memref<1x32xf32, #tpu.memory_space<vmem>>, vector<1x32xf32>
    %6 = vector.broadcast %5 : vector<1x32xf32> to vector<32x32xf32>
    %7 = arith.addf %4, %6 : vector<32x32xf32>
    %c0_5 = arith.constant 0 : index
    %c0_6 = arith.constant 0 : index
    %8 = vector.load %arg4[%c0_5, %c0_6] : memref<32x32xf32, #tpu.memory_space<vmem>>, vector<32x32xf32>
    %9 = arith.addf %7, %8 : vector<32x32xf32>
    %c0_7 = arith.constant 0 : index
    %c0_8 = arith.constant 0 : index
    %10 = vector.load %arg5[%c0_7, %c0_8] : memref<1x32xf32, #tpu.memory_space<vmem>>, vector<1x32xf32>
    %c0_9 = arith.constant 0 : index
    %c0_10 = arith.constant 0 : index
    %11 = vector.load %arg6[%c0_9, %c0_10] : memref<1x32xf32, #tpu.memory_space<vmem>>, vector<1x32xf32>
    %cst_11 = arith.constant dense<0.000000e+00> : vector<32xf32>
    %12 = vector.multi_reduction <add>, %9, %cst_11 [0] : vector<32x32xf32> to vector<32xf32>
    %13 = vector.shape_cast %12 : vector<32xf32> to vector<1x32xf32>
    %cst_12 = arith.constant 3.200000e+01 : f32
    %14 = vector.broadcast %cst_12 : f32 to vector<1x32xf32>
    %15 = arith.divf %13, %14 : vector<1x32xf32>
    %16 = vector.broadcast %15 : vector<1x32xf32> to vector<32x32xf32>
    %17 = arith.subf %9, %16 : vector<32x32xf32>
    %18 = arith.mulf %17, %17 : vector<32x32xf32>
    %cst_13 = arith.constant dense<0.000000e+00> : vector<32xf32>
    %19 = vector.multi_reduction <add>, %18, %cst_13 [0] : vector<32x32xf32> to vector<32xf32>
    %20 = vector.shape_cast %19 : vector<32xf32> to vector<1x32xf32>
    %cst_14 = arith.constant 3.200000e+01 : f32
    %21 = vector.broadcast %cst_14 : f32 to vector<1x32xf32>
    %22 = arith.divf %20, %21 : vector<1x32xf32>
    %23 = vector.broadcast %15 : vector<1x32xf32> to vector<32x32xf32>
    %24 = arith.subf %9, %23 : vector<32x32xf32>
    %cst_15 = arith.constant 9.99999974E-6 : f32
    %25 = vector.broadcast %cst_15 : f32 to vector<1x32xf32>
    %26 = arith.addf %22, %25 : vector<1x32xf32>
    %27 = math.rsqrt %26 : vector<1x32xf32>
    %28 = vector.broadcast %27 : vector<1x32xf32> to vector<32x32xf32>
    %29 = arith.mulf %24, %28 : vector<32x32xf32>
    %30 = vector.broadcast %10 : vector<1x32xf32> to vector<32x32xf32>
    %31 = arith.mulf %29, %30 : vector<32x32xf32>
    %32 = vector.broadcast %11 : vector<1x32xf32> to vector<32x32xf32>
    %33 = arith.addf %31, %32 : vector<32x32xf32>
    %c0_16 = arith.constant 0 : index
    %c0_17 = arith.constant 0 : index
    %34 = vector.load %arg7[%c0_16, %c0_17] : memref<32x64xf32, #tpu.memory_space<vmem>>, vector<32x64xf32>
    %35 = arith.truncf %33 : vector<32x32xf32> to vector<32x32xbf16>
    %36 = arith.truncf %34 : vector<32x64xf32> to vector<32x64xbf16>
    %cst_18 = arith.constant dense<0.000000e+00> : vector<32x64xf32>
    %37 = tpu.matmul %35, %36, %cst_18 {dimension_numbers = #tpu.dot_dimension_numbers<[1], [0], [0], [1], [0, 0, 1, 1], [], []>} : vector<32x32xbf16>, vector<32x64xbf16>, vector<32x64xf32> -> vector<32x64xf32>
    %c0_19 = arith.constant 0 : index
    %c0_20 = arith.constant 0 : index
    %38 = vector.load %arg8[%c0_19, %c0_20] : memref<1x64xf32, #tpu.memory_space<vmem>>, vector<1x64xf32>
    %39 = vector.broadcast %38 : vector<1x64xf32> to vector<32x64xf32>
    %40 = arith.addf %37, %39 : vector<32x64xf32>
    %cst_21 = arith.constant 0.000000e+00 : f32
    %41 = vector.broadcast %cst_21 : f32 to vector<32x64xf32>
    %42 = arith.maximumf %40, %41 : vector<32x64xf32>
    %c0_22 = arith.constant 0 : index
    %c0_23 = arith.constant 0 : index
    %43 = vector.load %arg9[%c0_22, %c0_23] : memref<64x32xf32, #tpu.memory_space<vmem>>, vector<64x32xf32>
    %44 = arith.truncf %42 : vector<32x64xf32> to vector<32x64xbf16>
    %45 = arith.truncf %43 : vector<64x32xf32> to vector<64x32xbf16>
    %cst_24 = arith.constant dense<0.000000e+00> : vector<32x32xf32>
    %46 = tpu.matmul %44, %45, %cst_24 {dimension_numbers = #tpu.dot_dimension_numbers<[1], [0], [0], [1], [0, 0, 1, 1], [], []>} : vector<32x64xbf16>, vector<64x32xbf16>, vector<32x32xf32> -> vector<32x32xf32>
    %c0_25 = arith.constant 0 : index
    %c0_26 = arith.constant 0 : index
    %47 = vector.load %arg10[%c0_25, %c0_26] : memref<1x32xf32, #tpu.memory_space<vmem>>, vector<1x32xf32>
    %48 = vector.broadcast %47 : vector<1x32xf32> to vector<32x32xf32>
    %49 = arith.addf %46, %48 : vector<32x32xf32>
    %50 = arith.addf %49, %33 : vector<32x32xf32>
    %c0_27 = arith.constant 0 : index
    %c0_28 = arith.constant 0 : index
    %51 = vector.load %arg11[%c0_27, %c0_28] : memref<1x32xf32, #tpu.memory_space<vmem>>, vector<1x32xf32>
    %c0_29 = arith.constant 0 : index
    %c0_30 = arith.constant 0 : index
    %52 = vector.load %arg12[%c0_29, %c0_30] : memref<1x32xf32, #tpu.memory_space<vmem>>, vector<1x32xf32>
    %cst_31 = arith.constant dense<0.000000e+00> : vector<32xf32>
    %53 = vector.multi_reduction <add>, %50, %cst_31 [0] : vector<32x32xf32> to vector<32xf32>
    %54 = vector.shape_cast %53 : vector<32xf32> to vector<1x32xf32>
    %cst_32 = arith.constant 3.200000e+01 : f32
    %55 = vector.broadcast %cst_32 : f32 to vector<1x32xf32>
    %56 = arith.divf %54, %55 : vector<1x32xf32>
    %57 = vector.broadcast %56 : vector<1x32xf32> to vector<32x32xf32>
    %58 = arith.subf %50, %57 : vector<32x32xf32>
    %59 = arith.mulf %58, %58 : vector<32x32xf32>
    %cst_33 = arith.constant dense<0.000000e+00> : vector<32xf32>
    %60 = vector.multi_reduction <add>, %59, %cst_33 [0] : vector<32x32xf32> to vector<32xf32>
    %61 = vector.shape_cast %60 : vector<32xf32> to vector<1x32xf32>
    %cst_34 = arith.constant 3.200000e+01 : f32
    %62 = vector.broadcast %cst_34 : f32 to vector<1x32xf32>
    %63 = arith.divf %61, %62 : vector<1x32xf32>
    %64 = vector.broadcast %56 : vector<1x32xf32> to vector<32x32xf32>
    %65 = arith.subf %50, %64 : vector<32x32xf32>
    %cst_35 = arith.constant 9.99999974E-6 : f32
    %66 = vector.broadcast %cst_35 : f32 to vector<1x32xf32>
    %67 = arith.addf %63, %66 : vector<1x32xf32>
    %68 = math.rsqrt %67 : vector<1x32xf32>
    %69 = vector.broadcast %68 : vector<1x32xf32> to vector<32x32xf32>
    %70 = arith.mulf %65, %69 : vector<32x32xf32>
    %71 = vector.broadcast %51 : vector<1x32xf32> to vector<32x32xf32>
    %72 = arith.mulf %70, %71 : vector<32x32xf32>
    %73 = vector.broadcast %52 : vector<1x32xf32> to vector<32x32xf32>
    %74 = arith.addf %72, %73 : vector<32x32xf32>
    %c0_36 = arith.constant 0 : index
    %c0_37 = arith.constant 0 : index
    %75 = vector.load %arg13[%c0_36, %c0_37] : memref<32x32xf32, #tpu.memory_space<vmem>>, vector<32x32xf32>
    tpu.vector_store %arg13[%c0_36, %c0_37], %74 {strides = array<i32>} : memref<32x32xf32, #tpu.memory_space<vmem>>, vector<32x32xf32>,
    return
  }
  func.func @transform_0(%arg0: i32) -> (i32, i32) {
    %c0_i32 = arith.constant 0 : i32
    %c0_i32_0 = arith.constant 0 : i32
    %c0_i32_1 = arith.constant 0 : i32
    return %c0_i32, %c0_i32_0 : i32, i32
  }
  func.func @transform_1(%arg0: i32) -> (i32, i32) {
    %c0_i32 = arith.constant 0 : i32
    %c0_i32_0 = arith.constant 0 : i32
    %c0_i32_1 = arith.constant 0 : i32
    return %c0_i32, %c0_i32_0 : i32, i32
  }
  func.func @transform_2(%arg0: i32) -> (i32, i32) {
    %c0_i32 = arith.constant 0 : i32
    %c0_i32_0 = arith.constant 0 : i32
    %c0_i32_1 = arith.constant 0 : i32
    return %c0_i32, %c0_i32_0 : i32, i32
  }
  func.func @transform_3(%arg0: i32) -> (i32, i32) {
    %c0_i32 = arith.constant 0 : i32
    %c0_i32_0 = arith.constant 0 : i32
    %c0_i32_1 = arith.constant 0 : i32
    return %c0_i32, %c0_i32_0 : i32, i32
  }
  func.func @transform_4(%arg0: i32) -> (i32, i32) {
    %c0_i32 = arith.constant 0 : i32
    %c0_i32_0 = arith.constant 0 : i32
    %c0_i32_1 = arith.constant 0 : i32
    return %c0_i32, %c0_i32_0 : i32, i32
  }
  func.func @transform_5(%arg0: i32) -> (i32, i32) {
    %c0_i32 = arith.constant 0 : i32
    %c0_i32_0 = arith.constant 0 : i32
    %c0_i32_1 = arith.constant 0 : i32
    return %c0_i32, %c0_i32_0 : i32, i32
  }
  func.func @transform_6(%arg0: i32) -> (i32, i32) {
    %c0_i32 = arith.constant 0 : i32
    %c0_i32_0 = arith.constant 0 : i32
    %c0_i32_1 = arith.constant 0 : i32
    return %c0_i32, %c0_i32_0 : i32, i32
  }
  func.func @transform_7(%arg0: i32) -> (i32, i32) {
    %c0_i32 = arith.constant 0 : i32
    %c0_i32_0 = arith.constant 0 : i32
    %c0_i32_1 = arith.constant 0 : i32
    return %c0_i32, %c0_i32_0 : i32, i32
  }
  func.func @transform_8(%arg0: i32) -> (i32, i32) {
    %c0_i32 = arith.constant 0 : i32
    %c0_i32_0 = arith.constant 0 : i32
    %c0_i32_1 = arith.constant 0 : i32
    return %c0_i32, %c0_i32_0 : i32, i32
  }
  func.func @transform_9(%arg0: i32) -> (i32, i32) {
    %c0_i32 = arith.constant 0 : i32
    %c0_i32_0 = arith.constant 0 : i32
    %c0_i32_1 = arith.constant 0 : i32
    return %c0_i32, %c0_i32_0 : i32, i32
  }
  func.func @transform_10(%arg0: i32) -> (i32, i32) {
    %c0_i32 = arith.constant 0 : i32
    %c0_i32_0 = arith.constant 0 : i32
    %c0_i32_1 = arith.constant 0 : i32
    return %c0_i32, %c0_i32_0 : i32, i32
  }
  func.func @transform_11(%arg0: i32) -> (i32, i32) {
    %c0_i32 = arith.constant 0 : i32
    %c0_i32_0 = arith.constant 0 : i32
    %c0_i32_1 = arith.constant 0 : i32
    return %c0_i32, %c0_i32_0 : i32, i32
  }
  func.func @transform_12(%arg0: i32) -> (i32, i32) {
    %c0_i32 = arith.constant 0 : i32
    %c0_i32_0 = arith.constant 0 : i32
    %c0_i32_1 = arith.constant 0 : i32
    return %c0_i32, %c0_i32_0 : i32, i32
  }
}

module attributes {stable_mosaic.version = 11 : i64} {
  func.func @_pool_ln_mlp_kernel(%arg0: i32, %arg1: memref<2x32x8xf32, #tpu.memory_space<vmem>>, %arg2: memref<1x32xf32, #tpu.memory_space<vmem>>, %arg3: memref<1x32xf32, #tpu.memory_space<vmem>>, %arg4: memref<32x16xf32, #tpu.memory_space<vmem>>, %arg5: memref<1x16xf32, #tpu.memory_space<vmem>>, %arg6: memref<16x8xf32, #tpu.memory_space<vmem>>, %arg7: memref<1x8xf32, #tpu.memory_space<vmem>>, %arg8: memref<8x32xf32, #tpu.memory_space<vmem>>, %arg9: memref<1x32xf32, #tpu.memory_space<vmem>>, %arg10: memref<2x32xf32, #tpu.memory_space<vmem>>) attributes {dimension_semantics = [#tpu.dimension_semantics<arbitrary>], iteration_bounds = array<i64: 1>, scalar_prefetch = 0 : i64, scratch_operands = 0 : i64, tpu.core_type = #tpu.core_type<tc>, window_params = [{pipeline_mode = #tpu.pipeline_mode<synchronous>, transform_indices = @transform_0, window_bounds = array<i64: 2, 32, 8>}, {pipeline_mode = #tpu.pipeline_mode<synchronous>, transform_indices = @transform_1, window_bounds = array<i64: 1, 32>}, {pipeline_mode = #tpu.pipeline_mode<synchronous>, transform_indices = @transform_2, window_bounds = array<i64: 1, 32>}, {pipeline_mode = #tpu.pipeline_mode<synchronous>, transform_indices = @transform_3, window_bounds = array<i64: 32, 16>}, {pipeline_mode = #tpu.pipeline_mode<synchronous>, transform_indices = @transform_4, window_bounds = array<i64: 1, 16>}, {pipeline_mode = #tpu.pipeline_mode<synchronous>, transform_indices = @transform_5, window_bounds = array<i64: 16, 8>}, {pipeline_mode = #tpu.pipeline_mode<synchronous>, transform_indices = @transform_6, window_bounds = array<i64: 1, 8>}, {pipeline_mode = #tpu.pipeline_mode<synchronous>, transform_indices = @transform_7, window_bounds = array<i64: 8, 32>}, {pipeline_mode = #tpu.pipeline_mode<synchronous>, transform_indices = @transform_8, window_bounds = array<i64: 1, 32>}, {pipeline_mode = #tpu.pipeline_mode<synchronous>, transform_indices = @transform_9, window_bounds = array<i64: 2, 32>}]} {
    %c0 = arith.constant 0 : index
    %c0_0 = arith.constant 0 : index
    %c0_1 = arith.constant 0 : index
    %0 = vector.load %arg1[%c0, %c0_0, %c0_1] : memref<2x32x8xf32, #tpu.memory_space<vmem>>, vector<2x32x8xf32>
    %cst = arith.constant dense<0.000000e+00> : vector<2x32xf32>
    %1 = vector.multi_reduction <add>, %0, %cst [2] : vector<2x32x8xf32> to vector<2x32xf32>
    %cst_2 = arith.constant 8.000000e+00 : f32
    %2 = vector.broadcast %cst_2 : f32 to vector<2x32xf32>
    %3 = arith.divf %1, %2 : vector<2x32xf32>
    %cst_3 = arith.constant dense<0.000000e+00> : vector<2xf32>
    %4 = vector.multi_reduction <add>, %3, %cst_3 [1] : vector<2x32xf32> to vector<2xf32>
    %5 = vector.shape_cast %4 : vector<2xf32> to vector<2x1xf32>
    %cst_4 = arith.constant 3.200000e+01 : f32
    %6 = vector.broadcast %cst_4 : f32 to vector<2x1xf32>
    %7 = arith.divf %5, %6 : vector<2x1xf32>
    %8 = vector.broadcast %7 : vector<2x1xf32> to vector<2x32xf32>
    %9 = arith.subf %3, %8 : vector<2x32xf32>
    %10 = arith.mulf %9, %9 : vector<2x32xf32>
    %cst_5 = arith.constant dense<0.000000e+00> : vector<2xf32>
    %11 = vector.multi_reduction <add>, %10, %cst_5 [1] : vector<2x32xf32> to vector<2xf32>
    %12 = vector.shape_cast %11 : vector<2xf32> to vector<2x1xf32>
    %cst_6 = arith.constant 3.200000e+01 : f32
    %13 = vector.broadcast %cst_6 : f32 to vector<2x1xf32>
    %14 = arith.divf %12, %13 : vector<2x1xf32>
    %15 = vector.broadcast %7 : vector<2x1xf32> to vector<2x32xf32>
    %16 = arith.subf %3, %15 : vector<2x32xf32>
    %cst_7 = arith.constant 9.99999974E-6 : f32
    %17 = vector.broadcast %cst_7 : f32 to vector<2x1xf32>
    %18 = arith.addf %14, %17 : vector<2x1xf32>
    %19 = math.rsqrt %18 : vector<2x1xf32>
    %20 = vector.broadcast %19 : vector<2x1xf32> to vector<2x32xf32>
    %21 = arith.mulf %16, %20 : vector<2x32xf32>
    %c0_8 = arith.constant 0 : index
    %c0_9 = arith.constant 0 : index
    %22 = vector.load %arg2[%c0_8, %c0_9] : memref<1x32xf32, #tpu.memory_space<vmem>>, vector<1x32xf32>
    %23 = vector.broadcast %22 : vector<1x32xf32> to vector<2x32xf32>
    %24 = arith.mulf %21, %23 : vector<2x32xf32>
    %c0_10 = arith.constant 0 : index
    %c0_11 = arith.constant 0 : index
    %25 = vector.load %arg3[%c0_10, %c0_11] : memref<1x32xf32, #tpu.memory_space<vmem>>, vector<1x32xf32>
    %26 = vector.broadcast %25 : vector<1x32xf32> to vector<2x32xf32>
    %27 = arith.addf %24, %26 : vector<2x32xf32>
    %c0_12 = arith.constant 0 : index
    %c0_13 = arith.constant 0 : index
    %28 = vector.load %arg4[%c0_12, %c0_13] : memref<32x16xf32, #tpu.memory_space<vmem>>, vector<32x16xf32>
    %cst_14 = arith.constant dense<0.000000e+00> : vector<2x16xf32>
    %29 = tpu.matmul %27, %28, %cst_14 {dimension_numbers = #tpu.dot_dimension_numbers<[1], [0], [0], [1], [0, 0, 1, 1], [], []>} : vector<2x32xf32>, vector<32x16xf32>, vector<2x16xf32> -> vector<2x16xf32>
    %c0_15 = arith.constant 0 : index
    %c0_16 = arith.constant 0 : index
    %30 = vector.load %arg5[%c0_15, %c0_16] : memref<1x16xf32, #tpu.memory_space<vmem>>, vector<1x16xf32>
    %31 = vector.broadcast %30 : vector<1x16xf32> to vector<2x16xf32>
    %32 = arith.addf %29, %31 : vector<2x16xf32>
    %cst_17 = arith.constant 0.000000e+00 : f32
    %33 = vector.broadcast %cst_17 : f32 to vector<2x16xf32>
    %34 = arith.maximumf %32, %33 : vector<2x16xf32>
    %c0_18 = arith.constant 0 : index
    %c0_19 = arith.constant 0 : index
    %35 = vector.load %arg6[%c0_18, %c0_19] : memref<16x8xf32, #tpu.memory_space<vmem>>, vector<16x8xf32>
    %cst_20 = arith.constant dense<0.000000e+00> : vector<2x8xf32>
    %36 = tpu.matmul %34, %35, %cst_20 {dimension_numbers = #tpu.dot_dimension_numbers<[1], [0], [0], [1], [0, 0, 1, 1], [], []>} : vector<2x16xf32>, vector<16x8xf32>, vector<2x8xf32> -> vector<2x8xf32>
    %c0_21 = arith.constant 0 : index
    %c0_22 = arith.constant 0 : index
    %37 = vector.load %arg7[%c0_21, %c0_22] : memref<1x8xf32, #tpu.memory_space<vmem>>, vector<1x8xf32>
    %38 = vector.broadcast %37 : vector<1x8xf32> to vector<2x8xf32>
    %39 = arith.addf %36, %38 : vector<2x8xf32>
    %cst_23 = arith.constant 0.000000e+00 : f32
    %40 = vector.broadcast %cst_23 : f32 to vector<2x8xf32>
    %41 = arith.maximumf %39, %40 : vector<2x8xf32>
    %c0_24 = arith.constant 0 : index
    %c0_25 = arith.constant 0 : index
    %42 = vector.load %arg8[%c0_24, %c0_25] : memref<8x32xf32, #tpu.memory_space<vmem>>, vector<8x32xf32>
    %cst_26 = arith.constant dense<0.000000e+00> : vector<2x32xf32>
    %43 = tpu.matmul %41, %42, %cst_26 {dimension_numbers = #tpu.dot_dimension_numbers<[1], [0], [0], [1], [0, 0, 1, 1], [], []>} : vector<2x8xf32>, vector<8x32xf32>, vector<2x32xf32> -> vector<2x32xf32>
    %c0_27 = arith.constant 0 : index
    %c0_28 = arith.constant 0 : index
    %44 = vector.load %arg9[%c0_27, %c0_28] : memref<1x32xf32, #tpu.memory_space<vmem>>, vector<1x32xf32>
    %45 = vector.broadcast %44 : vector<1x32xf32> to vector<2x32xf32>
    %46 = arith.addf %43, %45 : vector<2x32xf32>
    %c0_29 = arith.constant 0 : index
    %c0_30 = arith.constant 0 : index
    %47 = vector.load %arg10[%c0_29, %c0_30] : memref<2x32xf32, #tpu.memory_space<vmem>>, vector<2x32xf32>
    tpu.vector_store %arg10[%c0_29, %c0_30], %46 {strides = array<i32>} : memref<2x32xf32, #tpu.memory_space<vmem>>, vector<2x32xf32>,
    return
  }
  func.func @transform_0(%arg0: i32) -> (i32, i32, i32) {
    %c0_i32 = arith.constant 0 : i32
    %c0_i32_0 = arith.constant 0 : i32
    %c0_i32_1 = arith.constant 0 : i32
    %c0_i32_2 = arith.constant 0 : i32
    return %c0_i32, %c0_i32_0, %c0_i32_1 : i32, i32, i32
  }
  func.func @transform_1(%arg0: i32) -> (i32, i32) {
    %c0_i32 = arith.constant 0 : i32
    %c0_i32_0 = arith.constant 0 : i32
    %c0_i32_1 = arith.constant 0 : i32
    return %c0_i32, %c0_i32_0 : i32, i32
  }
  func.func @transform_2(%arg0: i32) -> (i32, i32) {
    %c0_i32 = arith.constant 0 : i32
    %c0_i32_0 = arith.constant 0 : i32
    %c0_i32_1 = arith.constant 0 : i32
    return %c0_i32, %c0_i32_0 : i32, i32
  }
  func.func @transform_3(%arg0: i32) -> (i32, i32) {
    %c0_i32 = arith.constant 0 : i32
    %c0_i32_0 = arith.constant 0 : i32
    %c0_i32_1 = arith.constant 0 : i32
    return %c0_i32, %c0_i32_0 : i32, i32
  }
  func.func @transform_4(%arg0: i32) -> (i32, i32) {
    %c0_i32 = arith.constant 0 : i32
    %c0_i32_0 = arith.constant 0 : i32
    %c0_i32_1 = arith.constant 0 : i32
    return %c0_i32, %c0_i32_0 : i32, i32
  }
  func.func @transform_5(%arg0: i32) -> (i32, i32) {
    %c0_i32 = arith.constant 0 : i32
    %c0_i32_0 = arith.constant 0 : i32
    %c0_i32_1 = arith.constant 0 : i32
    return %c0_i32, %c0_i32_0 : i32, i32
  }
  func.func @transform_6(%arg0: i32) -> (i32, i32) {
    %c0_i32 = arith.constant 0 : i32
    %c0_i32_0 = arith.constant 0 : i32
    %c0_i32_1 = arith.constant 0 : i32
    return %c0_i32, %c0_i32_0 : i32, i32
  }
  func.func @transform_7(%arg0: i32) -> (i32, i32) {
    %c0_i32 = arith.constant 0 : i32
    %c0_i32_0 = arith.constant 0 : i32
    %c0_i32_1 = arith.constant 0 : i32
    return %c0_i32, %c0_i32_0 : i32, i32
  }
  func.func @transform_8(%arg0: i32) -> (i32, i32) {
    %c0_i32 = arith.constant 0 : i32
    %c0_i32_0 = arith.constant 0 : i32
    %c0_i32_1 = arith.constant 0 : i32
    return %c0_i32, %c0_i32_0 : i32, i32
  }
  func.func @transform_9(%arg0: i32) -> (i32, i32) {
    %c0_i32 = arith.constant 0 : i32
    %c0_i32_0 = arith.constant 0 : i32
    %c0_i32_1 = arith.constant 0 : i32
    return %c0_i32, %c0_i32_0 : i32, i32
  }
}

</mosaic_0001>

<llo_original>
// kernel: squeeze.4
$region0: #{squeeze.4}
  %s0 = inlined_call_operand.vmem [shape: s32[2,16], index: 0, kind: input, shape index: {}]
  %s1 = inlined_call_operand.vmem [shape: s32[32], index: 1, kind: output, shape index: {}]
  $region1: #{squeeze.4} parent=0
    #allocation0 [shape = 'u8[4096]{0}', space=vmem, size = 0x1000, scoped, tag = 'scoped mem for output reshape']
    #allocation1 [shape = 'u8[4096]{0}', space=vmem, size = 0x1000, scoped, tag = 'scoped mem for input reshape']
    %s3 = sshll.u32 1, 2
    %s4 = ssub.s32 %s3, 1
    %v5 = vld [vmem:[%s0] sm:%s4]
    %6 = vst [vmem:[#allocation1] sm:%s4] %v5
    %v7 = vld [vmem:[#allocation1] sm:$0x1]
    %vm8 = vcmask 130048
    %9 = vst.msk [vmem:[#allocation0] sm:$0x1] %vm8, %v7
    %s10 = scalar_lea.vmem [#allocation1], 1
    %v11 = vld [vmem:[%s10] sm:$0x1]
    %12 = vrot.lane.b32.xlu0 %v11, 16
    %v13 = vpop.permute.xlu0 %12
    %vm14 = vcmask 261248
    %15 = vst.msk [vmem:[#allocation0] sm:$0x1] %vm14, %v13
    %s17 = sshll.u32 1, 1
    %s18 = ssub.s32 %s17, 1
    %v20 = vld [vmem:[#allocation0] sm:%s18]
    %s21 = sshll.u32 1, 1
    %s22 = ssub.s32 %s21, 1
    %23 = vst [vmem:[%s1] sm:%s22] %v20

// kernel: encoder_forward.14
$region0: #{encoder_forward.14}
  #allocation0 [shape = 'u32[]', space=smem, size = 0x4, offset = 0x4, fixed_abs, tag = 'smem constant byte address 0x4 - core index']
  #allocation1 [shape = 'u32[144,128]{1,0:T(1,128)}', space=vmem, size = 0x12000, scoped, tag = 'internal scratch']
  %s0 = inlined_call_operand.vmem [shape: f32[16,32], index: 0, kind: input, shape index: {}]
  %s1 = inlined_call_operand.vmem [shape: f32[32,96], index: 1, kind: input, shape index: {}]
  %s2 = inlined_call_operand.vmem [shape: f32[16,96], index: 2, kind: output, shape index: {}]
  %s3 = sld [smem:[#allocation0]]
  $region18: #{encoder_forward.14} parent=0
    _
  %s5 = ssub.s32 1, %s3
  %s6 = scalar_select 0, %s5, %s3
  // Predicated region
  $region2: #{encoder_forward.14} parent=0 // pred_check
    _
  $region3: #{encoder_forward.14} parent=0 // pred_check_branch
    %8 = sbr.rel (0) target = $region5
  $region4: #{encoder_forward.14} parent=0 // pred_region
    _
  $region5: #{encoder_forward.14} parent=0 // pred_fallthru
    _
  // Predicated region
  $region6: #{encoder_forward.14} parent=0 // pred_check
    _
  $region7: #{encoder_forward.14} parent=0 // pred_check_branch
    %10 = sbr.rel (0) target = $region9
  $region8: #{encoder_forward.14} parent=0 // pred_region
    _
  $region9: #{encoder_forward.14} parent=0 // pred_fallthru
    _
  %v12 = vld [vmem:[%s0] sm:$0xff]
  %v13 = vld [vmem:[%s0 + $0x8] sm:$0xff]
  %v14 = vld [vmem:[%s1] sm:$0xff]
  %v15 = vld [vmem:[%s1 + $0x8] sm:$0xff]
  %v16 = vld [vmem:[%s1 + $0x10] sm:$0xff]
  %v17 = vld [vmem:[%s1 + $0x18] sm:$0xff]
  %v18 = vpack.c.bf16 %v13, %v12
  %v19 = vpack.c.bf16 %v15, %v14
  %v20 = vpack.c.bf16 %v17, %v16
  %vm21 = vcmask 261120
  %v23 = vsel %vm21, %v18, 0
  %25 = vmatprep.subr.bf16.mxu0 0
  %26 = vmatpush1.bf16.msra.mxu0 0
  %27 = vmatprep.subr.bf16.mxu0 0
  %28 = vmatpush1.bf16.msra.mxu0 0
  %29 = vmatprep.subr.bf16.mxu0 0
  %30 = vmatpush1.bf16.msra.mxu0 0
  %31 = vmatprep.subr.bf16.mxu0 0
  %32 = vmatpush1.bf16.msra.mxu0 0
  %33 = vmatprep.subr.bf16.mxu0 0
  %34 = vmatpush1.bf16.msra.mxu0 0
  %35 = vmatprep.subr.bf16.mxu0 0
  %36 = vmatpush1.bf16.msra.mxu0 0
  %37 = vmatprep.subr.bf16.mxu0 0
  %38 = vmatpush1.bf16.msra.mxu0 %v20
  %39 = vmatprep.subr.bf16.mxu0 0
  %40 = vmatpush1.bf16.msra.mxu0 %v19
  %41 = vmatprep.subr.bf16.mxu0 0
  %42 = vmatpush2.bf16.msra.mxu0 0
  %43 = vmatprep.subr.bf16.mxu0 0
  %44 = vmatpush2.bf16.msra.mxu0 0
  %45 = vmatprep.subr.bf16.mxu0 0
  %46 = vmatpush2.bf16.msra.mxu0 0
  %47 = vmatprep.subr.bf16.mxu0 0
  %48 = vmatpush2.bf16.msra.mxu0 0
  %49 = vmatprep.subr.bf16.mxu0 0
  %50 = vmatpush2.bf16.msra.mxu0 0
  %51 = vmatprep.subr.bf16.mxu0 0
  %52 = vmatpush2.bf16.msra.mxu0 0
  %53 = vmatprep.subr.bf16.mxu0 0
  %54 = vmatpush2.bf16.msra.mxu0 0
  %55 = vmatprep.subr.bf16.mxu0 0
  %56 = vmatpush2.bf16.msra.mxu0 0
  %57 = vmatprep.mubr.bf16.mxu0 0
  %58 = vmatmul.mubr.bf16.gmra.mxu0 %v23
  %v59 = vpop.f32.mrf.mxu0
  %v60 = vadd.f32 0.0, %v59
  %v61 = vpop.f32.mrf.mxu0
  %v62 = vpop.f32.mrf.mxu0
  %v63 = vadd.f32 0.0, %v62
  %v64 = vpop.f32.mrf.mxu0
  %65 = vdwg.mxu0
  %vm66 = vcmask 785408
  %67 = vst.msk [vmem:[%s2] sm:$0xff] %vm66, %v60
  %68 = vst.msk [vmem:[%s2 + $0x8] sm:$0xff] %vm66, %v63
  // Predicated region
  $region10: #{encoder_forward.14} parent=0 // pred_check
    _
  $region11: #{encoder_forward.14} parent=0 // pred_check_branch
    %70 = sbr.rel (0) target = $region13
  $region12: #{encoder_forward.14} parent=0 // pred_region
    _
  $region13: #{encoder_forward.14} parent=0 // pred_fallthru
    _
  // Predicated region
  $region14: #{encoder_forward.14} parent=0 // pred_check
    _
  $region15: #{encoder_forward.14} parent=0 // pred_check_branch
    %72 = sbr.rel (0) target = $region17
  $region16: #{encoder_forward.14} parent=0 // pred_region
    _
  $region17: #{encoder_forward.14} parent=0 // pred_fallthru
    _

// kernel: encoder_forward.12
$region0: #{encoder_forward.12}
  #allocation0 [shape = 'u32[]', space=smem, size = 0x4, offset = 0x4, fixed_abs, tag = 'smem constant byte address 0x4 - core index']
  #allocation1 [shape = 'u32[144,128]{1,0:T(1,128)}', space=vmem, size = 0x12000, scoped, tag = 'internal scratch']
  %s0 = inlined_call_operand.vmem [shape: f32[16,6], index: 0, kind: input, shape index: {}]
  %s1 = inlined_call_operand.vmem [shape: f32[6,32], index: 1, kind: input, shape index: {}]
  %s2 = inlined_call_operand.vmem [shape: f32[1,32], index: 2, kind: input, shape index: {}]
  %s3 = inlined_call_operand.vmem [shape: f32[16,10], index: 3, kind: input, shape index: {}]
  %s4 = inlined_call_operand.vmem [shape: f32[10,32], index: 4, kind: input, shape index: {}]
  %s5 = inlined_call_operand.vmem [shape: f32[1,32], index: 5, kind: input, shape index: {}]
  %s6 = inlined_call_operand.vmem [shape: f32[16,32], index: 6, kind: output, shape index: {}]
  %s7 = sld [smem:[#allocation0]]
  $region34: #{encoder_forward.12} parent=0
    _
  %s9 = ssub.s32 1, %s7
  %s10 = scalar_select 0, %s9, %s7
  // Predicated region
  $region2: #{encoder_forward.12} parent=0 // pred_check
    _
  $region3: #{encoder_forward.12} parent=0 // pred_check_branch
    %12 = sbr.rel (0) target = $region5
  $region4: #{encoder_forward.12} parent=0 // pred_region
    _
  $region5: #{encoder_forward.12} parent=0 // pred_fallthru
    _
  // Predicated region
  $region6: #{encoder_forward.12} parent=0 // pred_check
    _
  $region7: #{encoder_forward.12} parent=0 // pred_check_branch
    %14 = sbr.rel (0) target = $region9
  $region8: #{encoder_forward.12} parent=0 // pred_region
    _
  $region9: #{encoder_forward.12} parent=0 // pred_fallthru
    _
  // Predicated region
  $region10: #{encoder_forward.12} parent=0 // pred_check
    _
  $region11: #{encoder_forward.12} parent=0 // pred_check_branch
    %16 = sbr.rel (0) target = $region13
  $region12: #{encoder_forward.12} parent=0 // pred_region
    _
  $region13: #{encoder_forward.12} parent=0 // pred_fallthru
    _
  // Predicated region
  $region14: #{encoder_forward.12} parent=0 // pred_check
    _
  $region15: #{encoder_forward.12} parent=0 // pred_check_branch
    %18 = sbr.rel (0) target = $region17
  $region16: #{encoder_forward.12} parent=0 // pred_region
    _
  $region17: #{encoder_forward.12} parent=0 // pred_fallthru
    _
  // Predicated region
  $region18: #{encoder_forward.12} parent=0 // pred_check
    _
  $region19: #{encoder_forward.12} parent=0 // pred_check_branch
    %20 = sbr.rel (0) target = $region21
  $region20: #{encoder_forward.12} parent=0 // pred_region
    _
  $region21: #{encoder_forward.12} parent=0 // pred_fallthru
    _
  // Predicated region
  $region22: #{encoder_forward.12} parent=0 // pred_check
    _
  $region23: #{encoder_forward.12} parent=0 // pred_check_branch
    %22 = sbr.rel (0) target = $region25
  $region24: #{encoder_forward.12} parent=0 // pred_region
    _
  $region25: #{encoder_forward.12} parent=0 // pred_fallthru
    _
  %v24 = vld [vmem:[%s0] sm:$0xff]
  %v25 = vld [vmem:[%s0 + $0x8] sm:$0xff]
  %v26 = vld [vmem:[%s1] sm:$0x3f]
  %v27 = vpack.c.bf16 %v25, %v24
  %v28 = vpack.c.bf16 %v26, %v26
  %v29 = vld [vmem:[%s2] sm:$0x1]
  %v31 = vlaneseq
  %v32 = vshrl.u32 %v31, 7
  %v33 = vsub.s32 0, %v32
  %v34 = vrot.slane %v29, %v33
  %vm36 = vcmask 48128
  %v38 = vsel %vm36, %v27, 0
  %vm40 = vcmask 1042432
  %v42 = vsel %vm40, %v28, 0
  %44 = vmatprep.subr.bf16.mxu0 0
  %45 = vmatpush1.bf16.msra.mxu0 0
  %46 = vmatprep.subr.bf16.mxu0 0
  %47 = vmatpush1.bf16.msra.mxu0 0
  %48 = vmatprep.subr.bf16.mxu0 0
  %49 = vmatpush1.bf16.msra.mxu0 0
  %50 = vmatprep.subr.bf16.mxu0 0
  %51 = vmatpush1.bf16.msra.mxu0 0
  %52 = vmatprep.subr.bf16.mxu0 0
  %53 = vmatpush1.bf16.msra.mxu0 0
  %54 = vmatprep.subr.bf16.mxu0 0
  %55 = vmatpush1.bf16.msra.mxu0 0
  %56 = vmatprep.subr.bf16.mxu0 0
  %57 = vmatpush1.bf16.msra.mxu0 0
  %58 = vmatprep.subr.bf16.mxu0 0
  %59 = vmatpush1.bf16.msra.mxu0 %v42
  %60 = vmatprep.subr.bf16.mxu0 0
  %61 = vmatpush2.bf16.msra.mxu0 0
  %62 = vmatprep.subr.bf16.mxu0 0
  %63 = vmatpush2.bf16.msra.mxu0 0
  %64 = vmatprep.subr.bf16.mxu0 0
  %65 = vmatpush2.bf16.msra.mxu0 0
  %66 = vmatprep.subr.bf16.mxu0 0
  %67 = vmatpush2.bf16.msra.mxu0 0
  %68 = vmatprep.subr.bf16.mxu0 0
  %69 = vmatpush2.bf16.msra.mxu0 0
  %70 = vmatprep.subr.bf16.mxu0 0
  %71 = vmatpush2.bf16.msra.mxu0 0
  %72 = vmatprep.subr.bf16.mxu0 0
  %73 = vmatpush2.bf16.msra.mxu0 0
  %74 = vmatprep.subr.bf16.mxu0 0
  %75 = vmatpush2.bf16.msra.mxu0 0
  %76 = vmatprep.mubr.bf16.mxu0 0
  %77 = vmatmul.mubr.bf16.gmra.mxu0 %v38
  %v78 = vpop.f32.mrf.mxu0
  %v79 = vadd.f32 %v34, %v78
  %v80 = vpop.f32.mrf.mxu0
  %v81 = vpop.f32.mrf.mxu0
  %v82 = vadd.f32 %v34, %v81
  %v83 = vpop.f32.mrf.mxu0
  %84 = vdwg.mxu0
  %v85 = vld [vmem:[%s3] sm:$0xff]
  %v86 = vld [vmem:[%s3 + $0x8] sm:$0xff]
  %v87 = vld [vmem:[%s4] sm:$0xff]
  %v88 = vld [vmem:[%s4 + $0x8] sm:$0x3]
  %v89 = vpack.c.bf16 %v86, %v85
  %v90 = vpack.c.bf16 %v88, %v87
  %vm91 = vcmask 80896
  %v93 = vsel %vm91, %v89, 0
  %vm95 = vcmask 1044480
  %v97 = vsel %vm95, %v90, 0
  %99 = vmatprep.subr.bf16.mxu0 0
  %100 = vmatpush1.bf16.msra.mxu0 0
  %101 = vmatprep.subr.bf16.mxu0 0
  %102 = vmatpush1.bf16.msra.mxu0 0
  %103 = vmatprep.subr.bf16.mxu0 0
  %104 = vmatpush1.bf16.msra.mxu0 0
  %105 = vmatprep.subr.bf16.mxu0 0
  %106 = vmatpush1.bf16.msra.mxu0 0
  %107 = vmatprep.subr.bf16.mxu0 0
  %108 = vmatpush1.bf16.msra.mxu0 0
  %109 = vmatprep.subr.bf16.mxu0 0
  %110 = vmatpush1.bf16.msra.mxu0 0
  %111 = vmatprep.subr.bf16.mxu0 0
  %112 = vmatpush1.bf16.msra.mxu0 0
  %113 = vmatprep.subr.bf16.mxu0 0
  %114 = vmatpush1.bf16.msra.mxu0 %v97
  %115 = vmatprep.subr.bf16.mxu0 0
  %116 = vmatpush2.bf16.msra.mxu0 0
  %117 = vmatprep.subr.bf16.mxu0 0
  %118 = vmatpush2.bf16.msra.mxu0 0
  %119 = vmatprep.subr.bf16.mxu0 0
  %120 = vmatpush2.bf16.msra.mxu0 0
  %121 = vmatprep.subr.bf16.mxu0 0
  %122 = vmatpush2.bf16.msra.mxu0 0
  %123 = vmatprep.subr.bf16.mxu0 0
  %124 = vmatpush2.bf16.msra.mxu0 0
  %125 = vmatprep.subr.bf16.mxu0 0
  %126 = vmatpush2.bf16.msra.mxu0 0
  %127 = vmatprep.subr.bf16.mxu0 0
  %128 = vmatpush2.bf16.msra.mxu0 0
  %129 = vmatprep.subr.bf16.mxu0 0
  %130 = vmatpush2.bf16.msra.mxu0 0
  %131 = vmatprep.mubr.bf16.mxu0 0
  %132 = vmatmul.mubr.bf16.gmra.mxu0 %v93
  %v133 = vpop.f32.mrf.mxu0
  %v134 = vadd.f32 0.0, %v133
  %v135 = vpop.f32.mrf.mxu0
  %v136 = vpop.f32.mrf.mxu0
  %v137 = vadd.f32 0.0, %v136
  %v138 = vpop.f32.mrf.mxu0
  %139 = vdwg.mxu0
  %v140 = vadd.f32 %v79, %v134
  %v141 = vadd.f32 %v82, %v137
  %v142 = vld [vmem:[%s5] sm:$0x1]
  %v144 = vlaneseq
  %v145 = vshrl.u32 %v144, 7
  %v146 = vsub.s32 0, %v145
  %v147 = vrot.slane %v142, %v146
  %v149 = vadd.f32 %v140, %v147
  %v150 = vadd.f32 %v141, %v147
  %vm151 = vcmask 261120
  %152 = vst.msk [vmem:[%s6] sm:$0xff] %vm151, %v149
  %153 = vst.msk [vmem:[%s6 + $0x8] sm:$0xff] %vm151, %v150
  // Predicated region
  $region26: #{encoder_forward.12} parent=0 // pred_check
    _
  $region27: #{encoder_forward.12} parent=0 // pred_check_branch
    %155 = sbr.rel (0) target = $region29
  $region28: #{encoder_forward.12} parent=0 // pred_region
    _
  $region29: #{encoder_forward.12} parent=0 // pred_fallthru
    _
  // Predicated region
  $region30: #{encoder_forward.12} parent=0 // pred_check
    _
  $region31: #{encoder_forward.12} parent=0 // pred_check_branch
    %157 = sbr.rel (0) target = $region33
  $region32: #{encoder_forward.12} parent=0 // pred_region
    _
  $region33: #{encoder_forward.12} parent=0 // pred_fallthru
    _

// kernel: tile.7
$region0: #{tile.7}
  %s0 = inlined_call_operand.vmem [shape: s32[2,2,16], index: 0, kind: input, shape index: {}]
  %s1 = inlined_call_operand.vmem [shape: s32[2,32], index: 1, kind: output, shape index: {}]
  $region1: #{tile.7} parent=0
    #allocation0 [shape = 'u8[4096]{0}', space=vmem, size = 0x1000, scoped, tag = 'scoped mem for output reshape']
    #allocation1 [shape = 'u8[8192]{0}', space=vmem, size = 0x2000, scoped, tag = 'scoped mem for input reshape']
    %s3 = sshll.u32 1, 2
    %s4 = ssub.s32 %s3, 1
    %s5 = scalar_lea.vmem %s0, 2
    %v6 = vld [vmem:[%s5] sm:%s4]
    %s7 = scalar_lea.vmem [#allocation1], 8
    %8 = vst [vmem:[%s7] sm:%s4] %v6
    %v9 = vld [vmem:[%s0] sm:%s4]
    %10 = vst [vmem:[#allocation1] sm:%s4] %v9
    %s11 = smov 3
    %v12 = vld [vmem:[#allocation1] ss:$8 sm:%s11]
    %vm13 = vcmask 130048
    %14 = vst.msk [vmem:[#allocation0] sm:$0x3] %vm13, %v12
    %s15 = scalar_lea.vmem [#allocation1], 1
    %s16 = smov 3
    %v17 = vld [vmem:[%s15] ss:$8 sm:%s16]
    %18 = vrot.lane.b32.xlu0 %v17, 16
    %v19 = vpop.permute.xlu0 %18
    %vm20 = vcmask 261248
    %21 = vst.msk [vmem:[#allocation0] sm:$0x3] %vm20, %v19
    %s23 = sshll.u32 1, 2
    %s24 = ssub.s32 %s23, 1
    %v26 = vld [vmem:[#allocation0] sm:%s24]
    %s27 = sshll.u32 1, 2
    %s28 = ssub.s32 %s27, 1
    %29 = vst [vmem:[%s1] sm:%s28] %v26

// kernel: encoder_forward.15
$region0: #{encoder_forward.15}
  #allocation0 [shape = 'u32[]', space=smem, size = 0x4, offset = 0x4, fixed_abs, tag = 'smem constant byte address 0x4 - core index']
  #allocation1 [shape = 'u32[144,128]{1,0:T(1,128)}', space=vmem, size = 0x12000, scoped, tag = 'internal scratch']
  %s0 = inlined_call_operand.vmem [shape: f32[32,32], index: 0, kind: input, shape index: {}]
  %s1 = inlined_call_operand.vmem [shape: f32[32,32], index: 1, kind: input, shape index: {}]
  %s2 = inlined_call_operand.vmem [shape: f32[32,32], index: 2, kind: output, shape index: {}]
  %s3 = sld [smem:[#allocation0]]
  $region18: #{encoder_forward.15} parent=0
    _
  %s5 = ssub.s32 1, %s3
  %s6 = scalar_select 0, %s5, %s3
  // Predicated region
  $region2: #{encoder_forward.15} parent=0 // pred_check
    _
  $region3: #{encoder_forward.15} parent=0 // pred_check_branch
    %8 = sbr.rel (0) target = $region5
  $region4: #{encoder_forward.15} parent=0 // pred_region
    _
  $region5: #{encoder_forward.15} parent=0 // pred_fallthru
    _
  // Predicated region
  $region6: #{encoder_forward.15} parent=0 // pred_check
    _
  $region7: #{encoder_forward.15} parent=0 // pred_check_branch
    %10 = sbr.rel (0) target = $region9
  $region8: #{encoder_forward.15} parent=0 // pred_region
    _
  $region9: #{encoder_forward.15} parent=0 // pred_fallthru
    _
  %v12 = vld [vmem:[%s0] sm:$0xff]
  %v13 = vld [vmem:[%s0 + $0x8] sm:$0xff]
  %v14 = vld [vmem:[%s0 + $0x10] sm:$0xff]
  %v15 = vld [vmem:[%s0 + $0x18] sm:$0xff]
  %v16 = vld [vmem:[%s1] sm:$0xff]
  %v17 = vld [vmem:[%s1 + $0x8] sm:$0xff]
  %v18 = vld [vmem:[%s1 + $0x10] sm:$0xff]
  %v19 = vld [vmem:[%s1 + $0x18] sm:$0xff]
  %v20 = vpack.c.bf16 %v13, %v12
  %v21 = vpack.c.bf16 %v15, %v14
  %v22 = vpack.c.bf16 %v17, %v16
  %v23 = vpack.c.bf16 %v19, %v18
  %vm24 = vcmask 261120
  %v26 = vsel %vm24, %v20, 0
  %v29 = vsel %vm24, %v21, 0
  %31 = vmatprep.subr.bf16.mxu0 0
  %32 = vmatpush1.bf16.msra.mxu0 0
  %33 = vmatprep.subr.bf16.mxu0 0
  %34 = vmatpush1.bf16.msra.mxu0 0
  %35 = vmatprep.subr.bf16.mxu0 0
  %36 = vmatpush1.bf16.msra.mxu0 0
  %37 = vmatprep.subr.bf16.mxu0 0
  %38 = vmatpush1.bf16.msra.mxu0 0
  %39 = vmatprep.subr.bf16.mxu0 0
  %40 = vmatpush1.bf16.msra.mxu0 0
  %41 = vmatprep.subr.bf16.mxu0 0
  %42 = vmatpush1.bf16.msra.mxu0 0
  %43 = vmatprep.subr.bf16.mxu0 0
  %44 = vmatpush1.bf16.msra.mxu0 %v23
  %45 = vmatprep.subr.bf16.mxu0 0
  %46 = vmatpush1.bf16.msra.mxu0 %v22
  %47 = vmatprep.subr.bf16.mxu0 0
  %48 = vmatpush2.bf16.msra.mxu0 0
  %49 = vmatprep.subr.bf16.mxu0 0
  %50 = vmatpush2.bf16.msra.mxu0 0
  %51 = vmatprep.subr.bf16.mxu0 0
  %52 = vmatpush2.bf16.msra.mxu0 0
  %53 = vmatprep.subr.bf16.mxu0 0
  %54 = vmatpush2.bf16.msra.mxu0 0
  %55 = vmatprep.subr.bf16.mxu0 0
  %56 = vmatpush2.bf16.msra.mxu0 0
  %57 = vmatprep.subr.bf16.mxu0 0
  %58 = vmatpush2.bf16.msra.mxu0 0
  %59 = vmatprep.subr.bf16.mxu0 0
  %60 = vmatpush2.bf16.msra.mxu0 0
  %61 = vmatprep.subr.bf16.mxu0 0
  %62 = vmatpush2.bf16.msra.mxu0 0
  %63 = vmatprep.mubr.bf16.mxu0 0
  %64 = vmatmul.mubr.bf16.gmra.mxu0 %v26
  %v65 = vpop.f32.mrf.mxu0
  %v66 = vadd.f32 0.0, %v65
  %v67 = vpop.f32.mrf.mxu0
  %v68 = vpop.f32.mrf.mxu0
  %v69 = vadd.f32 0.0, %v68
  %v70 = vpop.f32.mrf.mxu0
  %71 = vmatprep.mubr.bf16.mxu0 0
  %72 = vmatmul.mubr.bf16.gmra.mxu0 %v29
  %v73 = vpop.f32.mrf.mxu0
  %v74 = vadd.f32 0.0, %v73
  %v75 = vpop.f32.mrf.mxu0
  %v76 = vpop.f32.mrf.mxu0
  %v77 = vadd.f32 0.0, %v76
  %v78 = vpop.f32.mrf.mxu0
  %79 = vdwg.mxu0
  %80 = vst.msk [vmem:[%s2] sm:$0xff] %vm24, %v66
  %81 = vst.msk [vmem:[%s2 + $0x8] sm:$0xff] %vm24, %v69
  %82 = vst.msk [vmem:[%s2 + $0x10] sm:$0xff] %vm24, %v74
  %83 = vst.msk [vmem:[%s2 + $0x18] sm:$0xff] %vm24, %v77
  // Predicated region
  $region10: #{encoder_forward.15} parent=0 // pred_check
    _
  $region11: #{encoder_forward.15} parent=0 // pred_check_branch
    %85 = sbr.rel (0) target = $region13
  $region12: #{encoder_forward.15} parent=0 // pred_region
    _
  $region13: #{encoder_forward.15} parent=0 // pred_fallthru
    _
  // Predicated region
  $region14: #{encoder_forward.15} parent=0 // pred_check
    _
  $region15: #{encoder_forward.15} parent=0 // pred_check_branch
    %87 = sbr.rel (0) target = $region17
  $region16: #{encoder_forward.15} parent=0 // pred_region
    _
  $region17: #{encoder_forward.15} parent=0 // pred_fallthru
    _

// kernel: encoder_forward.13
$region0: #{encoder_forward.13}
  #allocation0 [shape = 'u32[]', space=smem, size = 0x4, offset = 0x4, fixed_abs, tag = 'smem constant byte address 0x4 - core index']
  #allocation1 [shape = 'u32[144,128]{1,0:T(1,128)}', space=vmem, size = 0x12000, scoped, tag = 'internal scratch']
  %s0 = inlined_call_operand.vmem [shape: f32[32,4], index: 0, kind: input, shape index: {}]
  %s1 = inlined_call_operand.vmem [shape: f32[4,32], index: 1, kind: input, shape index: {}]
  %s2 = inlined_call_operand.vmem [shape: f32[1,32], index: 2, kind: input, shape index: {}]
  %s3 = inlined_call_operand.vmem [shape: f32[32,32], index: 3, kind: output, shape index: {}]
  %s4 = sld [smem:[#allocation0]]
  $region22: #{encoder_forward.13} parent=0
    _
  %s6 = ssub.s32 1, %s4
  %s7 = scalar_select 0, %s6, %s4
  // Predicated region
  $region2: #{encoder_forward.13} parent=0 // pred_check
    _
  $region3: #{encoder_forward.13} parent=0 // pred_check_branch
    %9 = sbr.rel (0) target = $region5
  $region4: #{encoder_forward.13} parent=0 // pred_region
    _
  $region5: #{encoder_forward.13} parent=0 // pred_fallthru
    _
  // Predicated region
  $region6: #{encoder_forward.13} parent=0 // pred_check
    _
  $region7: #{encoder_forward.13} parent=0 // pred_check_branch
    %11 = sbr.rel (0) target = $region9
  $region8: #{encoder_forward.13} parent=0 // pred_region
    _
  $region9: #{encoder_forward.13} parent=0 // pred_fallthru
    _
  // Predicated region
  $region10: #{encoder_forward.13} parent=0 // pred_check
    _
  $region11: #{encoder_forward.13} parent=0 // pred_check_branch
    %13 = sbr.rel (0) target = $region13
  $region12: #{encoder_forward.13} parent=0 // pred_region
    _
  $region13: #{encoder_forward.13} parent=0 // pred_fallthru
    _
  %v15 = vld [vmem:[%s0] sm:$0xff]
  %v16 = vld [vmem:[%s0 + $0x8] sm:$0xff]
  %v17 = vld [vmem:[%s0 + $0x10] sm:$0xff]
  %v18 = vld [vmem:[%s0 + $0x18] sm:$0xff]
  %v19 = vld [vmem:[%s1] sm:$0xf]
  %v20 = vpack.c.bf16 %v16, %v15
  %v21 = vpack.c.bf16 %v18, %v17
  %v22 = vpack.c.bf16 %v19, %v19
  %v23 = vld [vmem:[%s2] sm:$0x1]
  %v25 = vlaneseq
  %v26 = vshrl.u32 %v25, 7
  %v27 = vsub.s32 0, %v26
  %v28 = vrot.slane %v23, %v27
  %vm30 = vcmask 31744
  %v32 = vsel %vm30, %v20, 0
  %v35 = vsel %vm30, %v21, 0
  %vm37 = vcmask 1041408
  %v39 = vsel %vm37, %v22, 0
  %41 = vmatprep.subr.bf16.mxu0 0
  %42 = vmatpush1.bf16.msra.mxu0 0
  %43 = vmatprep.subr.bf16.mxu0 0
  %44 = vmatpush1.bf16.msra.mxu0 0
  %45 = vmatprep.subr.bf16.mxu0 0
  %46 = vmatpush1.bf16.msra.mxu0 0
  %47 = vmatprep.subr.bf16.mxu0 0
  %48 = vmatpush1.bf16.msra.mxu0 0
  %49 = vmatprep.subr.bf16.mxu0 0
  %50 = vmatpush1.bf16.msra.mxu0 0
  %51 = vmatprep.subr.bf16.mxu0 0
  %52 = vmatpush1.bf16.msra.mxu0 0
  %53 = vmatprep.subr.bf16.mxu0 0
  %54 = vmatpush1.bf16.msra.mxu0 0
  %55 = vmatprep.subr.bf16.mxu0 0
  %56 = vmatpush1.bf16.msra.mxu0 %v39
  %57 = vmatprep.subr.bf16.mxu0 0
  %58 = vmatpush2.bf16.msra.mxu0 0
  %59 = vmatprep.subr.bf16.mxu0 0
  %60 = vmatpush2.bf16.msra.mxu0 0
  %61 = vmatprep.subr.bf16.mxu0 0
  %62 = vmatpush2.bf16.msra.mxu0 0
  %63 = vmatprep.subr.bf16.mxu0 0
  %64 = vmatpush2.bf16.msra.mxu0 0
  %65 = vmatprep.subr.bf16.mxu0 0
  %66 = vmatpush2.bf16.msra.mxu0 0
  %67 = vmatprep.subr.bf16.mxu0 0
  %68 = vmatpush2.bf16.msra.mxu0 0
  %69 = vmatprep.subr.bf16.mxu0 0
  %70 = vmatpush2.bf16.msra.mxu0 0
  %71 = vmatprep.subr.bf16.mxu0 0
  %72 = vmatpush2.bf16.msra.mxu0 0
  %73 = vmatprep.mubr.bf16.mxu0 0
  %74 = vmatmul.mubr.bf16.gmra.mxu0 %v32
  %v75 = vpop.f32.mrf.mxu0
  %v76 = vadd.f32 %v28, %v75
  %v77 = vpop.f32.mrf.mxu0
  %v78 = vpop.f32.mrf.mxu0
  %v79 = vadd.f32 %v28, %v78
  %v80 = vpop.f32.mrf.mxu0
  %81 = vmatprep.mubr.bf16.mxu0 0
  %82 = vmatmul.mubr.bf16.gmra.mxu0 %v35
  %v83 = vpop.f32.mrf.mxu0
  %v84 = vadd.f32 %v28, %v83
  %v85 = vpop.f32.mrf.mxu0
  %v86 = vpop.f32.mrf.mxu0
  %v87 = vadd.f32 %v28, %v86
  %v88 = vpop.f32.mrf.mxu0
  %89 = vdwg.mxu0
  %vm90 = vcmask 261120
  %91 = vst.msk [vmem:[%s3] sm:$0xff] %vm90, %v76
  %92 = vst.msk [vmem:[%s3 + $0x8] sm:$0xff] %vm90, %v79
  %93 = vst.msk [vmem:[%s3 + $0x10] sm:$0xff] %vm90, %v84
  %94 = vst.msk [vmem:[%s3 + $0x18] sm:$0xff] %vm90, %v87
  // Predicated region
  $region14: #{encoder_forward.13} parent=0 // pred_check
    _
  $region15: #{encoder_forward.13} parent=0 // pred_check_branch
    %96 = sbr.rel (0) target = $region17
  $region16: #{encoder_forward.13} parent=0 // pred_region
    _
  $region17: #{encoder_forward.13} parent=0 // pred_fallthru
    _
  // Predicated region
  $region18: #{encoder_forward.13} parent=0 // pred_check
    _
  $region19: #{encoder_forward.13} parent=0 // pred_check_branch
    %98 = sbr.rel (0) target = $region21
  $region20: #{encoder_forward.13} parent=0 // pred_region
    _
  $region21: #{encoder_forward.13} parent=0 // pred_fallthru
    _

// kernel: encoder_forward.16
$region0: #{encoder_forward.16}
  #allocation0 [shape = 'u32[]', space=smem, size = 0x4, offset = 0x4, fixed_abs, tag = 'smem constant byte address 0x4 - core index']
  #allocation1 [shape = 'u32[144,128]{1,0:T(1,128)}', space=vmem, size = 0x12000, scoped, tag = 'internal scratch']
  #allocation2 [shape = 's32[1]{0}', space=sflag, size = 0x4, scoped, tag = 'scoped memory for encoder_forward.16']
  #allocation3 [shape = 'u8[512]{0}', space=smem, size = 0x200, scoped, tag = 'prefetched SMEM operand 0']
  #allocation4 [shape = 'u8[512]{0}', space=smem, size = 0x200, scoped, tag = 'prefetched SMEM operand 1']
  %s0 = inlined_call_operand.vmem [shape: s32[32], index: 0, kind: input, shape index: {}]
  %s1 = inlined_call_operand.vmem [shape: s32[32], index: 1, kind: input, shape index: {}]
  %s2 = inlined_call_operand.vmem [shape: f32[16,1,32], index: 2, kind: input, shape index: {}]
  %s3 = inlined_call_operand.vmem [shape: f32[16,1,32], index: 3, kind: input, shape index: {}]
  %s4 = inlined_call_operand.vmem [shape: f32[32,1,32], index: 4, kind: input, shape index: {}]
  %s5 = inlined_call_operand.vmem [shape: f32[16,1,32], index: 5, kind: input, shape index: {}]
  %s6 = inlined_call_operand.vmem [shape: f32[32,1,32], index: 6, kind: output, shape index: {0}]
  %s7 = inlined_call_operand.vmem [shape: f32[32,1,32], index: 7, kind: output, shape index: {1}]
  %8 = xla_tuple %s6, %s7
  %s9 = sld [smem:[#allocation0]]
  $region57: #{encoder_forward.16} parent=0
    _
  %s11 = ssub.s32 1, %s9
  %s12 = scalar_select 0, %s11, %s9
  %s13 = sshll.u32 %s0, 4
  %s14 = int_to_ptr.vmem [resolvable:$true] %s13
  %16 = dma.vmem_to_smem %s14, 16, [#allocation3], [#allocation2]
  %s17 = sshll.u32 %s1, 4
  %s18 = int_to_ptr.vmem [resolvable:$true] %s17
  %20 = dma.vmem_to_smem %s18, 16, [#allocation4], [#allocation2]
  %21 = dma.done [#allocation2], 32
  %22 = sfence
  loop: start=0, step=1, limit=34
  $region2: #{encoder_forward.16} parent=0 // loop_pre_header
    _
  $region3: #{encoder_forward.16} parent=0 // loop_header
    %s24 = sphi 0, %s28
    %p25 = scmp.ge.s32.totalorder %s24, 34
    %s36 = sphi 0, %s38
    %s39 = sphi 0, %s36
    %s40 = sphi 0, %s39
    %s56 = sphi 0, %s40
    %s64 = sphi 0, %s66
    %s67 = sphi 0, %s64
    %s68 = sphi 0, %s67
    %s84 = sphi 0, %s68
    %s90 = sphi 0, %s92
    %s93 = sphi 0, %s90
    %s94 = sphi 0, %s93
    %s110 = sphi 0, %s94
    %s118 = sphi 0, %s120
    %s121 = sphi 0, %s118
    %s122 = sphi 0, %s121
    %s138 = sphi 0, %s122
    %s144 = sphi 0, %s146
    %s147 = sphi 0, %s144
    %s148 = sphi 0, %s147
    %s164 = sphi 0, %s148
    %s170 = sphi 0, %s172
    %s173 = sphi 0, %s170
    %s174 = sphi 0, %s173
    %s190 = sphi 0, %s174
  $region4: #{encoder_forward.16} parent=0 // loop_header_branch
    %27 = sbr.rel (%p25) target = $region8
  $region5: #{encoder_forward.16} parent=0 // loop_body
    %s29 = ssub.s32 %s24, 1
    %s30 = ssub.s32 %s24, 2
    %s31 = sadd.s32 %s24, 1
    %s32 = sld [smem:[#allocation3 + %s24]]
    %s33 = sld [smem:[#allocation3 + %s31]]
    %s34 = ssub.s32 %s32, %s33
    %p35 = scmp.eq.s32.totalorder %s34, 0
    %s37 = sadd.s32 %s36, 1
    %s38 = scalar_select %p35, %s36, %s37
    %p41 = pneg %p35
    %p42 = scmp.eq.s32.totalorder %s24, 31
    %p43 = por %p41, %p42
    %p44 = scmp.ne.s32.totalorder %s36, %s39
    %p45 = scmp.eq.s32.totalorder %s24, 0
    %p46 = por %p44, %p45
    %p47 = scmp.ne.s32.totalorder %s36, %s39
    %p48 = scmp.eq.s32.totalorder %s29, 31
    %p49 = por %p47, %p48
    %p50 = scmp.ne.s32.totalorder %s39, %s40
    %p51 = scmp.eq.s32.totalorder %s29, 0
    %p52 = por %p50, %p51
    %p53 = scmp.ne.s32.totalorder %s39, %s40
    %p54 = scmp.eq.s32.totalorder %s30, 31
    %p55 = por %p53, %p54
    %p57 = scmp.ne.s32.totalorder %s40, %s56
    %p58 = scmp.eq.s32.totalorder %s30, 0
    %p59 = por %p57, %p58
    %s60 = sld [smem:[#allocation4 + %s24]]
    %s61 = sld [smem:[#allocation4 + %s31]]
    %s62 = ssub.s32 %s60, %s61
    %p63 = scmp.eq.s32.totalorder %s62, 0
    %s65 = sadd.s32 %s64, 1
    %s66 = scalar_select %p63, %s64, %s65
    %p69 = pneg %p63
    %p70 = scmp.eq.s32.totalorder %s24, 31
    %p71 = por %p69, %p70
    %p72 = scmp.ne.s32.totalorder %s64, %s67
    %p73 = scmp.eq.s32.totalorder %s24, 0
    %p74 = por %p72, %p73
    %p75 = scmp.ne.s32.totalorder %s64, %s67
    %p76 = scmp.eq.s32.totalorder %s29, 31
    %p77 = por %p75, %p76
    %p78 = scmp.ne.s32.totalorder %s67, %s68
    %p79 = scmp.eq.s32.totalorder %s29, 0
    %p80 = por %p78, %p79
    %p81 = scmp.ne.s32.totalorder %s67, %s68
    %p82 = scmp.eq.s32.totalorder %s30, 31
    %p83 = por %p81, %p82
    %p85 = scmp.ne.s32.totalorder %s68, %s84
    %p86 = scmp.eq.s32.totalorder %s30, 0
    %p87 = por %p85, %p86
    %s88 = ssub.s32 %s24, %s31
    %p89 = scmp.eq.s32.totalorder %s88, 0
    %s91 = sadd.s32 %s90, 1
    %s92 = scalar_select %p89, %s90, %s91
    %p95 = pneg %p89
    %p96 = scmp.eq.s32.totalorder %s24, 31
    %p97 = por %p95, %p96
    %p98 = scmp.ne.s32.totalorder %s90, %s93
    %p99 = scmp.eq.s32.totalorder %s24, 0
    %p100 = por %p98, %p99
    %p101 = scmp.ne.s32.totalorder %s90, %s93
    %p102 = scmp.eq.s32.totalorder %s29, 31
    %p103 = por %p101, %p102
    %p104 = scmp.ne.s32.totalorder %s93, %s94
    %p105 = scmp.eq.s32.totalorder %s29, 0
    %p106 = por %p104, %p105
    %p107 = scmp.ne.s32.totalorder %s93, %s94
    %p108 = scmp.eq.s32.totalorder %s30, 31
    %p109 = por %p107, %p108
    %p111 = scmp.ne.s32.totalorder %s94, %s110
    %p112 = scmp.eq.s32.totalorder %s30, 0
    %p113 = por %p111, %p112
    %s114 = sld [smem:[#allocation4 + %s24]]
    %s115 = sld [smem:[#allocation4 + %s31]]
    %s116 = ssub.s32 %s114, %s115
    %p117 = scmp.eq.s32.totalorder %s116, 0
    %s119 = sadd.s32 %s118, 1
    %s120 = scalar_select %p117, %s118, %s119
    %p123 = pneg %p117
    %p124 = scmp.eq.s32.totalorder %s24, 31
    %p125 = por %p123, %p124
    %p126 = scmp.ne.s32.totalorder %s118, %s121
    %p127 = scmp.eq.s32.totalorder %s24, 0
    %p128 = por %p126, %p127
    %p129 = scmp.ne.s32.totalorder %s118, %s121
    %p130 = scmp.eq.s32.totalorder %s29, 31
    %p131 = por %p129, %p130
    %p132 = scmp.ne.s32.totalorder %s121, %s122
    %p133 = scmp.eq.s32.totalorder %s29, 0
    %p134 = por %p132, %p133
    %p135 = scmp.ne.s32.totalorder %s121, %s122
    %p136 = scmp.eq.s32.totalorder %s30, 31
    %p137 = por %p135, %p136
    %p139 = scmp.ne.s32.totalorder %s122, %s138
    %p140 = scmp.eq.s32.totalorder %s30, 0
    %p141 = por %p139, %p140
    %s142 = ssub.s32 %s24, %s31
    %p143 = scmp.eq.s32.totalorder %s142, 0
    %s145 = sadd.s32 %s144, 1
    %s146 = scalar_select %p143, %s144, %s145
    %p149 = pneg %p143
    %p150 = scmp.eq.s32.totalorder %s24, 31
    %p151 = por %p149, %p150
    %p152 = scmp.ne.s32.totalorder %s144, %s147
    %p153 = scmp.eq.s32.totalorder %s24, 0
    %p154 = por %p152, %p153
    %p155 = scmp.ne.s32.totalorder %s144, %s147
    %p156 = scmp.eq.s32.totalorder %s29, 31
    %p157 = por %p155, %p156
    %p158 = scmp.ne.s32.totalorder %s147, %s148
    %p159 = scmp.eq.s32.totalorder %s29, 0
    %p160 = por %p158, %p159
    %p161 = scmp.ne.s32.totalorder %s147, %s148
    %p162 = scmp.eq.s32.totalorder %s30, 31
    %p163 = por %p161, %p162
    %p165 = scmp.ne.s32.totalorder %s148, %s164
    %p166 = scmp.eq.s32.totalorder %s30, 0
    %p167 = por %p165, %p166
    %s168 = ssub.s32 %s24, %s31
    %p169 = scmp.eq.s32.totalorder %s168, 0
    %s171 = sadd.s32 %s170, 1
    %s172 = scalar_select %p169, %s170, %s171
    %p175 = pneg %p169
    %p176 = scmp.eq.s32.totalorder %s24, 31
    %p177 = por %p175, %p176
    %p178 = scmp.ne.s32.totalorder %s170, %s173
    %p179 = scmp.eq.s32.totalorder %s24, 0
    %p180 = por %p178, %p179
    %p181 = scmp.ne.s32.totalorder %s170, %s173
    %p182 = scmp.eq.s32.totalorder %s29, 31
    %p183 = por %p181, %p182
    %p184 = scmp.ne.s32.totalorder %s173, %s174
    %p185 = scmp.eq.s32.totalorder %s29, 0
    %p186 = por %p184, %p185
    %p187 = scmp.ne.s32.totalorder %s173, %s174
    %p188 = scmp.eq.s32.totalorder %s30, 31
    %p189 = por %p187, %p188
    %p191 = scmp.ne.s32.totalorder %s174, %s190
    %p192 = scmp.eq.s32.totalorder %s30, 0
    %p193 = por %p191, %p192
    %p194 = scmp.le.s32.totalorder 1, %s24
    %p195 = scmp.lt.s32.totalorder %s24, 33
    %p196 = pnand %p194, %p195
    %p197 = pneg %p196
    // Predicated region
    $region9: #{encoder_forward.16} parent=5 // pred_check
      _
    $region10: #{encoder_forward.16} parent=5 // pred_check_branch
      %199 = sbr.rel (%p196) target = $region12
    $region11: #{encoder_forward.16} parent=5 // pred_region
      %s200 = ssub.s32 %s24, 1
    $region12: #{encoder_forward.16} parent=5 // pred_fallthru
      _
    %p201 = scmp.lt.s32.totalorder %s24, 32
    // Predicated region
    $region13: #{encoder_forward.16} parent=5 // pred_check
      %p202 = pneg %p201
    $region14: #{encoder_forward.16} parent=5 // pred_check_branch
      %204 = sbr.rel (%p202) target = $region16
    $region15: #{encoder_forward.16} parent=5 // pred_region
      // Predicated region
      $region17: #{encoder_forward.16} parent=15 // pred_check
        %p205 = pneg %p46
      $region18: #{encoder_forward.16} parent=15 // pred_check_branch
        %207 = sbr.rel (%p205) target = $region20
      $region19: #{encoder_forward.16} parent=15 // pred_region
        %s208 = sld [smem:[#allocation3 + %s24]]
        %p209 = scmp.lt.s32.totalorder %s208, 15
        %s210 = scalar_select %p209, %s208, 15
        %s211 = scalar_lea.vmem %s2, %s210
        %s212 = sld [smem:[#allocation3 + %s24]]
      $region20: #{encoder_forward.16} parent=15 // pred_fallthru
        _
      // Predicated region
      $region21: #{encoder_forward.16} parent=15 // pred_check
        %p213 = pneg %p74
      $region22: #{encoder_forward.16} parent=15 // pred_check_branch
        %215 = sbr.rel (%p213) target = $region24
      $region23: #{encoder_forward.16} parent=15 // pred_region
        %s216 = sld [smem:[#allocation4 + %s24]]
        %p217 = scmp.lt.s32.totalorder %s216, 15
        %s218 = scalar_select %p217, %s216, 15
        %s219 = scalar_lea.vmem %s3, %s218
        %s220 = sld [smem:[#allocation4 + %s24]]
      $region24: #{encoder_forward.16} parent=15 // pred_fallthru
        _
      // Predicated region
      $region25: #{encoder_forward.16} parent=15 // pred_check
        %p221 = pneg %p100
      $region26: #{encoder_forward.16} parent=15 // pred_check_branch
        %223 = sbr.rel (%p221) target = $region28
      $region27: #{encoder_forward.16} parent=15 // pred_region
        %p224 = scmp.lt.s32.totalorder %s24, 31
        %s225 = scalar_select %p224, %s24, 31
        %s226 = scalar_lea.vmem %s4, %s225
      $region28: #{encoder_forward.16} parent=15 // pred_fallthru
        _
      // Predicated region
      $region29: #{encoder_forward.16} parent=15 // pred_check
        %p227 = pneg %p128
      $region30: #{encoder_forward.16} parent=15 // pred_check_branch
        %229 = sbr.rel (%p227) target = $region32
      $region31: #{encoder_forward.16} parent=15 // pred_region
        %s230 = sld [smem:[#allocation4 + %s24]]
        %p231 = scmp.lt.s32.totalorder %s230, 15
        %s232 = scalar_select %p231, %s230, 15
        %s233 = scalar_lea.vmem %s5, %s232
        %s234 = sld [smem:[#allocation4 + %s24]]
      $region32: #{encoder_forward.16} parent=15 // pred_fallthru
        _
    $region16: #{encoder_forward.16} parent=5 // pred_fallthru
      _
    %p235 = scmp.le.s32.totalorder 1, %s24
    %p236 = scmp.lt.s32.totalorder %s24, 33
    %p237 = pnand %p235, %p236
    %p238 = pneg %p237
    // Predicated region
    $region33: #{encoder_forward.16} parent=5 // pred_check
      _
    $region34: #{encoder_forward.16} parent=5 // pred_check_branch
      %240 = sbr.rel (%p237) target = $region36
    $region35: #{encoder_forward.16} parent=5 // pred_region
      %s241 = ssub.s32 %s24, 1
      %s242 = sld [smem:[#allocation3 + %s29]]
      %p243 = scmp.lt.s32.totalorder %s242, 15
      %s244 = scalar_select %p243, %s242, 15
      %s245 = scalar_lea.vmem %s2, %s244
      %p246 = pneg %p52
      %p247 = pneg %p49
      %s248 = sld [smem:[#allocation4 + %s29]]
      %p249 = scmp.lt.s32.totalorder %s248, 15
      %s250 = scalar_select %p249, %s248, 15
      %s251 = scalar_lea.vmem %s3, %s250
      %p252 = pneg %p80
      %p253 = pneg %p77
      %p254 = scmp.lt.s32.totalorder %s29, 31
      %s255 = scalar_select %p254, %s29, 31
      %s256 = scalar_lea.vmem %s4, %s255
      %p257 = pneg %p106
      %p258 = pneg %p103
      %s259 = sld [smem:[#allocation4 + %s29]]
      %p260 = scmp.lt.s32.totalorder %s259, 15
      %s261 = scalar_select %p260, %s259, 15
      %s262 = scalar_lea.vmem %s5, %s261
      %p263 = pneg %p134
      %p264 = pneg %p131
      %p265 = pneg %p160
      %p266 = pneg %p157
      %p267 = scmp.lt.s32.totalorder %s29, 31
      %s268 = scalar_select %p267, %s29, 31
      %s269 = scalar_lea.vmem %s6, %s268
      %p270 = pneg %p186
      %p271 = pneg %p183
      %p272 = scmp.lt.s32.totalorder %s29, 31
      %s273 = scalar_select %p272, %s29, 31
      %s274 = scalar_lea.vmem %s7, %s273
      %s275 = sld [smem:[#allocation3 + %s29]]
      %p276 = scmp.lt.s32.totalorder %s275, 15
      %s277 = scalar_select %p276, %s275, 15
      %s278 = scalar_lea.vmem %s2, %s277
      %s279 = sld [smem:[#allocation3 + %s29]]
      %s280 = sld [smem:[#allocation4 + %s29]]
      %p281 = scmp.lt.s32.totalorder %s280, 15
      %s282 = scalar_select %p281, %s280, 15
      %s283 = scalar_lea.vmem %s3, %s282
      %s284 = sld [smem:[#allocation4 + %s29]]
      %p285 = scmp.lt.s32.totalorder %s29, 31
      %s286 = scalar_select %p285, %s29, 31
      %s287 = scalar_lea.vmem %s4, %s286
      %s288 = sld [smem:[#allocation4 + %s29]]
      %p289 = scmp.lt.s32.totalorder %s288, 15
      %s290 = scalar_select %p289, %s288, 15
      %s291 = scalar_lea.vmem %s5, %s290
      %s292 = sld [smem:[#allocation4 + %s29]]
      %p293 = scmp.lt.s32.totalorder %s29, 31
      %s294 = scalar_select %p293, %s29, 31
      %s295 = scalar_lea.vmem %s6, %s294
      %p296 = scmp.lt.s32.totalorder %s29, 31
      %s297 = scalar_select %p296, %s29, 31
      %s298 = scalar_lea.vmem %s7, %s297
      %v299 = vld [vmem:[%s278] sm:$0x1]
      %v300 = vld [vmem:[%s283] sm:$0x1]
      %v301 = vmul.f32 %v299, %v300
      %v302 = vld [vmem:[%s287] sm:$0x1]
      %v303 = vmul.f32 %v301, %v302
      %v304 = vmul.f32 %v303, 0.35355338
      %vm305 = vcmask 253952
      %306 = vst.msk [vmem:[%s295] sm:$0x1] %vm305, %v304
      %v307 = vld [vmem:[%s291] sm:$0x1]
      %308 = vst.msk [vmem:[%s298] sm:$0x1] %vm305, %v307
      %p309 = scmp.lt.s32.totalorder %s29, 31
      %s310 = scalar_select %p309, %s29, 31
      %s311 = scalar_lea.vmem %s6, %s310
      %p312 = scmp.lt.s32.totalorder %s29, 31
      %s313 = scalar_select %p312, %s29, 31
      %s314 = scalar_lea.vmem %s7, %s313
      // Predicated region
      $region37: #{encoder_forward.16} parent=35 // pred_check
        %p315 = pneg %p157
      $region38: #{encoder_forward.16} parent=35 // pred_check_branch
        %317 = sbr.rel (%p315) target = $region40
      $region39: #{encoder_forward.16} parent=35 // pred_region
        _
      $region40: #{encoder_forward.16} parent=35 // pred_fallthru
        _
      // Predicated region
      $region41: #{encoder_forward.16} parent=35 // pred_check
        %p318 = pneg %p183
      $region42: #{encoder_forward.16} parent=35 // pred_check_branch
        %320 = sbr.rel (%p318) target = $region44
      $region43: #{encoder_forward.16} parent=35 // pred_region
        _
      $region44: #{encoder_forward.16} parent=35 // pred_fallthru
        _
    $region36: #{encoder_forward.16} parent=5 // pred_fallthru
      _
    %p321 = scmp.le.s32.totalorder 2, %s24
    // Predicated region
    $region45: #{encoder_forward.16} parent=5 // pred_check
      %p322 = pneg %p321
    $region46: #{encoder_forward.16} parent=5 // pred_check_branch
      %324 = sbr.rel (%p322) target = $region48
    $region47: #{encoder_forward.16} parent=5 // pred_region
      %s325 = ssub.s32 %s24, 2
      // Predicated region
      $region49: #{encoder_forward.16} parent=47 // pred_check
        %p326 = pneg %p163
      $region50: #{encoder_forward.16} parent=47 // pred_check_branch
        %328 = sbr.rel (%p326) target = $region52
      $region51: #{encoder_forward.16} parent=47 // pred_region
        %p329 = scmp.lt.s32.totalorder %s30, 31
        %s330 = scalar_select %p329, %s30, 31
        %s331 = scalar_lea.vmem %s6, %s330
      $region52: #{encoder_forward.16} parent=47 // pred_fallthru
        _
      // Predicated region
      $region53: #{encoder_forward.16} parent=47 // pred_check
        %p332 = pneg %p189
      $region54: #{encoder_forward.16} parent=47 // pred_check_branch
        %334 = sbr.rel (%p332) target = $region56
      $region55: #{encoder_forward.16} parent=47 // pred_region
        %p335 = scmp.lt.s32.totalorder %s30, 31
        %s336 = scalar_select %p335, %s30, 31
        %s337 = scalar_lea.vmem %s7, %s336
      $region56: #{encoder_forward.16} parent=47 // pred_fallthru
        _
    $region48: #{encoder_forward.16} parent=5 // pred_fallthru
      _
  $region6: #{encoder_forward.16} parent=0 // loop_footer
    %s28 = sadd.s32 1, %s24
  $region7: #{encoder_forward.16} parent=0 // loop_footer_branch
    %23 = sbr.rel target = $region3
  $region8: #{encoder_forward.16} parent=0 // loop_exit
    _

// kernel: encoder_forward.18
$region0: #{encoder_forward.18}
  #allocation0 [shape = 'u32[]', space=smem, size = 0x4, offset = 0x4, fixed_abs, tag = 'smem constant byte address 0x4 - core index']
  #allocation1 [shape = 'u32[144,128]{1,0:T(1,128)}', space=vmem, size = 0x12000, scoped, tag = 'internal scratch']
  %s0 = inlined_call_operand.vmem [shape: f32[32,32], index: 0, kind: input, shape index: {}]
  %s1 = inlined_call_operand.vmem [shape: f32[32,32], index: 1, kind: input, shape index: {}]
  %s2 = inlined_call_operand.vmem [shape: f32[1,32], index: 2, kind: input, shape index: {}]
  %s3 = inlined_call_operand.vmem [shape: f32[32,32], index: 3, kind: input, shape index: {}]
  %s4 = inlined_call_operand.vmem [shape: f32[1,32], index: 4, kind: input, shape index: {}]
  %s5 = inlined_call_operand.vmem [shape: f32[1,32], index: 5, kind: input, shape index: {}]
  %s6 = inlined_call_operand.vmem [shape: f32[32,64], index: 6, kind: input, shape index: {}]
  %s7 = inlined_call_operand.vmem [shape: f32[1,64], index: 7, kind: input, shape index: {}]
  %s8 = inlined_call_operand.vmem [shape: f32[64,32], index: 8, kind: input, shape index: {}]
  %s9 = inlined_call_operand.vmem [shape: f32[1,32], index: 9, kind: input, shape index: {}]
  %s10 = inlined_call_operand.vmem [shape: f32[1,32], index: 10, kind: input, shape index: {}]
  %s11 = inlined_call_operand.vmem [shape: f32[1,32], index: 11, kind: input, shape index: {}]
  %s12 = inlined_call_operand.vmem [shape: f32[32,32], index: 12, kind: output, shape index: {}]
  %s13 = sld [smem:[#allocation0]]
  $region58: #{encoder_forward.18} parent=0
    _
  %s15 = ssub.s32 1, %s13
  %s16 = scalar_select 0, %s15, %s13
  // Predicated region
  $region2: #{encoder_forward.18} parent=0 // pred_check
    _
  $region3: #{encoder_forward.18} parent=0 // pred_check_branch
    %18 = sbr.rel (0) target = $region5
  $region4: #{encoder_forward.18} parent=0 // pred_region
    _
  $region5: #{encoder_forward.18} parent=0 // pred_fallthru
    _
  // Predicated region
  $region6: #{encoder_forward.18} parent=0 // pred_check
    _
  $region7: #{encoder_forward.18} parent=0 // pred_check_branch
    %20 = sbr.rel (0) target = $region9
  $region8: #{encoder_forward.18} parent=0 // pred_region
    _
  $region9: #{encoder_forward.18} parent=0 // pred_fallthru
    _
  // Predicated region
  $region10: #{encoder_forward.18} parent=0 // pred_check
    _
  $region11: #{encoder_forward.18} parent=0 // pred_check_branch
    %22 = sbr.rel (0) target = $region13
  $region12: #{encoder_forward.18} parent=0 // pred_region
    _
  $region13: #{encoder_forward.18} parent=0 // pred_fallthru
    _
  // Predicated region
  $region14: #{encoder_forward.18} parent=0 // pred_check
    _
  $region15: #{encoder_forward.18} parent=0 // pred_check_branch
    %24 = sbr.rel (0) target = $region17
  $region16: #{encoder_forward.18} parent=0 // pred_region
    _
  $region17: #{encoder_forward.18} parent=0 // pred_fallthru
    _
  // Predicated region
  $region18: #{encoder_forward.18} parent=0 // pred_check
    _
  $region19: #{encoder_forward.18} parent=0 // pred_check_branch
    %26 = sbr.rel (0) target = $region21
  $region20: #{encoder_forward.18} parent=0 // pred_region
    _
  $region21: #{encoder_forward.18} parent=0 // pred_fallthru
    _
  // Predicated region
  $region22: #{encoder_forward.18} parent=0 // pred_check
    _
  $region23: #{encoder_forward.18} parent=0 // pred_check_branch
    %28 = sbr.rel (0) target = $region25
  $region24: #{encoder_forward.18} parent=0 // pred_region
    _
  $region25: #{encoder_forward.18} parent=0 // pred_fallthru
    _
  // Predicated region
  $region26: #{encoder_forward.18} parent=0 // pred_check
    _
  $region27: #{encoder_forward.18} parent=0 // pred_check_branch
    %30 = sbr.rel (0) target = $region29
  $region28: #{encoder_forward.18} parent=0 // pred_region
    _
  $region29: #{encoder_forward.18} parent=0 // pred_fallthru
    _
  // Predicated region
  $region30: #{encoder_forward.18} parent=0 // pred_check
    _
  $region31: #{encoder_forward.18} parent=0 // pred_check_branch
    %32 = sbr.rel (0) target = $region33
  $region32: #{encoder_forward.18} parent=0 // pred_region
    _
  $region33: #{encoder_forward.18} parent=0 // pred_fallthru
    _
  // Predicated region
  $region34: #{encoder_forward.18} parent=0 // pred_check
    _
  $region35: #{encoder_forward.18} parent=0 // pred_check_branch
    %34 = sbr.rel (0) target = $region37
  $region36: #{encoder_forward.18} parent=0 // pred_region
    _
  $region37: #{encoder_forward.18} parent=0 // pred_fallthru
    _
  // Predicated region
  $region38: #{encoder_forward.18} parent=0 // pred_check
    _
  $region39: #{encoder_forward.18} parent=0 // pred_check_branch
    %36 = sbr.rel (0) target = $region41
  $region40: #{encoder_forward.18} parent=0 // pred_region
    _
  $region41: #{encoder_forward.18} parent=0 // pred_fallthru
    _
  // Predicated region
  $region42: #{encoder_forward.18} parent=0 // pred_check
    _
  $region43: #{encoder_forward.18} parent=0 // pred_check_branch
    %38 = sbr.rel (0) target = $region45
  $region44: #{encoder_forward.18} parent=0 // pred_region
    _
  $region45: #{encoder_forward.18} parent=0 // pred_fallthru
    _
  // Predicated region
  $region46: #{encoder_forward.18} parent=0 // pred_check
    _
  $region47: #{encoder_forward.18} parent=0 // pred_check_branch
    %40 = sbr.rel (0) target = $region49
  $region48: #{encoder_forward.18} parent=0 // pred_region
    _
  $region49: #{encoder_forward.18} parent=0 // pred_fallthru
    _
  %v42 = vld [vmem:[%s0] sm:$0xff]
  %v43 = vld [vmem:[%s0 + $0x8] sm:$0xff]
  %v44 = vld [vmem:[%s0 + $0x10] sm:$0xff]
  %v45 = vld [vmem:[%s0 + $0x18] sm:$0xff]
  %v46 = vld [vmem:[%s1] sm:$0xff]
  %v47 = vld [vmem:[%s1 + $0x8] sm:$0xff]
  %v48 = vld [vmem:[%s1 + $0x10] sm:$0xff]
  %v49 = vld [vmem:[%s1 + $0x18] sm:$0xff]
  %v50 = vpack.c.bf16 %v43, %v42
  %v51 = vpack.c.bf16 %v45, %v44
  %v52 = vpack.c.bf16 %v47, %v46
  %v53 = vpack.c.bf16 %v49, %v48
  %v54 = vld [vmem:[%s2] sm:$0x1]
  %v56 = vlaneseq
  %v57 = vshrl.u32 %v56, 7
  %v58 = vsub.s32 0, %v57
  %v59 = vrot.slane %v54, %v58
  %vm61 = vcmask 261120
  %v63 = vsel %vm61, %v50, 0
  %v66 = vsel %vm61, %v51, 0
  %68 = vmatprep.subr.bf16.mxu0 0
  %69 = vmatpush1.bf16.msra.mxu0 0
  %70 = vmatprep.subr.bf16.mxu0 0
  %71 = vmatpush1.bf16.msra.mxu0 0
  %72 = vmatprep.subr.bf16.mxu0 0
  %73 = vmatpush1.bf16.msra.mxu0 0
  %74 = vmatprep.subr.bf16.mxu0 0
  %75 = vmatpush1.bf16.msra.mxu0 0
  %76 = vmatprep.subr.bf16.mxu0 0
  %77 = vmatpush1.bf16.msra.mxu0 0
  %78 = vmatprep.subr.bf16.mxu0 0
  %79 = vmatpush1.bf16.msra.mxu0 0
  %80 = vmatprep.subr.bf16.mxu0 0
  %81 = vmatpush1.bf16.msra.mxu0 %v53
  %82 = vmatprep.subr.bf16.mxu0 0
  %83 = vmatpush1.bf16.msra.mxu0 %v52
  %84 = vmatprep.subr.bf16.mxu0 0
  %85 = vmatpush2.bf16.msra.mxu0 0
  %86 = vmatprep.subr.bf16.mxu0 0
  %87 = vmatpush2.bf16.msra.mxu0 0
  %88 = vmatprep.subr.bf16.mxu0 0
  %89 = vmatpush2.bf16.msra.mxu0 0
  %90 = vmatprep.subr.bf16.mxu0 0
  %91 = vmatpush2.bf16.msra.mxu0 0
  %92 = vmatprep.subr.bf16.mxu0 0
  %93 = vmatpush2.bf16.msra.mxu0 0
  %94 = vmatprep.subr.bf16.mxu0 0
  %95 = vmatpush2.bf16.msra.mxu0 0
  %96 = vmatprep.subr.bf16.mxu0 0
  %97 = vmatpush2.bf16.msra.mxu0 0
  %98 = vmatprep.subr.bf16.mxu0 0
  %99 = vmatpush2.bf16.msra.mxu0 0
  %100 = vmatprep.mubr.bf16.mxu0 0
  %101 = vmatmul.mubr.bf16.gmra.mxu0 %v63
  %v102 = vpop.f32.mrf.mxu0
  %v103 = vadd.f32 %v59, %v102
  %v104 = vpop.f32.mrf.mxu0
  %v105 = vpop.f32.mrf.mxu0
  %v106 = vadd.f32 %v59, %v105
  %v107 = vpop.f32.mrf.mxu0
  %108 = vmatprep.mubr.bf16.mxu0 0
  %109 = vmatmul.mubr.bf16.gmra.mxu0 %v66
  %v110 = vpop.f32.mrf.mxu0
  %v111 = vadd.f32 %v59, %v110
  %v112 = vpop.f32.mrf.mxu0
  %v113 = vpop.f32.mrf.mxu0
  %v114 = vadd.f32 %v59, %v113
  %v115 = vpop.f32.mrf.mxu0
  %116 = vdwg.mxu0
  %v117 = vld [vmem:[%s3] sm:$0xff]
  %v118 = vld [vmem:[%s3 + $0x8] sm:$0xff]
  %v119 = vld [vmem:[%s3 + $0x10] sm:$0xff]
  %v120 = vld [vmem:[%s3 + $0x18] sm:$0xff]
  %v121 = vadd.f32 %v103, %v117
  %v122 = vadd.f32 %v106, %v118
  %v123 = vadd.f32 %v111, %v119
  %v124 = vadd.f32 %v114, %v120
  %v125 = vld [vmem:[%s4] sm:$0x1]
  %v126 = vld [vmem:[%s5] sm:$0x1]
  %v127 = vsel %vm61, %v121, 0.0
  %v128 = vsel %vm61, %v122, 0.0
  %v129 = vadd.f32 %v127, %v128
  %v130 = vsel %vm61, %v123, 0.0
  %v131 = vadd.f32 %v129, %v130
  %v132 = vsel %vm61, %v124, 0.0
  %v133 = vadd.f32 %v131, %v132
  %v134 = vrot.slane %v133, 4
  %v135 = vadd.f32 %v133, %v134
  %v136 = vrot.slane %v135, 2
  %v137 = vadd.f32 %v135, %v136
  %v138 = vrot.slane %v137, 1
  %v139 = vadd.f32 %v137, %v138
  %v140 = vrcp.pop 32.0
  %v141 = vmul.f32 %v139, %v140
  %v142 = vsub.f32 %v121, %v141
  %v143 = vsub.f32 %v122, %v141
  %v144 = vsub.f32 %v123, %v141
  %v145 = vsub.f32 %v124, %v141
  %v146 = vmul.f32 %v142, %v142
  %v147 = vmul.f32 %v143, %v143
  %v148 = vmul.f32 %v144, %v144
  %v149 = vmul.f32 %v145, %v145
  %v150 = vsel %vm61, %v146, 0.0
  %v151 = vsel %vm61, %v147, 0.0
  %v152 = vadd.f32 %v150, %v151
  %v153 = vsel %vm61, %v148, 0.0
  %v154 = vadd.f32 %v152, %v153
  %v155 = vsel %vm61, %v149, 0.0
  %v156 = vadd.f32 %v154, %v155
  %v157 = vrot.slane %v156, 4
  %v158 = vadd.f32 %v156, %v157
  %v159 = vrot.slane %v158, 2
  %v160 = vadd.f32 %v158, %v159
  %v161 = vrot.slane %v160, 1
  %v162 = vadd.f32 %v160, %v161
  %v163 = vmul.f32 %v162, %v140
  %v164 = vadd.f32 %v163, 1e-05
  %v165 = vrsqrt.pop %v164
  %v166 = vmul.f32 %v142, %v165
  %v167 = vmul.f32 %v143, %v165
  %v168 = vmul.f32 %v144, %v165
  %v169 = vmul.f32 %v145, %v165
  %v171 = vlaneseq
  %v172 = vshrl.u32 %v171, 7
  %v173 = vsub.s32 0, %v172
  %v174 = vrot.slane %v125, %v173
  %v176 = vmul.f32 %v166, %v174
  %v177 = vmul.f32 %v167, %v174
  %v178 = vmul.f32 %v168, %v174
  %v179 = vmul.f32 %v169, %v174
  %v181 = vlaneseq
  %v182 = vshrl.u32 %v181, 7
  %v183 = vsub.s32 0, %v182
  %v184 = vrot.slane %v126, %v183
  %v186 = vadd.f32 %v176, %v184
  %v187 = vadd.f32 %v177, %v184
  %v188 = vadd.f32 %v178, %v184
  %v189 = vadd.f32 %v179, %v184
  %v190 = vld [vmem:[%s6] sm:$0xff]
  %v191 = vld [vmem:[%s6 + $0x8] sm:$0xff]
  %v192 = vld [vmem:[%s6 + $0x10] sm:$0xff]
  %v193 = vld [vmem:[%s6 + $0x18] sm:$0xff]
  %v194 = vpack.c.bf16 %v187, %v186
  %v195 = vpack.c.bf16 %v189, %v188
  %v196 = vpack.c.bf16 %v191, %v190
  %v197 = vpack.c.bf16 %v193, %v192
  %v198 = vld [vmem:[%s7] sm:$0x1]
  %v200 = vlaneseq
  %v201 = vshrl.u32 %v200, 7
  %v202 = vsub.s32 0, %v201
  %v203 = vrot.slane %v198, %v202
  %v206 = vsel %vm61, %v194, 0
  %v209 = vsel %vm61, %v195, 0
  %211 = vmatprep.subr.bf16.mxu0 0
  %212 = vmatpush1.bf16.msra.mxu0 0
  %213 = vmatprep.subr.bf16.mxu0 0
  %214 = vmatpush1.bf16.msra.mxu0 0
  %215 = vmatprep.subr.bf16.mxu0 0
  %216 = vmatpush1.bf16.msra.mxu0 0
  %217 = vmatprep.subr.bf16.mxu0 0
  %218 = vmatpush1.bf16.msra.mxu0 0
  %219 = vmatprep.subr.bf16.mxu0 0
  %220 = vmatpush1.bf16.msra.mxu0 0
  %221 = vmatprep.subr.bf16.mxu0 0
  %222 = vmatpush1.bf16.msra.mxu0 0
  %223 = vmatprep.subr.bf16.mxu0 0
  %224 = vmatpush1.bf16.msra.mxu0 %v197
  %225 = vmatprep.subr.bf16.mxu0 0
  %226 = vmatpush1.bf16.msra.mxu0 %v196
  %227 = vmatprep.subr.bf16.mxu0 0
  %228 = vmatpush2.bf16.msra.mxu0 0
  %229 = vmatprep.subr.bf16.mxu0 0
  %230 = vmatpush2.bf16.msra.mxu0 0
  %231 = vmatprep.subr.bf16.mxu0 0
  %232 = vmatpush2.bf16.msra.mxu0 0
  %233 = vmatprep.subr.bf16.mxu0 0
  %234 = vmatpush2.bf16.msra.mxu0 0
  %235 = vmatprep.subr.bf16.mxu0 0
  %236 = vmatpush2.bf16.msra.mxu0 0
  %237 = vmatprep.subr.bf16.mxu0 0
  %238 = vmatpush2.bf16.msra.mxu0 0
  %239 = vmatprep.subr.bf16.mxu0 0
  %240 = vmatpush2.bf16.msra.mxu0 0
  %241 = vmatprep.subr.bf16.mxu0 0
  %242 = vmatpush2.bf16.msra.mxu0 0
  %243 = vmatprep.mubr.bf16.mxu0 0
  %244 = vmatmul.mubr.bf16.gmra.mxu0 %v206
  %v245 = vpop.f32.mrf.mxu0
  %v246 = vadd.f32 %v203, %v245
  %v247 = vpop.f32.mrf.mxu0
  %v248 = vpop.f32.mrf.mxu0
  %v249 = vadd.f32 %v203, %v248
  %v250 = vpop.f32.mrf.mxu0
  %251 = vmatprep.mubr.bf16.mxu0 0
  %252 = vmatmul.mubr.bf16.gmra.mxu0 %v209
  %v253 = vpop.f32.mrf.mxu0
  %v254 = vadd.f32 %v203, %v253
  %v255 = vpop.f32.mrf.mxu0
  %v256 = vpop.f32.mrf.mxu0
  %v257 = vadd.f32 %v203, %v256
  %v258 = vpop.f32.mrf.mxu0
  %259 = vdwg.mxu0
  %v260 = vmax.f32 %v246, 0.0
  %v261 = vmax.f32 %v249, 0.0
  %v262 = vmax.f32 %v254, 0.0
  %v263 = vmax.f32 %v257, 0.0
  %v264 = vld [vmem:[%s8] sm:$0xff]
  %v265 = vld [vmem:[%s8 + $0x8] sm:$0xff]
  %v266 = vld [vmem:[%s8 + $0x10] sm:$0xff]
  %v267 = vld [vmem:[%s8 + $0x18] sm:$0xff]
  %v268 = vld [vmem:[%s8 + $0x20] sm:$0xff]
  %v269 = vld [vmem:[%s8 + $0x28] sm:$0xff]
  %v270 = vld [vmem:[%s8 + $0x30] sm:$0xff]
  %v271 = vld [vmem:[%s8 + $0x38] sm:$0xff]
  %v272 = vpack.c.bf16 %v261, %v260
  %v273 = vpack.c.bf16 %v263, %v262
  %v274 = vpack.c.bf16 %v265, %v264
  %v275 = vpack.c.bf16 %v267, %v266
  %v276 = vpack.c.bf16 %v269, %v268
  %v277 = vpack.c.bf16 %v271, %v270
  %v278 = vld [vmem:[%s9] sm:$0x1]
  %v280 = vlaneseq
  %v281 = vshrl.u32 %v280, 7
  %v282 = vsub.s32 0, %v281
  %v283 = vrot.slane %v278, %v282
  %vm285 = vcmask 523264
  %v287 = vsel %vm285, %v272, 0
  %v290 = vsel %vm285, %v273, 0
  %292 = vmatprep.subr.bf16.mxu0 0
  %293 = vmatpush1.bf16.msra.mxu0 0
  %294 = vmatprep.subr.bf16.mxu0 0
  %295 = vmatpush1.bf16.msra.mxu0 0
  %296 = vmatprep.subr.bf16.mxu0 0
  %297 = vmatpush1.bf16.msra.mxu0 0
  %298 = vmatprep.subr.bf16.mxu0 0
  %299 = vmatpush1.bf16.msra.mxu0 0
  %300 = vmatprep.subr.bf16.mxu0 0
  %301 = vmatpush1.bf16.msra.mxu0 %v277
  %302 = vmatprep.subr.bf16.mxu0 0
  %303 = vmatpush1.bf16.msra.mxu0 %v276
  %304 = vmatprep.subr.bf16.mxu0 0
  %305 = vmatpush1.bf16.msra.mxu0 %v275
  %306 = vmatprep.subr.bf16.mxu0 0
  %307 = vmatpush1.bf16.msra.mxu0 %v274
  %308 = vmatprep.subr.bf16.mxu0 0
  %309 = vmatpush2.bf16.msra.mxu0 0
  %310 = vmatprep.subr.bf16.mxu0 0
  %311 = vmatpush2.bf16.msra.mxu0 0
  %312 = vmatprep.subr.bf16.mxu0 0
  %313 = vmatpush2.bf16.msra.mxu0 0
  %314 = vmatprep.subr.bf16.mxu0 0
  %315 = vmatpush2.bf16.msra.mxu0 0
  %316 = vmatprep.subr.bf16.mxu0 0
  %317 = vmatpush2.bf16.msra.mxu0 0
  %318 = vmatprep.subr.bf16.mxu0 0
  %319 = vmatpush2.bf16.msra.mxu0 0
  %320 = vmatprep.subr.bf16.mxu0 0
  %321 = vmatpush2.bf16.msra.mxu0 0
  %322 = vmatprep.subr.bf16.mxu0 0
  %323 = vmatpush2.bf16.msra.mxu0 0
  %324 = vmatprep.mubr.bf16.mxu0 0
  %325 = vmatmul.mubr.bf16.gmra.mxu0 %v287
  %v326 = vpop.f32.mrf.mxu0
  %v327 = vadd.f32 %v283, %v326
  %v328 = vpop.f32.mrf.mxu0
  %v329 = vpop.f32.mrf.mxu0
  %v330 = vadd.f32 %v283, %v329
  %v331 = vpop.f32.mrf.mxu0
  %332 = vmatprep.mubr.bf16.mxu0 0
  %333 = vmatmul.mubr.bf16.gmra.mxu0 %v290
  %v334 = vpop.f32.mrf.mxu0
  %v335 = vadd.f32 %v283, %v334
  %v336 = vpop.f32.mrf.mxu0
  %v337 = vpop.f32.mrf.mxu0
  %v338 = vadd.f32 %v283, %v337
  %v339 = vpop.f32.mrf.mxu0
  %340 = vdwg.mxu0
  %v341 = vadd.f32 %v327, %v186
  %v342 = vadd.f32 %v330, %v187
  %v343 = vadd.f32 %v335, %v188
  %v344 = vadd.f32 %v338, %v189
  %v345 = vld [vmem:[%s10] sm:$0x1]
  %v346 = vld [vmem:[%s11] sm:$0x1]
  %v347 = vsel %vm61, %v341, 0.0
  %v348 = vsel %vm61, %v342, 0.0
  %v349 = vadd.f32 %v347, %v348
  %v350 = vsel %vm61, %v343, 0.0
  %v351 = vadd.f32 %v349, %v350
  %v352 = vsel %vm61, %v344, 0.0
  %v353 = vadd.f32 %v351, %v352
  %v354 = vrot.slane %v353, 4
  %v355 = vadd.f32 %v353, %v354
  %v356 = vrot.slane %v355, 2
  %v357 = vadd.f32 %v355, %v356
  %v358 = vrot.slane %v357, 1
  %v359 = vadd.f32 %v357, %v358
  %v360 = vmul.f32 %v359, %v140
  %v361 = vsub.f32 %v341, %v360
  %v362 = vsub.f32 %v342, %v360
  %v363 = vsub.f32 %v343, %v360
  %v364 = vsub.f32 %v344, %v360
  %v365 = vmul.f32 %v361, %v361
  %v366 = vmul.f32 %v362, %v362
  %v367 = vmul.f32 %v363, %v363
  %v368 = vmul.f32 %v364, %v364
  %v369 = vsel %vm61, %v365, 0.0
  %v370 = vsel %vm61, %v366, 0.0
  %v371 = vadd.f32 %v369, %v370
  %v372 = vsel %vm61, %v367, 0.0
  %v373 = vadd.f32 %v371, %v372
  %v374 = vsel %vm61, %v368, 0.0
  %v375 = vadd.f32 %v373, %v374
  %v376 = vrot.slane %v375, 4
  %v377 = vadd.f32 %v375, %v376
  %v378 = vrot.slane %v377, 2
  %v379 = vadd.f32 %v377, %v378
  %v380 = vrot.slane %v379, 1
  %v381 = vadd.f32 %v379, %v380
  %v382 = vmul.f32 %v381, %v140
  %v383 = vadd.f32 %v382, 1e-05
  %v384 = vrsqrt.pop %v383
  %v385 = vmul.f32 %v361, %v384
  %v386 = vmul.f32 %v362, %v384
  %v387 = vmul.f32 %v363, %v384
  %v388 = vmul.f32 %v364, %v384
  %v390 = vlaneseq
  %v391 = vshrl.u32 %v390, 7
  %v392 = vsub.s32 0, %v391
  %v393 = vrot.slane %v345, %v392
  %v395 = vmul.f32 %v385, %v393
  %v396 = vmul.f32 %v386, %v393
  %v397 = vmul.f32 %v387, %v393
  %v398 = vmul.f32 %v388, %v393
  %v400 = vlaneseq
  %v401 = vshrl.u32 %v400, 7
  %v402 = vsub.s32 0, %v401
  %v403 = vrot.slane %v346, %v402
  %v405 = vadd.f32 %v395, %v403
  %v406 = vadd.f32 %v396, %v403
  %v407 = vadd.f32 %v397, %v403
  %v408 = vadd.f32 %v398, %v403
  %409 = vst.msk [vmem:[%s12] sm:$0xff] %vm61, %v405
  %410 = vst.msk [vmem:[%s12 + $0x8] sm:$0xff] %vm61, %v406
  %411 = vst.msk [vmem:[%s12 + $0x10] sm:$0xff] %vm61, %v407
  %412 = vst.msk [vmem:[%s12 + $0x18] sm:$0xff] %vm61, %v408
  // Predicated region
  $region50: #{encoder_forward.18} parent=0 // pred_check
    _
  $region51: #{encoder_forward.18} parent=0 // pred_check_branch
    %414 = sbr.rel (0) target = $region53
  $region52: #{encoder_forward.18} parent=0 // pred_region
    _
  $region53: #{encoder_forward.18} parent=0 // pred_fallthru
    _
  // Predicated region
  $region54: #{encoder_forward.18} parent=0 // pred_check
    _
  $region55: #{encoder_forward.18} parent=0 // pred_check_branch
    %416 = sbr.rel (0) target = $region57
  $region56: #{encoder_forward.18} parent=0 // pred_region
    _
  $region57: #{encoder_forward.18} parent=0 // pred_fallthru
    _

// kernel: encoder_forward.17
$region0: #{encoder_forward.17}
  #allocation0 [shape = 'u32[]', space=smem, size = 0x4, offset = 0x4, fixed_abs, tag = 'smem constant byte address 0x4 - core index']
  #allocation1 [shape = 'u32[144,128]{1,0:T(1,128)}', space=vmem, size = 0x12000, scoped, tag = 'internal scratch']
  %s0 = inlined_call_operand.vmem [shape: f32[32,32], index: 0, kind: input, shape index: {}]
  %s1 = inlined_call_operand.vmem [shape: f32[32,32], index: 1, kind: input, shape index: {}]
  %s2 = inlined_call_operand.vmem [shape: f32[16,32], index: 2, kind: input, shape index: {}]
  %s3 = inlined_call_operand.vmem [shape: f32[32,4], index: 3, kind: input, shape index: {}]
  %s4 = inlined_call_operand.vmem [shape: f32[4,32], index: 4, kind: input, shape index: {}]
  %s5 = inlined_call_operand.vmem [shape: f32[32,32], index: 5, kind: input, shape index: {}]
  %s6 = inlined_call_operand.vmem [shape: f32[1,32], index: 6, kind: input, shape index: {}]
  %s7 = inlined_call_operand.vmem [shape: f32[16,32], index: 7, kind: input, shape index: {}]
  %s8 = inlined_call_operand.vmem [shape: f32[1,32], index: 8, kind: input, shape index: {}]
  %s9 = inlined_call_operand.vmem [shape: f32[1,32], index: 9, kind: input, shape index: {}]
  %s10 = inlined_call_operand.vmem [shape: f32[32,64], index: 10, kind: input, shape index: {}]
  %s11 = inlined_call_operand.vmem [shape: f32[1,64], index: 11, kind: input, shape index: {}]
  %s12 = inlined_call_operand.vmem [shape: f32[64,32], index: 12, kind: input, shape index: {}]
  %s13 = inlined_call_operand.vmem [shape: f32[1,32], index: 13, kind: input, shape index: {}]
  %s14 = inlined_call_operand.vmem [shape: f32[1,32], index: 14, kind: input, shape index: {}]
  %s15 = inlined_call_operand.vmem [shape: f32[1,32], index: 15, kind: input, shape index: {}]
  %s16 = inlined_call_operand.vmem [shape: f32[16,32], index: 16, kind: output, shape index: {}]
  %s17 = sld [smem:[#allocation0]]
  $region74: #{encoder_forward.17} parent=0
    _
  %s19 = ssub.s32 1, %s17
  %s20 = scalar_select 0, %s19, %s17
  // Predicated region
  $region2: #{encoder_forward.17} parent=0 // pred_check
    _
  $region3: #{encoder_forward.17} parent=0 // pred_check_branch
    %22 = sbr.rel (0) target = $region5
  $region4: #{encoder_forward.17} parent=0 // pred_region
    _
  $region5: #{encoder_forward.17} parent=0 // pred_fallthru
    _
  // Predicated region
  $region6: #{encoder_forward.17} parent=0 // pred_check
    _
  $region7: #{encoder_forward.17} parent=0 // pred_check_branch
    %24 = sbr.rel (0) target = $region9
  $region8: #{encoder_forward.17} parent=0 // pred_region
    _
  $region9: #{encoder_forward.17} parent=0 // pred_fallthru
    _
  // Predicated region
  $region10: #{encoder_forward.17} parent=0 // pred_check
    _
  $region11: #{encoder_forward.17} parent=0 // pred_check_branch
    %26 = sbr.rel (0) target = $region13
  $region12: #{encoder_forward.17} parent=0 // pred_region
    _
  $region13: #{encoder_forward.17} parent=0 // pred_fallthru
    _
  // Predicated region
  $region14: #{encoder_forward.17} parent=0 // pred_check
    _
  $region15: #{encoder_forward.17} parent=0 // pred_check_branch
    %28 = sbr.rel (0) target = $region17
  $region16: #{encoder_forward.17} parent=0 // pred_region
    _
  $region17: #{encoder_forward.17} parent=0 // pred_fallthru
    _
  // Predicated region
  $region18: #{encoder_forward.17} parent=0 // pred_check
    _
  $region19: #{encoder_forward.17} parent=0 // pred_check_branch
    %30 = sbr.rel (0) target = $region21
  $region20: #{encoder_forward.17} parent=0 // pred_region
    _
  $region21: #{encoder_forward.17} parent=0 // pred_fallthru
    _
  // Predicated region
  $region22: #{encoder_forward.17} parent=0 // pred_check
    _
  $region23: #{encoder_forward.17} parent=0 // pred_check_branch
    %32 = sbr.rel (0) target = $region25
  $region24: #{encoder_forward.17} parent=0 // pred_region
    _
  $region25: #{encoder_forward.17} parent=0 // pred_fallthru
    _
  // Predicated region
  $region26: #{encoder_forward.17} parent=0 // pred_check
    _
  $region27: #{encoder_forward.17} parent=0 // pred_check_branch
    %34 = sbr.rel (0) target = $region29
  $region28: #{encoder_forward.17} parent=0 // pred_region
    _
  $region29: #{encoder_forward.17} parent=0 // pred_fallthru
    _
  // Predicated region
  $region30: #{encoder_forward.17} parent=0 // pred_check
    _
  $region31: #{encoder_forward.17} parent=0 // pred_check_branch
    %36 = sbr.rel (0) target = $region33
  $region32: #{encoder_forward.17} parent=0 // pred_region
    _
  $region33: #{encoder_forward.17} parent=0 // pred_fallthru
    _
  // Predicated region
  $region34: #{encoder_forward.17} parent=0 // pred_check
    _
  $region35: #{encoder_forward.17} parent=0 // pred_check_branch
    %38 = sbr.rel (0) target = $region37
  $region36: #{encoder_forward.17} parent=0 // pred_region
    _
  $region37: #{encoder_forward.17} parent=0 // pred_fallthru
    _
  // Predicated region
  $region38: #{encoder_forward.17} parent=0 // pred_check
    _
  $region39: #{encoder_forward.17} parent=0 // pred_check_branch
    %40 = sbr.rel (0) target = $region41
  $region40: #{encoder_forward.17} parent=0 // pred_region
    _
  $region41: #{encoder_forward.17} parent=0 // pred_fallthru
    _
  // Predicated region
  $region42: #{encoder_forward.17} parent=0 // pred_check
    _
  $region43: #{encoder_forward.17} parent=0 // pred_check_branch
    %42 = sbr.rel (0) target = $region45
  $region44: #{encoder_forward.17} parent=0 // pred_region
    _
  $region45: #{encoder_forward.17} parent=0 // pred_fallthru
    _
  // Predicated region
  $region46: #{encoder_forward.17} parent=0 // pred_check
    _
  $region47: #{encoder_forward.17} parent=0 // pred_check_branch
    %44 = sbr.rel (0) target = $region49
  $region48: #{encoder_forward.17} parent=0 // pred_region
    _
  $region49: #{encoder_forward.17} parent=0 // pred_fallthru
    _
  // Predicated region
  $region50: #{encoder_forward.17} parent=0 // pred_check
    _
  $region51: #{encoder_forward.17} parent=0 // pred_check_branch
    %46 = sbr.rel (0) target = $region53
  $region52: #{encoder_forward.17} parent=0 // pred_region
    _
  $region53: #{encoder_forward.17} parent=0 // pred_fallthru
    _
  // Predicated region
  $region54: #{encoder_forward.17} parent=0 // pred_check
    _
  $region55: #{encoder_forward.17} parent=0 // pred_check_branch
    %48 = sbr.rel (0) target = $region57
  $region56: #{encoder_forward.17} parent=0 // pred_region
    _
  $region57: #{encoder_forward.17} parent=0 // pred_fallthru
    _
  // Predicated region
  $region58: #{encoder_forward.17} parent=0 // pred_check
    _
  $region59: #{encoder_forward.17} parent=0 // pred_check_branch
    %50 = sbr.rel (0) target = $region61
  $region60: #{encoder_forward.17} parent=0 // pred_region
    _
  $region61: #{encoder_forward.17} parent=0 // pred_fallthru
    _
  // Predicated region
  $region62: #{encoder_forward.17} parent=0 // pred_check
    _
  $region63: #{encoder_forward.17} parent=0 // pred_check_branch
    %52 = sbr.rel (0) target = $region65
  $region64: #{encoder_forward.17} parent=0 // pred_region
    _
  $region65: #{encoder_forward.17} parent=0 // pred_fallthru
    _
  %v54 = vld [vmem:[%s0] sm:$0xff]
  %v55 = vld [vmem:[%s0 + $0x8] sm:$0xff]
  %v56 = vld [vmem:[%s0 + $0x10] sm:$0xff]
  %v57 = vld [vmem:[%s0 + $0x18] sm:$0xff]
  %v58 = vld [vmem:[%s3] sm:$0xff]
  %v59 = vld [vmem:[%s3 + $0x8] sm:$0xff]
  %v60 = vld [vmem:[%s3 + $0x10] sm:$0xff]
  %v61 = vld [vmem:[%s3 + $0x18] sm:$0xff]
  %vm62 = vcmask 261120
  %v64 = vsel %vm62, %v54, 0
  %v67 = vsel %vm62, %v55, 0
  %v70 = vsel %vm62, %v56, 0
  %v73 = vsel %vm62, %v57, 0
  %75 = vmatprep.subr.mxu0 0.0
  %76 = vmatpush1.msra.mxu0 0.0
  %77 = vmatprep.subr.mxu0 0.0
  %78 = vmatpush1.msra.mxu0 0.0
  %79 = vmatprep.subr.mxu0 0.0
  %80 = vmatpush1.msra.mxu0 0.0
  %81 = vmatprep.subr.mxu0 0.0
  %82 = vmatpush1.msra.mxu0 0.0
  %83 = vmatprep.subr.mxu0 0.0
  %84 = vmatpush1.msra.mxu0 0.0
  %85 = vmatprep.subr.mxu0 0.0
  %86 = vmatpush1.msra.mxu0 0.0
  %87 = vmatprep.subr.mxu0 0.0
  %88 = vmatpush1.msra.mxu0 0.0
  %89 = vmatprep.subr.mxu0 0.0
  %90 = vmatpush1.msra.mxu0 0.0
  %91 = vmatprep.subr.mxu0 0.0
  %92 = vmatpush1.msra.mxu0 0.0
  %93 = vmatprep.subr.mxu0 0.0
  %94 = vmatpush1.msra.mxu0 0.0
  %95 = vmatprep.subr.mxu0 0.0
  %96 = vmatpush1.msra.mxu0 0.0
  %97 = vmatprep.subr.mxu0 0.0
  %98 = vmatpush1.msra.mxu0 0.0
  %99 = vmatprep.subr.mxu0 0.0
  %100 = vmatpush1.msra.mxu0 %v61
  %101 = vmatprep.subr.mxu0 0.0
  %102 = vmatpush1.msra.mxu0 %v60
  %103 = vmatprep.subr.mxu0 0.0
  %104 = vmatpush1.msra.mxu0 %v59
  %105 = vmatprep.subr.mxu0 0.0
  %106 = vmatpush1.msra.mxu0 %v58
  %107 = vmatprep.subr.mxu0 0.0
  %108 = vmatpush2.msra.mxu0 0.0
  %109 = vmatprep.subr.mxu0 0.0
  %110 = vmatpush2.msra.mxu0 0.0
  %111 = vmatprep.subr.mxu0 0.0
  %112 = vmatpush2.msra.mxu0 0.0
  %113 = vmatprep.subr.mxu0 0.0
  %114 = vmatpush2.msra.mxu0 0.0
  %115 = vmatprep.subr.mxu0 0.0
  %116 = vmatpush2.msra.mxu0 0.0
  %117 = vmatprep.subr.mxu0 0.0
  %118 = vmatpush2.msra.mxu0 0.0
  %119 = vmatprep.subr.mxu0 0.0
  %120 = vmatpush2.msra.mxu0 0.0
  %121 = vmatprep.subr.mxu0 0.0
  %122 = vmatpush2.msra.mxu0 0.0
  %123 = vmatprep.subr.mxu0 0.0
  %124 = vmatpush2.msra.mxu0 0.0
  %125 = vmatprep.subr.mxu0 0.0
  %126 = vmatpush2.msra.mxu0 0.0
  %127 = vmatprep.subr.mxu0 0.0
  %128 = vmatpush2.msra.mxu0 0.0
  %129 = vmatprep.subr.mxu0 0.0
  %130 = vmatpush2.msra.mxu0 0.0
  %131 = vmatprep.subr.mxu0 0.0
  %132 = vmatpush2.msra.mxu0 0.0
  %133 = vmatprep.subr.mxu0 0.0
  %134 = vmatpush2.msra.mxu0 0.0
  %135 = vmatprep.subr.mxu0 0.0
  %136 = vmatpush2.msra.mxu0 0.0
  %137 = vmatprep.subr.mxu0 0.0
  %138 = vmatpush2.msra.mxu0 0.0
  %139 = vmatprep.mubr.f32.mxu0 0.0
  %140 = vmatmul.mubr.f32.gmra.mxu0 %v64
  %v141 = vpop.f32.mrf.mxu0
  %v142 = vadd.f32 0.0, %v141
  %v143 = vpop.f32.mrf.mxu0
  %144 = vmatprep.mubr.f32.mxu0 0.0
  %145 = vmatmul.mubr.f32.gmra.mxu0 %v67
  %v146 = vpop.f32.mrf.mxu0
  %v147 = vadd.f32 0.0, %v146
  %v148 = vpop.f32.mrf.mxu0
  %149 = vmatprep.mubr.f32.mxu0 0.0
  %150 = vmatmul.mubr.f32.gmra.mxu0 %v70
  %v151 = vpop.f32.mrf.mxu0
  %v152 = vadd.f32 0.0, %v151
  %v153 = vpop.f32.mrf.mxu0
  %154 = vmatprep.mubr.f32.mxu0 0.0
  %155 = vmatmul.mubr.f32.gmra.mxu0 %v73
  %v156 = vpop.f32.mrf.mxu0
  %v157 = vadd.f32 0.0, %v156
  %v158 = vpop.f32.mrf.mxu0
  %159 = vdwg.mxu0
  %vm160 = vcmask 31744
  %v161 = vsel %vm160, %v142, -inf
  %v162 = vsel %vm160, %v147, -inf
  %v163 = vsel %vm160, %v152, -inf
  %v164 = vsel %vm160, %v157, -inf
  %v165 = vmax.f32 %v161, %v162
  %v166 = vmax.f32 %v163, %v164
  %v167 = vmax.f32 %v165, %v166
  %v168 = vrot.slane %v167, 4
  %v169 = vmax.f32 %v167, %v168
  %v170 = vrot.slane %v169, 2
  %v171 = vmax.f32 %v169, %v170
  %v172 = vrot.slane %v171, 1
  %v173 = vmax.f32 %v171, %v172
  %v174 = vsub.f32 %v142, %v173
  %v175 = vsub.f32 %v147, %v173
  %v176 = vsub.f32 %v152, %v173
  %v177 = vsub.f32 %v157, %v173
  %v178 = vmul.f32 %v174, 1.442695
  %v179 = vpow.pop %v178
  %v180 = vmul.f32 %v175, 1.442695
  %v181 = vpow.pop %v180
  %v182 = vmul.f32 %v176, 1.442695
  %v183 = vpow.pop %v182
  %v184 = vmul.f32 %v177, 1.442695
  %v185 = vpow.pop %v184
  %v186 = vld [vmem:[%s4] sm:$0xf]
  %v188 = vsel %vm160, %v179, 0
  %v191 = vsel %vm160, %v181, 0
  %v194 = vsel %vm160, %v183, 0
  %v197 = vsel %vm160, %v185, 0
  %vm199 = vcmask 1043456
  %v201 = vsel %vm199, %v186, 0
  %203 = vmatprep.subr.mxu0 0.0
  %204 = vmatpush1.msra.mxu0 0.0
  %205 = vmatprep.subr.mxu0 0.0
  %206 = vmatpush1.msra.mxu0 0.0
  %207 = vmatprep.subr.mxu0 0.0
  %208 = vmatpush1.msra.mxu0 0.0
  %209 = vmatprep.subr.mxu0 0.0
  %210 = vmatpush1.msra.mxu0 0.0
  %211 = vmatprep.subr.mxu0 0.0
  %212 = vmatpush1.msra.mxu0 0.0
  %213 = vmatprep.subr.mxu0 0.0
  %214 = vmatpush1.msra.mxu0 0.0
  %215 = vmatprep.subr.mxu0 0.0
  %216 = vmatpush1.msra.mxu0 0.0
  %217 = vmatprep.subr.mxu0 0.0
  %218 = vmatpush1.msra.mxu0 0.0
  %219 = vmatprep.subr.mxu0 0.0
  %220 = vmatpush1.msra.mxu0 0.0
  %221 = vmatprep.subr.mxu0 0.0
  %222 = vmatpush1.msra.mxu0 0.0
  %223 = vmatprep.subr.mxu0 0.0
  %224 = vmatpush1.msra.mxu0 0.0
  %225 = vmatprep.subr.mxu0 0.0
  %226 = vmatpush1.msra.mxu0 0.0
  %227 = vmatprep.subr.mxu0 0.0
  %228 = vmatpush1.msra.mxu0 0.0
  %229 = vmatprep.subr.mxu0 0.0
  %230 = vmatpush1.msra.mxu0 0.0
  %231 = vmatprep.subr.mxu0 0.0
  %232 = vmatpush1.msra.mxu0 0.0
  %233 = vmatprep.subr.mxu0 0.0
  %234 = vmatpush1.msra.mxu0 %v201
  %235 = vmatprep.subr.mxu0 0.0
  %236 = vmatpush2.msra.mxu0 0.0
  %237 = vmatprep.subr.mxu0 0.0
  %238 = vmatpush2.msra.mxu0 0.0
  %239 = vmatprep.subr.mxu0 0.0
  %240 = vmatpush2.msra.mxu0 0.0
  %241 = vmatprep.subr.mxu0 0.0
  %242 = vmatpush2.msra.mxu0 0.0
  %243 = vmatprep.subr.mxu0 0.0
  %244 = vmatpush2.msra.mxu0 0.0
  %245 = vmatprep.subr.mxu0 0.0
  %246 = vmatpush2.msra.mxu0 0.0
  %247 = vmatprep.subr.mxu0 0.0
  %248 = vmatpush2.msra.mxu0 0.0
  %249 = vmatprep.subr.mxu0 0.0
  %250 = vmatpush2.msra.mxu0 0.0
  %251 = vmatprep.subr.mxu0 0.0
  %252 = vmatpush2.msra.mxu0 0.0
  %253 = vmatprep.subr.mxu0 0.0
  %254 = vmatpush2.msra.mxu0 0.0
  %255 = vmatprep.subr.mxu0 0.0
  %256 = vmatpush2.msra.mxu0 0.0
  %257 = vmatprep.subr.mxu0 0.0
  %258 = vmatpush2.msra.mxu0 0.0
  %259 = vmatprep.subr.mxu0 0.0
  %260 = vmatpush2.msra.mxu0 0.0
  %261 = vmatprep.subr.mxu0 0.0
  %262 = vmatpush2.msra.mxu0 0.0
  %263 = vmatprep.subr.mxu0 0.0
  %264 = vmatpush2.msra.mxu0 0.0
  %265 = vmatprep.subr.mxu0 0.0
  %266 = vmatpush2.msra.mxu0 0.0
  %267 = vmatprep.mubr.f32.mxu0 0.0
  %268 = vmatmul.mubr.f32.gmra.mxu0 %v188
  %v269 = vpop.f32.mrf.mxu0
  %v270 = vadd.f32 0.0, %v269
  %v271 = vpop.f32.mrf.mxu0
  %272 = vmatprep.mubr.f32.mxu0 0.0
  %273 = vmatmul.mubr.f32.gmra.mxu0 %v191
  %v274 = vpop.f32.mrf.mxu0
  %v275 = vadd.f32 0.0, %v274
  %v276 = vpop.f32.mrf.mxu0
  %277 = vmatprep.mubr.f32.mxu0 0.0
  %278 = vmatmul.mubr.f32.gmra.mxu0 %v194
  %v279 = vpop.f32.mrf.mxu0
  %v280 = vadd.f32 0.0, %v279
  %v281 = vpop.f32.mrf.mxu0
  %282 = vmatprep.mubr.f32.mxu0 0.0
  %283 = vmatmul.mubr.f32.gmra.mxu0 %v197
  %v284 = vpop.f32.mrf.mxu0
  %v285 = vadd.f32 0.0, %v284
  %v286 = vpop.f32.mrf.mxu0
  %287 = vdwg.mxu0
  %v288 = vld [vmem:[%s1] sm:$0xff]
  %v289 = vld [vmem:[%s1 + $0x8] sm:$0xff]
  %v290 = vld [vmem:[%s1 + $0x10] sm:$0xff]
  %v291 = vld [vmem:[%s1 + $0x18] sm:$0xff]
  %v292 = vmul.f32 %v270, %v288
  %v293 = vmul.f32 %v275, %v289
  %v294 = vmul.f32 %v280, %v290
  %v295 = vmul.f32 %v285, %v291
  %v296 = vld [vmem:[%s2] sm:$0xff]
  %v297 = vld [vmem:[%s2 + $0x8] sm:$0xff]
  %v299 = vsel %vm62, %v296, 0
  %v302 = vsel %vm62, %v297, 0
  %304 = vmatprep.subr.mxu0 0.0
  %305 = vmatpush1.msra.mxu0 0.0
  %306 = vmatprep.subr.mxu0 0.0
  %307 = vmatpush1.msra.mxu0 0.0
  %308 = vmatprep.subr.mxu0 0.0
  %309 = vmatpush1.msra.mxu0 0.0
  %310 = vmatprep.subr.mxu0 0.0
  %311 = vmatpush1.msra.mxu0 0.0
  %312 = vmatprep.subr.mxu0 0.0
  %313 = vmatpush1.msra.mxu0 0.0
  %314 = vmatprep.subr.mxu0 0.0
  %315 = vmatpush1.msra.mxu0 0.0
  %316 = vmatprep.subr.mxu0 0.0
  %317 = vmatpush1.msra.mxu0 0.0
  %318 = vmatprep.subr.mxu0 0.0
  %319 = vmatpush1.msra.mxu0 0.0
  %320 = vmatprep.subr.mxu0 0.0
  %321 = vmatpush1.msra.mxu0 0.0
  %322 = vmatprep.subr.mxu0 0.0
  %323 = vmatpush1.msra.mxu0 0.0
  %324 = vmatprep.subr.mxu0 0.0
  %325 = vmatpush1.msra.mxu0 0.0
  %326 = vmatprep.subr.mxu0 0.0
  %327 = vmatpush1.msra.mxu0 0.0
  %328 = vmatprep.subr.mxu0 0.0
  %329 = vmatpush1.msra.mxu0 %v185
  %330 = vmatprep.subr.mxu0 0.0
  %331 = vmatpush1.msra.mxu0 %v183
  %332 = vmatprep.subr.mxu0 0.0
  %333 = vmatpush1.msra.mxu0 %v181
  %334 = vmatprep.subr.mxu0 0.0
  %335 = vmatpush1.msra.mxu0 %v179
  %336 = vmatprep.subr.mxu0 0.0
  %337 = vmatpush2.msra.mxu0 0.0
  %338 = vmatprep.subr.mxu0 0.0
  %339 = vmatpush2.msra.mxu0 0.0
  %340 = vmatprep.subr.mxu0 0.0
  %341 = vmatpush2.msra.mxu0 0.0
  %342 = vmatprep.subr.mxu0 0.0
  %343 = vmatpush2.msra.mxu0 0.0
  %344 = vmatprep.subr.mxu0 0.0
  %345 = vmatpush2.msra.mxu0 0.0
  %346 = vmatprep.subr.mxu0 0.0
  %347 = vmatpush2.msra.mxu0 0.0
  %348 = vmatprep.subr.mxu0 0.0
  %349 = vmatpush2.msra.mxu0 0.0
  %350 = vmatprep.subr.mxu0 0.0
  %351 = vmatpush2.msra.mxu0 0.0
  %352 = vmatprep.subr.mxu0 0.0
  %353 = vmatpush2.msra.mxu0 0.0
  %354 = vmatprep.subr.mxu0 0.0
  %355 = vmatpush2.msra.mxu0 0.0
  %356 = vmatprep.subr.mxu0 0.0
  %357 = vmatpush2.msra.mxu0 0.0
  %358 = vmatprep.subr.mxu0 0.0
  %359 = vmatpush2.msra.mxu0 0.0
  %360 = vmatprep.subr.mxu0 0.0
  %361 = vmatpush2.msra.mxu0 0.0
  %362 = vmatprep.subr.mxu0 0.0
  %363 = vmatpush2.msra.mxu0 0.0
  %364 = vmatprep.subr.mxu0 0.0
  %365 = vmatpush2.msra.mxu0 0.0
  %366 = vmatprep.subr.mxu0 0.0
  %367 = vmatpush2.msra.mxu0 0.0
  %368 = vmatprep.mubr.f32.mxu0 0.0
  %369 = vmatmul.mubr.f32.gmra.mxu0 %v299
  %v370 = vpop.f32.mrf.mxu0
  %v371 = vadd.f32 0.0, %v370
  %v372 = vpop.f32.mrf.mxu0
  %373 = vmatprep.mubr.f32.mxu0 0.0
  %374 = vmatmul.mubr.f32.gmra.mxu0 %v302
  %v375 = vpop.f32.mrf.mxu0
  %v376 = vadd.f32 0.0, %v375
  %v377 = vpop.f32.mrf.mxu0
  %378 = vdwg.mxu0
  %379 = vmatprep.subr.mxu0 0.0
  %380 = vmatpush1.msra.mxu0 0.0
  %381 = vmatprep.subr.mxu0 0.0
  %382 = vmatpush1.msra.mxu0 0.0
  %383 = vmatprep.subr.mxu0 0.0
  %384 = vmatpush1.msra.mxu0 0.0
  %385 = vmatprep.subr.mxu0 0.0
  %386 = vmatpush1.msra.mxu0 0.0
  %387 = vmatprep.subr.mxu0 0.0
  %388 = vmatpush1.msra.mxu0 0.0
  %389 = vmatprep.subr.mxu0 0.0
  %390 = vmatpush1.msra.mxu0 0.0
  %391 = vmatprep.subr.mxu0 0.0
  %392 = vmatpush1.msra.mxu0 0.0
  %393 = vmatprep.subr.mxu0 0.0
  %394 = vmatpush1.msra.mxu0 0.0
  %395 = vmatprep.subr.mxu0 0.0
  %396 = vmatpush1.msra.mxu0 0.0
  %397 = vmatprep.subr.mxu0 0.0
  %398 = vmatpush1.msra.mxu0 0.0
  %399 = vmatprep.subr.mxu0 0.0
  %400 = vmatpush1.msra.mxu0 0.0
  %401 = vmatprep.subr.mxu0 0.0
  %402 = vmatpush1.msra.mxu0 0.0
  %403 = vmatprep.subr.mxu0 0.0
  %404 = vmatpush1.msra.mxu0 %v295
  %405 = vmatprep.subr.mxu0 0.0
  %406 = vmatpush1.msra.mxu0 %v294
  %407 = vmatprep.subr.mxu0 0.0
  %408 = vmatpush1.msra.mxu0 %v293
  %409 = vmatprep.subr.mxu0 0.0
  %410 = vmatpush1.msra.mxu0 %v292
  %411 = vmatprep.subr.mxu0 0.0
  %412 = vmatpush2.msra.mxu0 0.0
  %413 = vmatprep.subr.mxu0 0.0
  %414 = vmatpush2.msra.mxu0 0.0
  %415 = vmatprep.subr.mxu0 0.0
  %416 = vmatpush2.msra.mxu0 0.0
  %417 = vmatprep.subr.mxu0 0.0
  %418 = vmatpush2.msra.mxu0 0.0
  %419 = vmatprep.subr.mxu0 0.0
  %420 = vmatpush2.msra.mxu0 0.0
  %421 = vmatprep.subr.mxu0 0.0
  %422 = vmatpush2.msra.mxu0 0.0
  %423 = vmatprep.subr.mxu0 0.0
  %424 = vmatpush2.msra.mxu0 0.0
  %425 = vmatprep.subr.mxu0 0.0
  %426 = vmatpush2.msra.mxu0 0.0
  %427 = vmatprep.subr.mxu0 0.0
  %428 = vmatpush2.msra.mxu0 0.0
  %429 = vmatprep.subr.mxu0 0.0
  %430 = vmatpush2.msra.mxu0 0.0
  %431 = vmatprep.subr.mxu0 0.0
  %432 = vmatpush2.msra.mxu0 0.0
  %433 = vmatprep.subr.mxu0 0.0
  %434 = vmatpush2.msra.mxu0 0.0
  %435 = vmatprep.subr.mxu0 0.0
  %436 = vmatpush2.msra.mxu0 0.0
  %437 = vmatprep.subr.mxu0 0.0
  %438 = vmatpush2.msra.mxu0 0.0
  %439 = vmatprep.subr.mxu0 0.0
  %440 = vmatpush2.msra.mxu0 0.0
  %441 = vmatprep.subr.mxu0 0.0
  %442 = vmatpush2.msra.mxu0 0.0
  %443 = vmatprep.mubr.f32.mxu0 0.0
  %444 = vmatmul.mubr.f32.gmra.mxu0 %v299
  %v445 = vpop.f32.mrf.mxu0
  %v446 = vadd.f32 0.0, %v445
  %v447 = vpop.f32.mrf.mxu0
  %448 = vmatprep.mubr.f32.mxu0 0.0
  %449 = vmatmul.mubr.f32.gmra.mxu0 %v302
  %v450 = vpop.f32.mrf.mxu0
  %v451 = vadd.f32 0.0, %v450
  %v452 = vpop.f32.mrf.mxu0
  %453 = vdwg.mxu0
  %vm454 = vcmp.gt.f32.partialorder %v371, 0.0
  %vm455 = vcmp.gt.f32.partialorder %v376, 0.0
  %v456 = vrcp.pop %v371
  %v457 = vrcp.pop %v376
  %v458 = vsel %vm454, %v456, 0.0
  %v459 = vsel %vm455, %v457, 0.0
  %v461 = vsel %vm160, %v458, 0
  %v464 = vsel %vm160, %v459, 0
  %466 = vmatprep.subr.mxu0 0.0
  %467 = vmatpush1.msra.mxu0 0.0
  %468 = vmatprep.subr.mxu0 0.0
  %469 = vmatpush1.msra.mxu0 0.0
  %470 = vmatprep.subr.mxu0 0.0
  %471 = vmatpush1.msra.mxu0 0.0
  %472 = vmatprep.subr.mxu0 0.0
  %473 = vmatpush1.msra.mxu0 0.0
  %474 = vmatprep.subr.mxu0 0.0
  %475 = vmatpush1.msra.mxu0 0.0
  %476 = vmatprep.subr.mxu0 0.0
  %477 = vmatpush1.msra.mxu0 0.0
  %478 = vmatprep.subr.mxu0 0.0
  %479 = vmatpush1.msra.mxu0 0.0
  %480 = vmatprep.subr.mxu0 0.0
  %481 = vmatpush1.msra.mxu0 0.0
  %482 = vmatprep.subr.mxu0 0.0
  %483 = vmatpush1.msra.mxu0 0.0
  %484 = vmatprep.subr.mxu0 0.0
  %485 = vmatpush1.msra.mxu0 0.0
  %486 = vmatprep.subr.mxu0 0.0
  %487 = vmatpush1.msra.mxu0 0.0
  %488 = vmatprep.subr.mxu0 0.0
  %489 = vmatpush1.msra.mxu0 0.0
  %490 = vmatprep.subr.mxu0 0.0
  %491 = vmatpush1.msra.mxu0 0.0
  %492 = vmatprep.subr.mxu0 0.0
  %493 = vmatpush1.msra.mxu0 0.0
  %494 = vmatprep.subr.mxu0 0.0
  %495 = vmatpush1.msra.mxu0 0.0
  %496 = vmatprep.subr.mxu0 0.0
  %497 = vmatpush1.msra.mxu0 %v201
  %498 = vmatprep.subr.mxu0 0.0
  %499 = vmatpush2.msra.mxu0 0.0
  %500 = vmatprep.subr.mxu0 0.0
  %501 = vmatpush2.msra.mxu0 0.0
  %502 = vmatprep.subr.mxu0 0.0
  %503 = vmatpush2.msra.mxu0 0.0
  %504 = vmatprep.subr.mxu0 0.0
  %505 = vmatpush2.msra.mxu0 0.0
  %506 = vmatprep.subr.mxu0 0.0
  %507 = vmatpush2.msra.mxu0 0.0
  %508 = vmatprep.subr.mxu0 0.0
  %509 = vmatpush2.msra.mxu0 0.0
  %510 = vmatprep.subr.mxu0 0.0
  %511 = vmatpush2.msra.mxu0 0.0
  %512 = vmatprep.subr.mxu0 0.0
  %513 = vmatpush2.msra.mxu0 0.0
  %514 = vmatprep.subr.mxu0 0.0
  %515 = vmatpush2.msra.mxu0 0.0
  %516 = vmatprep.subr.mxu0 0.0
  %517 = vmatpush2.msra.mxu0 0.0
  %518 = vmatprep.subr.mxu0 0.0
  %519 = vmatpush2.msra.mxu0 0.0
  %520 = vmatprep.subr.mxu0 0.0
  %521 = vmatpush2.msra.mxu0 0.0
  %522 = vmatprep.subr.mxu0 0.0
  %523 = vmatpush2.msra.mxu0 0.0
  %524 = vmatprep.subr.mxu0 0.0
  %525 = vmatpush2.msra.mxu0 0.0
  %526 = vmatprep.subr.mxu0 0.0
  %527 = vmatpush2.msra.mxu0 0.0
  %528 = vmatprep.subr.mxu0 0.0
  %529 = vmatpush2.msra.mxu0 0.0
  %530 = vmatprep.mubr.f32.mxu0 0.0
  %531 = vmatmul.mubr.f32.gmra.mxu0 %v461
  %v532 = vpop.f32.mrf.mxu0
  %v533 = vadd.f32 0.0, %v532
  %v534 = vpop.f32.mrf.mxu0
  %535 = vmatprep.mubr.f32.mxu0 0.0
  %536 = vmatmul.mubr.f32.gmra.mxu0 %v464
  %v537 = vpop.f32.mrf.mxu0
  %v538 = vadd.f32 0.0, %v537
  %v539 = vpop.f32.mrf.mxu0
  %540 = vdwg.mxu0
  %v541 = vmul.f32 %v446, %v533
  %v542 = vmul.f32 %v451, %v538
  %v543 = vld [vmem:[%s5] sm:$0xff]
  %v544 = vld [vmem:[%s5 + $0x8] sm:$0xff]
  %v545 = vld [vmem:[%s5 + $0x10] sm:$0xff]
  %v546 = vld [vmem:[%s5 + $0x18] sm:$0xff]
  %v547 = vpack.c.bf16 %v542, %v541
  %v548 = vpack.c.bf16 %v544, %v543
  %v549 = vpack.c.bf16 %v546, %v545
  %v550 = vld [vmem:[%s6] sm:$0x1]
  %v552 = vlaneseq
  %v553 = vshrl.u32 %v552, 7
  %v554 = vsub.s32 0, %v553
  %v555 = vrot.slane %v550, %v554
  %v558 = vsel %vm62, %v547, 0
  %560 = vmatprep.subr.bf16.mxu0 0
  %561 = vmatpush1.bf16.msra.mxu0 0
  %562 = vmatprep.subr.bf16.mxu0 0
  %563 = vmatpush1.bf16.msra.mxu0 0
  %564 = vmatprep.subr.bf16.mxu0 0
  %565 = vmatpush1.bf16.msra.mxu0 0
  %566 = vmatprep.subr.bf16.mxu0 0
  %567 = vmatpush1.bf16.msra.mxu0 0
  %568 = vmatprep.subr.bf16.mxu0 0
  %569 = vmatpush1.bf16.msra.mxu0 0
  %570 = vmatprep.subr.bf16.mxu0 0
  %571 = vmatpush1.bf16.msra.mxu0 0
  %572 = vmatprep.subr.bf16.mxu0 0
  %573 = vmatpush1.bf16.msra.mxu0 %v549
  %574 = vmatprep.subr.bf16.mxu0 0
  %575 = vmatpush1.bf16.msra.mxu0 %v548
  %576 = vmatprep.subr.bf16.mxu0 0
  %577 = vmatpush2.bf16.msra.mxu0 0
  %578 = vmatprep.subr.bf16.mxu0 0
  %579 = vmatpush2.bf16.msra.mxu0 0
  %580 = vmatprep.subr.bf16.mxu0 0
  %581 = vmatpush2.bf16.msra.mxu0 0
  %582 = vmatprep.subr.bf16.mxu0 0
  %583 = vmatpush2.bf16.msra.mxu0 0
  %584 = vmatprep.subr.bf16.mxu0 0
  %585 = vmatpush2.bf16.msra.mxu0 0
  %586 = vmatprep.subr.bf16.mxu0 0
  %587 = vmatpush2.bf16.msra.mxu0 0
  %588 = vmatprep.subr.bf16.mxu0 0
  %589 = vmatpush2.bf16.msra.mxu0 0
  %590 = vmatprep.subr.bf16.mxu0 0
  %591 = vmatpush2.bf16.msra.mxu0 0
  %592 = vmatprep.mubr.bf16.mxu0 0
  %593 = vmatmul.mubr.bf16.gmra.mxu0 %v558
  %v594 = vpop.f32.mrf.mxu0
  %v595 = vadd.f32 %v555, %v594
  %v596 = vpop.f32.mrf.mxu0
  %v597 = vpop.f32.mrf.mxu0
  %v598 = vadd.f32 %v555, %v597
  %v599 = vpop.f32.mrf.mxu0
  %600 = vdwg.mxu0
  %v601 = vld [vmem:[%s7] sm:$0xff]
  %v602 = vld [vmem:[%s7 + $0x8] sm:$0xff]
  %v603 = vadd.f32 %v595, %v601
  %v604 = vadd.f32 %v598, %v602
  %v605 = vld [vmem:[%s8] sm:$0x1]
  %v606 = vld [vmem:[%s9] sm:$0x1]
  %v607 = vsel %vm62, %v603, 0.0
  %v608 = vsel %vm62, %v604, 0.0
  %v609 = vadd.f32 %v607, %v608
  %v610 = vrot.slane %v609, 4
  %v611 = vadd.f32 %v609, %v610
  %v612 = vrot.slane %v611, 2
  %v613 = vadd.f32 %v611, %v612
  %v614 = vrot.slane %v613, 1
  %v615 = vadd.f32 %v613, %v614
  %v616 = vrcp.pop 16.0
  %v617 = vmul.f32 %v615, %v616
  %v618 = vsub.f32 %v603, %v617
  %v619 = vsub.f32 %v604, %v617
  %v620 = vmul.f32 %v618, %v618
  %v621 = vmul.f32 %v619, %v619
  %v622 = vsel %vm62, %v620, 0.0
  %v623 = vsel %vm62, %v621, 0.0
  %v624 = vadd.f32 %v622, %v623
  %v625 = vrot.slane %v624, 4
  %v626 = vadd.f32 %v624, %v625
  %v627 = vrot.slane %v626, 2
  %v628 = vadd.f32 %v626, %v627
  %v629 = vrot.slane %v628, 1
  %v630 = vadd.f32 %v628, %v629
  %v631 = vmul.f32 %v630, %v616
  %v632 = vadd.f32 %v631, 1e-05
  %v633 = vrsqrt.pop %v632
  %v634 = vmul.f32 %v618, %v633
  %v635 = vmul.f32 %v619, %v633
  %v637 = vlaneseq
  %v638 = vshrl.u32 %v637, 7
  %v639 = vsub.s32 0, %v638
  %v640 = vrot.slane %v605, %v639
  %v642 = vmul.f32 %v634, %v640
  %v643 = vmul.f32 %v635, %v640
  %v645 = vlaneseq
  %v646 = vshrl.u32 %v645, 7
  %v647 = vsub.s32 0, %v646
  %v648 = vrot.slane %v606, %v647
  %v650 = vadd.f32 %v642, %v648
  %v651 = vadd.f32 %v643, %v648
  %v652 = vld [vmem:[%s10] sm:$0xff]
  %v653 = vld [vmem:[%s10 + $0x8] sm:$0xff]
  %v654 = vld [vmem:[%s10 + $0x10] sm:$0xff]
  %v655 = vld [vmem:[%s10 + $0x18] sm:$0xff]
  %v656 = vpack.c.bf16 %v651, %v650
  %v657 = vpack.c.bf16 %v653, %v652
  %v658 = vpack.c.bf16 %v655, %v654
  %v659 = vld [vmem:[%s11] sm:$0x1]
  %v661 = vlaneseq
  %v662 = vshrl.u32 %v661, 7
  %v663 = vsub.s32 0, %v662
  %v664 = vrot.slane %v659, %v663
  %v667 = vsel %vm62, %v656, 0
  %669 = vmatprep.subr.bf16.mxu0 0
  %670 = vmatpush1.bf16.msra.mxu0 0
  %671 = vmatprep.subr.bf16.mxu0 0
  %672 = vmatpush1.bf16.msra.mxu0 0
  %673 = vmatprep.subr.bf16.mxu0 0
  %674 = vmatpush1.bf16.msra.mxu0 0
  %675 = vmatprep.subr.bf16.mxu0 0
  %676 = vmatpush1.bf16.msra.mxu0 0
  %677 = vmatprep.subr.bf16.mxu0 0
  %678 = vmatpush1.bf16.msra.mxu0 0
  %679 = vmatprep.subr.bf16.mxu0 0
  %680 = vmatpush1.bf16.msra.mxu0 0
  %681 = vmatprep.subr.bf16.mxu0 0
  %682 = vmatpush1.bf16.msra.mxu0 %v658
  %683 = vmatprep.subr.bf16.mxu0 0
  %684 = vmatpush1.bf16.msra.mxu0 %v657
  %685 = vmatprep.subr.bf16.mxu0 0
  %686 = vmatpush2.bf16.msra.mxu0 0
  %687 = vmatprep.subr.bf16.mxu0 0
  %688 = vmatpush2.bf16.msra.mxu0 0
  %689 = vmatprep.subr.bf16.mxu0 0
  %690 = vmatpush2.bf16.msra.mxu0 0
  %691 = vmatprep.subr.bf16.mxu0 0
  %692 = vmatpush2.bf16.msra.mxu0 0
  %693 = vmatprep.subr.bf16.mxu0 0
  %694 = vmatpush2.bf16.msra.mxu0 0
  %695 = vmatprep.subr.bf16.mxu0 0
  %696 = vmatpush2.bf16.msra.mxu0 0
  %697 = vmatprep.subr.bf16.mxu0 0
  %698 = vmatpush2.bf16.msra.mxu0 0
  %699 = vmatprep.subr.bf16.mxu0 0
  %700 = vmatpush2.bf16.msra.mxu0 0
  %701 = vmatprep.mubr.bf16.mxu0 0
  %702 = vmatmul.mubr.bf16.gmra.mxu0 %v667
  %v703 = vpop.f32.mrf.mxu0
  %v704 = vadd.f32 %v664, %v703
  %v705 = vpop.f32.mrf.mxu0
  %v706 = vpop.f32.mrf.mxu0
  %v707 = vadd.f32 %v664, %v706
  %v708 = vpop.f32.mrf.mxu0
  %709 = vdwg.mxu0
  %v710 = vmax.f32 %v704, 0.0
  %v711 = vmax.f32 %v707, 0.0
  %v712 = vld [vmem:[%s12] sm:$0xff]
  %v713 = vld [vmem:[%s12 + $0x8] sm:$0xff]
  %v714 = vld [vmem:[%s12 + $0x10] sm:$0xff]
  %v715 = vld [vmem:[%s12 + $0x18] sm:$0xff]
  %v716 = vld [vmem:[%s12 + $0x20] sm:$0xff]
  %v717 = vld [vmem:[%s12 + $0x28] sm:$0xff]
  %v718 = vld [vmem:[%s12 + $0x30] sm:$0xff]
  %v719 = vld [vmem:[%s12 + $0x38] sm:$0xff]
  %v720 = vpack.c.bf16 %v711, %v710
  %v721 = vpack.c.bf16 %v713, %v712
  %v722 = vpack.c.bf16 %v715, %v714
  %v723 = vpack.c.bf16 %v717, %v716
  %v724 = vpack.c.bf16 %v719, %v718
  %v725 = vld [vmem:[%s13] sm:$0x1]
  %v727 = vlaneseq
  %v728 = vshrl.u32 %v727, 7
  %v729 = vsub.s32 0, %v728
  %v730 = vrot.slane %v725, %v729
  %vm732 = vcmask 523264
  %v734 = vsel %vm732, %v720, 0
  %736 = vmatprep.subr.bf16.mxu0 0
  %737 = vmatpush1.bf16.msra.mxu0 0
  %738 = vmatprep.subr.bf16.mxu0 0
  %739 = vmatpush1.bf16.msra.mxu0 0
  %740 = vmatprep.subr.bf16.mxu0 0
  %741 = vmatpush1.bf16.msra.mxu0 0
  %742 = vmatprep.subr.bf16.mxu0 0
  %743 = vmatpush1.bf16.msra.mxu0 0
  %744 = vmatprep.subr.bf16.mxu0 0
  %745 = vmatpush1.bf16.msra.mxu0 %v724
  %746 = vmatprep.subr.bf16.mxu0 0
  %747 = vmatpush1.bf16.msra.mxu0 %v723
  %748 = vmatprep.subr.bf16.mxu0 0
  %749 = vmatpush1.bf16.msra.mxu0 %v722
  %750 = vmatprep.subr.bf16.mxu0 0
  %751 = vmatpush1.bf16.msra.mxu0 %v721
  %752 = vmatprep.subr.bf16.mxu0 0
  %753 = vmatpush2.bf16.msra.mxu0 0
  %754 = vmatprep.subr.bf16.mxu0 0
  %755 = vmatpush2.bf16.msra.mxu0 0
  %756 = vmatprep.subr.bf16.mxu0 0
  %757 = vmatpush2.bf16.msra.mxu0 0
  %758 = vmatprep.subr.bf16.mxu0 0
  %759 = vmatpush2.bf16.msra.mxu0 0
  %760 = vmatprep.subr.bf16.mxu0 0
  %761 = vmatpush2.bf16.msra.mxu0 0
  %762 = vmatprep.subr.bf16.mxu0 0
  %763 = vmatpush2.bf16.msra.mxu0 0
  %764 = vmatprep.subr.bf16.mxu0 0
  %765 = vmatpush2.bf16.msra.mxu0 0
  %766 = vmatprep.subr.bf16.mxu0 0
  %767 = vmatpush2.bf16.msra.mxu0 0
  %768 = vmatprep.mubr.bf16.mxu0 0
  %769 = vmatmul.mubr.bf16.gmra.mxu0 %v734
  %v770 = vpop.f32.mrf.mxu0
  %v771 = vadd.f32 %v730, %v770
  %v772 = vpop.f32.mrf.mxu0
  %v773 = vpop.f32.mrf.mxu0
  %v774 = vadd.f32 %v730, %v773
  %v775 = vpop.f32.mrf.mxu0
  %776 = vdwg.mxu0
  %v777 = vadd.f32 %v771, %v650
  %v778 = vadd.f32 %v774, %v651
  %v779 = vld [vmem:[%s14] sm:$0x1]
  %v780 = vld [vmem:[%s15] sm:$0x1]
  %v781 = vsel %vm62, %v777, 0.0
  %v782 = vsel %vm62, %v778, 0.0
  %v783 = vadd.f32 %v781, %v782
  %v784 = vrot.slane %v783, 4
  %v785 = vadd.f32 %v783, %v784
  %v786 = vrot.slane %v785, 2
  %v787 = vadd.f32 %v785, %v786
  %v788 = vrot.slane %v787, 1
  %v789 = vadd.f32 %v787, %v788
  %v790 = vmul.f32 %v789, %v616
  %v791 = vsub.f32 %v777, %v790
  %v792 = vsub.f32 %v778, %v790
  %v793 = vmul.f32 %v791, %v791
  %v794 = vmul.f32 %v792, %v792
  %v795 = vsel %vm62, %v793, 0.0
  %v796 = vsel %vm62, %v794, 0.0
  %v797 = vadd.f32 %v795, %v796
  %v798 = vrot.slane %v797, 4
  %v799 = vadd.f32 %v797, %v798
  %v800 = vrot.slane %v799, 2
  %v801 = vadd.f32 %v799, %v800
  %v802 = vrot.slane %v801, 1
  %v803 = vadd.f32 %v801, %v802
  %v804 = vmul.f32 %v803, %v616
  %v805 = vadd.f32 %v804, 1e-05
  %v806 = vrsqrt.pop %v805
  %v807 = vmul.f32 %v791, %v806
  %v808 = vmul.f32 %v792, %v806
  %v810 = vlaneseq
  %v811 = vshrl.u32 %v810, 7
  %v812 = vsub.s32 0, %v811
  %v813 = vrot.slane %v779, %v812
  %v815 = vmul.f32 %v807, %v813
  %v816 = vmul.f32 %v808, %v813
  %v818 = vlaneseq
  %v819 = vshrl.u32 %v818, 7
  %v820 = vsub.s32 0, %v819
  %v821 = vrot.slane %v780, %v820
  %v823 = vadd.f32 %v815, %v821
  %v824 = vadd.f32 %v816, %v821
  %825 = vst.msk [vmem:[%s16] sm:$0xff] %vm62, %v823
  %826 = vst.msk [vmem:[%s16 + $0x8] sm:$0xff] %vm62, %v824
  // Predicated region
  $region66: #{encoder_forward.17} parent=0 // pred_check
    _
  $region67: #{encoder_forward.17} parent=0 // pred_check_branch
    %828 = sbr.rel (0) target = $region69
  $region68: #{encoder_forward.17} parent=0 // pred_region
    _
  $region69: #{encoder_forward.17} parent=0 // pred_fallthru
    _
  // Predicated region
  $region70: #{encoder_forward.17} parent=0 // pred_check
    _
  $region71: #{encoder_forward.17} parent=0 // pred_check_branch
    %830 = sbr.rel (0) target = $region73
  $region72: #{encoder_forward.17} parent=0 // pred_region
    _
  $region73: #{encoder_forward.17} parent=0 // pred_fallthru
    _

// kernel: encoder_forward.23
$region0: #{encoder_forward.23}
  #allocation0 [shape = 'u32[]', space=smem, size = 0x4, offset = 0x4, fixed_abs, tag = 'smem constant byte address 0x4 - core index']
  #allocation1 [shape = 'u32[144,128]{1,0:T(1,128)}', space=vmem, size = 0x12000, scoped, tag = 'internal scratch']
  %s0 = inlined_call_operand.vmem [shape: f32[2,32,8], index: 0, kind: input, shape index: {}]
  %s1 = inlined_call_operand.vmem [shape: f32[1,32], index: 1, kind: input, shape index: {}]
  %s2 = inlined_call_operand.vmem [shape: f32[1,32], index: 2, kind: input, shape index: {}]
  %s3 = inlined_call_operand.vmem [shape: f32[32,16], index: 3, kind: input, shape index: {}]
  %s4 = inlined_call_operand.vmem [shape: f32[1,16], index: 4, kind: input, shape index: {}]
  %s5 = inlined_call_operand.vmem [shape: f32[16,8], index: 5, kind: input, shape index: {}]
  %s6 = inlined_call_operand.vmem [shape: f32[1,8], index: 6, kind: input, shape index: {}]
  %s7 = inlined_call_operand.vmem [shape: f32[8,32], index: 7, kind: input, shape index: {}]
  %s8 = inlined_call_operand.vmem [shape: f32[1,32], index: 8, kind: input, shape index: {}]
  %s9 = inlined_call_operand.hbm [shape: f32[2,32], index: 9, kind: output, shape index: {}]
  %s10 = sld [smem:[#allocation0]]
  $region46: #{encoder_forward.23} parent=0
    _
  %s12 = ssub.s32 1, %s10
  %s13 = scalar_select 0, %s12, %s10
  $region1: #{encoder_forward.23} parent=0
    #allocation2 [shape = 'u8[1024]{0}', space=vmem, size = 0x400, scoped, tag = 'output window, operand 0, single buffered']
    #allocation3 [shape = 's32[1]{0}', space=sflag, size = 0x4, scoped, tag = 'scoped memory for encoder_forward.23']
    %14 = vsyncpa [#allocation3], 0
    // Predicated region
    $region2: #{encoder_forward.23} parent=1 // pred_check
      _
    $region3: #{encoder_forward.23} parent=1 // pred_check_branch
      %16 = sbr.rel (0) target = $region5
    $region4: #{encoder_forward.23} parent=1 // pred_region
      _
    $region5: #{encoder_forward.23} parent=1 // pred_fallthru
      _
    // Predicated region
    $region6: #{encoder_forward.23} parent=1 // pred_check
      _
    $region7: #{encoder_forward.23} parent=1 // pred_check_branch
      %18 = sbr.rel (0) target = $region9
    $region8: #{encoder_forward.23} parent=1 // pred_region
      _
    $region9: #{encoder_forward.23} parent=1 // pred_fallthru
      _
    // Predicated region
    $region10: #{encoder_forward.23} parent=1 // pred_check
      _
    $region11: #{encoder_forward.23} parent=1 // pred_check_branch
      %20 = sbr.rel (0) target = $region13
    $region12: #{encoder_forward.23} parent=1 // pred_region
      _
    $region13: #{encoder_forward.23} parent=1 // pred_fallthru
      _
    // Predicated region
    $region14: #{encoder_forward.23} parent=1 // pred_check
      _
    $region15: #{encoder_forward.23} parent=1 // pred_check_branch
      %22 = sbr.rel (0) target = $region17
    $region16: #{encoder_forward.23} parent=1 // pred_region
      _
    $region17: #{encoder_forward.23} parent=1 // pred_fallthru
      _
    // Predicated region
    $region18: #{encoder_forward.23} parent=1 // pred_check
      _
    $region19: #{encoder_forward.23} parent=1 // pred_check_branch
      %24 = sbr.rel (0) target = $region21
    $region20: #{encoder_forward.23} parent=1 // pred_region
      _
    $region21: #{encoder_forward.23} parent=1 // pred_fallthru
      _
    // Predicated region
    $region22: #{encoder_forward.23} parent=1 // pred_check
      _
    $region23: #{encoder_forward.23} parent=1 // pred_check_branch
      %26 = sbr.rel (0) target = $region25
    $region24: #{encoder_forward.23} parent=1 // pred_region
      _
    $region25: #{encoder_forward.23} parent=1 // pred_fallthru
      _
    // Predicated region
    $region26: #{encoder_forward.23} parent=1 // pred_check
      _
    $region27: #{encoder_forward.23} parent=1 // pred_check_branch
      %28 = sbr.rel (0) target = $region29
    $region28: #{encoder_forward.23} parent=1 // pred_region
      _
    $region29: #{encoder_forward.23} parent=1 // pred_fallthru
      _
    // Predicated region
    $region30: #{encoder_forward.23} parent=1 // pred_check
      _
    $region31: #{encoder_forward.23} parent=1 // pred_check_branch
      %30 = sbr.rel (0) target = $region33
    $region32: #{encoder_forward.23} parent=1 // pred_region
      _
    $region33: #{encoder_forward.23} parent=1 // pred_fallthru
      _
    // Predicated region
    $region34: #{encoder_forward.23} parent=1 // pred_check
      _
    $region35: #{encoder_forward.23} parent=1 // pred_check_branch
      %32 = sbr.rel (0) target = $region37
    $region36: #{encoder_forward.23} parent=1 // pred_region
      _
    $region37: #{encoder_forward.23} parent=1 // pred_fallthru
      _
    %v33 = vld [vmem:[%s0] sm:$0xff]
    %v34 = vld [vmem:[%s0 + $0x8] sm:$0xff]
    %v35 = vld [vmem:[%s0 + $0x10] sm:$0xff]
    %v36 = vld [vmem:[%s0 + $0x18] sm:$0xff]
    %v37 = vld [vmem:[%s0 + $0x20] sm:$0xff]
    %v38 = vld [vmem:[%s0 + $0x28] sm:$0xff]
    %v39 = vld [vmem:[%s0 + $0x30] sm:$0xff]
    %v40 = vld [vmem:[%s0 + $0x38] sm:$0xff]
    %vm41 = vcmask 64512
    %v42 = vsel %vm41, %v33, 0.0
    %43 = vadd.xlane.f32.xlu0 %v42
    %v44 = vpop.xlane.xlu0 %43
    %v45 = vsel %vm41, %v34, 0.0
    %46 = vadd.xlane.f32.xlu0 %v45
    %v47 = vpop.xlane.xlu0 %46
    %v48 = vsel %vm41, %v35, 0.0
    %49 = vadd.xlane.f32.xlu0 %v48
    %v50 = vpop.xlane.xlu0 %49
    %v51 = vsel %vm41, %v36, 0.0
    %52 = vadd.xlane.f32.xlu0 %v51
    %v53 = vpop.xlane.xlu0 %52
    %v54 = vsel %vm41, %v37, 0.0
    %55 = vadd.xlane.f32.xlu0 %v54
    %v56 = vpop.xlane.xlu0 %55
    %v57 = vsel %vm41, %v38, 0.0
    %58 = vadd.xlane.f32.xlu0 %v57
    %v59 = vpop.xlane.xlu0 %58
    %v60 = vsel %vm41, %v39, 0.0
    %61 = vadd.xlane.f32.xlu0 %v60
    %v62 = vpop.xlane.xlu0 %61
    %v63 = vsel %vm41, %v40, 0.0
    %64 = vadd.xlane.f32.xlu0 %v63
    %v65 = vpop.xlane.xlu0 %64
    %v66 = vrcp.pop 8.0
    %v67 = vmul.f32 %v44, %v66
    %v68 = vmul.f32 %v47, %v66
    %v69 = vmul.f32 %v50, %v66
    %v70 = vmul.f32 %v53, %v66
    %v71 = vmul.f32 %v56, %v66
    %v72 = vmul.f32 %v59, %v66
    %v73 = vmul.f32 %v62, %v66
    %v74 = vmul.f32 %v65, %v66
    %v83 = vlaneseq
    %v84 = vand.u32 %v83, 127
    %v85 = vlaneseq
    %v86 = vshrl.u32 %v85, 7
    %v87 = vsub.s32 %v84, %v86
    %v88 = vrot.slane %v67, %v87
    %v89 = vadd.s32 %v84, 4294967288
    %v90 = vlaneseq
    %v91 = vshrl.u32 %v90, 7
    %v92 = vsub.s32 %v89, %v91
    %v93 = vrot.slane %v68, %v92
    %vm94 = vcmask 130112
    %v95 = vsel %vm94, %v93, %v88
    %v96 = vadd.s32 %v84, 4294967280
    %v97 = vlaneseq
    %v98 = vshrl.u32 %v97, 7
    %v99 = vsub.s32 %v96, %v98
    %v100 = vrot.slane %v69, %v99
    %vm101 = vcmask 195712
    %v102 = vsel %vm101, %v100, %v95
    %v103 = vadd.s32 %v84, 4294967272
    %v104 = vlaneseq
    %v105 = vshrl.u32 %v104, 7
    %v106 = vsub.s32 %v103, %v105
    %v107 = vrot.slane %v70, %v106
    %vm108 = vcmask 261312
    %v109 = vsel %vm108, %v107, %v102
    %v110 = vlaneseq
    %v111 = vshrl.u32 %v110, 7
    %v112 = vsub.s32 %v84, %v111
    %v113 = vrot.slane %v71, %v112
    %v114 = vlaneseq
    %v115 = vshrl.u32 %v114, 7
    %v116 = vsub.s32 %v89, %v115
    %v117 = vrot.slane %v72, %v116
    %v118 = vsel %vm94, %v117, %v113
    %v119 = vlaneseq
    %v120 = vshrl.u32 %v119, 7
    %v121 = vsub.s32 %v96, %v120
    %v122 = vrot.slane %v73, %v121
    %v123 = vsel %vm101, %v122, %v118
    %v124 = vlaneseq
    %v125 = vshrl.u32 %v124, 7
    %v126 = vsub.s32 %v103, %v125
    %v127 = vrot.slane %v74, %v126
    %v128 = vsel %vm108, %v127, %v123
    %vm129 = vcmask 1041409
    %v130 = vsel %vm129, %v128, %v109
    %vm132 = vcmask 254976
    %v133 = vsel %vm132, %v130, 0.0
    %134 = vadd.xlane.f32.xlu0 %v133
    %v135 = vpop.xlane.xlu0 %134
    %v136 = vrcp.pop 32.0
    %v137 = vmul.f32 %v135, %v136
    %v139 = vlaneseq
    %v140 = vshrl.u32 %v139, 7
    %v141 = vsub.s32 0, %v140
    %v142 = vrot.slane %v137, %v141
    %v143 = vlaneseq
    %v144 = vshrl.u32 %v143, 7
    %v145 = vsub.s32 1, %v144
    %v146 = vrot.slane %v137, %v145
    %v149 = vsub.f32 %v67, %v142
    %v150 = vsub.f32 %v68, %v142
    %v151 = vsub.f32 %v69, %v142
    %v152 = vsub.f32 %v70, %v142
    %v153 = vsub.f32 %v71, %v146
    %v154 = vsub.f32 %v72, %v146
    %v155 = vsub.f32 %v73, %v146
    %v156 = vsub.f32 %v74, %v146
    %v157 = vmul.f32 %v149, %v149
    %v158 = vmul.f32 %v150, %v150
    %v159 = vmul.f32 %v151, %v151
    %v160 = vmul.f32 %v152, %v152
    %v161 = vmul.f32 %v153, %v153
    %v162 = vmul.f32 %v154, %v154
    %v163 = vmul.f32 %v155, %v155
    %v164 = vmul.f32 %v156, %v156
    %173 = vset.pattern.permute.xlu0 0
    %174 = vperm.xlu0 %173, %v157
    %v175 = vpop.permute.xlu0 %174
    %176 = vset.pattern.permute.xlu0 0
    %177 = vperm.xlu0 %176, %v158
    %v178 = vpop.permute.xlu0 %177
    %179 = vset.pattern.permute.xlu0 0
    %180 = vperm.xlu0 %179, %v159
    %v181 = vpop.permute.xlu0 %180
    %182 = vset.pattern.permute.xlu0 0
    %183 = vperm.xlu0 %182, %v160
    %v184 = vpop.permute.xlu0 %183
    %185 = vset.pattern.permute.xlu0 0
    %186 = vperm.xlu0 %185, %v161
    %v187 = vpop.permute.xlu0 %186
    %188 = vset.pattern.permute.xlu0 0
    %189 = vperm.xlu0 %188, %v162
    %v190 = vpop.permute.xlu0 %189
    %191 = vset.pattern.permute.xlu0 0
    %192 = vperm.xlu0 %191, %v163
    %v193 = vpop.permute.xlu0 %192
    %194 = vset.pattern.permute.xlu0 0
    %195 = vperm.xlu0 %194, %v164
    %v196 = vpop.permute.xlu0 %195
    %v197 = vlaneseq
    %v198 = vshrl.u32 %v197, 7
    %v199 = vsub.s32 %v84, %v198
    %v200 = vrot.slane %v175, %v199
    %v201 = vlaneseq
    %v202 = vshrl.u32 %v201, 7
    %v203 = vsub.s32 %v89, %v202
    %v204 = vrot.slane %v178, %v203
    %v205 = vsel %vm94, %v204, %v200
    %v206 = vlaneseq
    %v207 = vshrl.u32 %v206, 7
    %v208 = vsub.s32 %v96, %v207
    %v209 = vrot.slane %v181, %v208
    %v210 = vsel %vm101, %v209, %v205
    %v211 = vlaneseq
    %v212 = vshrl.u32 %v211, 7
    %v213 = vsub.s32 %v103, %v212
    %v214 = vrot.slane %v184, %v213
    %v215 = vsel %vm108, %v214, %v210
    %v216 = vlaneseq
    %v217 = vshrl.u32 %v216, 7
    %v218 = vsub.s32 %v84, %v217
    %v219 = vrot.slane %v187, %v218
    %v220 = vlaneseq
    %v221 = vshrl.u32 %v220, 7
    %v222 = vsub.s32 %v89, %v221
    %v223 = vrot.slane %v190, %v222
    %v224 = vsel %vm94, %v223, %v219
    %v225 = vlaneseq
    %v226 = vshrl.u32 %v225, 7
    %v227 = vsub.s32 %v96, %v226
    %v228 = vrot.slane %v193, %v227
    %v229 = vsel %vm101, %v228, %v224
    %v230 = vlaneseq
    %v231 = vshrl.u32 %v230, 7
    %v232 = vsub.s32 %v103, %v231
    %v233 = vrot.slane %v196, %v232
    %v234 = vsel %vm108, %v233, %v229
    %v235 = vsel %vm129, %v234, %v215
    %v237 = vsel %vm132, %v235, 0.0
    %238 = vadd.xlane.f32.xlu0 %v237
    %v239 = vpop.xlane.xlu0 %238
    %v240 = vmul.f32 %v239, %v136
    %v241 = vadd.f32 %v240, 1e-05
    %v242 = vrsqrt.pop %v241
    %v244 = vlaneseq
    %v245 = vshrl.u32 %v244, 7
    %v246 = vsub.s32 0, %v245
    %v247 = vrot.slane %v242, %v246
    %v248 = vlaneseq
    %v249 = vshrl.u32 %v248, 7
    %v250 = vsub.s32 1, %v249
    %v251 = vrot.slane %v242, %v250
    %v254 = vmul.f32 %v149, %v247
    %v255 = vmul.f32 %v150, %v247
    %v256 = vmul.f32 %v151, %v247
    %v257 = vmul.f32 %v152, %v247
    %v258 = vmul.f32 %v153, %v251
    %v259 = vmul.f32 %v154, %v251
    %v260 = vmul.f32 %v155, %v251
    %v261 = vmul.f32 %v156, %v251
    %v262 = vld [vmem:[%s1] sm:$0x1]
    %v264 = vlaneseq
    %v265 = vshrl.u32 %v264, 7
    %v266 = vsub.s32 0, %v265
    %v267 = vrot.slane %v262, %v266
    %269 = vbcast.lane.b32.xlu0 %v267, 256
    %v270 = vpop.permute.xlu0 %269
    %s272 = sor.u32 256, 8
    %273 = vbcast.lane.b32.xlu0 %v267, %s272
    %v274 = vpop.permute.xlu0 %273
    %s276 = sor.u32 256, 16
    %277 = vbcast.lane.b32.xlu0 %v267, %s276
    %v278 = vpop.permute.xlu0 %277
    %s280 = sor.u32 256, 24
    %281 = vbcast.lane.b32.xlu0 %v267, %s280
    %v282 = vpop.permute.xlu0 %281
    %v287 = vmul.f32 %v254, %v270
    %v288 = vmul.f32 %v255, %v274
    %v289 = vmul.f32 %v256, %v278
    %v290 = vmul.f32 %v257, %v282
    %v291 = vmul.f32 %v258, %v270
    %v292 = vmul.f32 %v259, %v274
    %v293 = vmul.f32 %v260, %v278
    %v294 = vmul.f32 %v261, %v282
    %v295 = vld [vmem:[%s2] sm:$0x1]
    %v297 = vlaneseq
    %v298 = vshrl.u32 %v297, 7
    %v299 = vsub.s32 0, %v298
    %v300 = vrot.slane %v295, %v299
    %302 = vbcast.lane.b32.xlu0 %v300, 256
    %v303 = vpop.permute.xlu0 %302
    %s305 = sor.u32 256, 8
    %306 = vbcast.lane.b32.xlu0 %v300, %s305
    %v307 = vpop.permute.xlu0 %306
    %s309 = sor.u32 256, 16
    %310 = vbcast.lane.b32.xlu0 %v300, %s309
    %v311 = vpop.permute.xlu0 %310
    %s313 = sor.u32 256, 24
    %314 = vbcast.lane.b32.xlu0 %v300, %s313
    %v315 = vpop.permute.xlu0 %314
    %v320 = vadd.f32 %v287, %v303
    %v321 = vadd.f32 %v288, %v307
    %v322 = vadd.f32 %v289, %v311
    %v323 = vadd.f32 %v290, %v315
    %v324 = vadd.f32 %v291, %v303
    %v325 = vadd.f32 %v292, %v307
    %v326 = vadd.f32 %v293, %v311
    %v327 = vadd.f32 %v294, %v315
    %v328 = vld [vmem:[%s3] sm:$0xff]
    %v329 = vld [vmem:[%s3 + $0x8] sm:$0xff]
    %v330 = vld [vmem:[%s3 + $0x10] sm:$0xff]
    %v331 = vld [vmem:[%s3 + $0x18] sm:$0xff]
    %v332 = vld [vmem:[%s4] sm:$0x1]
    %v334 = vlaneseq
    %v335 = vshrl.u32 %v334, 7
    %v336 = vsub.s32 0, %v335
    %v337 = vrot.slane %v332, %v336
    %347 = vset.pattern.permute.xlu0 0
    %348 = vperm.xlu0 %347, %v320
    %v349 = vpop.permute.xlu0 %348
    %350 = vset.pattern.permute.xlu0 0
    %351 = vperm.xlu0 %350, %v321
    %v352 = vpop.permute.xlu0 %351
    %353 = vset.pattern.permute.xlu0 0
    %354 = vperm.xlu0 %353, %v322
    %v355 = vpop.permute.xlu0 %354
    %356 = vset.pattern.permute.xlu0 0
    %357 = vperm.xlu0 %356, %v323
    %v358 = vpop.permute.xlu0 %357
    %359 = vset.pattern.permute.xlu0 0
    %360 = vperm.xlu0 %359, %v324
    %v361 = vpop.permute.xlu0 %360
    %362 = vset.pattern.permute.xlu0 0
    %363 = vperm.xlu0 %362, %v325
    %v364 = vpop.permute.xlu0 %363
    %365 = vset.pattern.permute.xlu0 0
    %366 = vperm.xlu0 %365, %v326
    %v367 = vpop.permute.xlu0 %366
    %368 = vset.pattern.permute.xlu0 0
    %369 = vperm.xlu0 %368, %v327
    %v370 = vpop.permute.xlu0 %369
    %v371 = vlaneseq
    %v372 = vshrl.u32 %v371, 7
    %v373 = vsub.s32 %v84, %v372
    %v374 = vrot.slane %v349, %v373
    %v375 = vlaneseq
    %v376 = vshrl.u32 %v375, 7
    %v377 = vsub.s32 %v89, %v376
    %v378 = vrot.slane %v352, %v377
    %v379 = vsel %vm94, %v378, %v374
    %v380 = vlaneseq
    %v381 = vshrl.u32 %v380, 7
    %v382 = vsub.s32 %v96, %v381
    %v383 = vrot.slane %v355, %v382
    %v384 = vsel %vm101, %v383, %v379
    %v385 = vlaneseq
    %v386 = vshrl.u32 %v385, 7
    %v387 = vsub.s32 %v103, %v386
    %v388 = vrot.slane %v358, %v387
    %v389 = vsel %vm108, %v388, %v384
    %v390 = vlaneseq
    %v391 = vshrl.u32 %v390, 7
    %v392 = vsub.s32 %v84, %v391
    %v393 = vrot.slane %v361, %v392
    %v394 = vlaneseq
    %v395 = vshrl.u32 %v394, 7
    %v396 = vsub.s32 %v89, %v395
    %v397 = vrot.slane %v364, %v396
    %v398 = vsel %vm94, %v397, %v393
    %v399 = vlaneseq
    %v400 = vshrl.u32 %v399, 7
    %v401 = vsub.s32 %v96, %v400
    %v402 = vrot.slane %v367, %v401
    %v403 = vsel %vm101, %v402, %v398
    %v404 = vlaneseq
    %v405 = vshrl.u32 %v404, 7
    %v406 = vsub.s32 %v103, %v405
    %v407 = vrot.slane %v370, %v406
    %v408 = vsel %vm108, %v407, %v403
    %v409 = vsel %vm129, %v408, %v389
    %vm410 = vcmask 261120
    %v411 = vsel %vm410, %v409, 0
    %413 = vmatprep.subr.mxu0 0.0
    %414 = vmatpush1.msra.mxu0 0.0
    %415 = vmatprep.subr.mxu0 0.0
    %416 = vmatpush1.msra.mxu0 0.0
    %417 = vmatprep.subr.mxu0 0.0
    %418 = vmatpush1.msra.mxu0 0.0
    %419 = vmatprep.subr.mxu0 0.0
    %420 = vmatpush1.msra.mxu0 0.0
    %421 = vmatprep.subr.mxu0 0.0
    %422 = vmatpush1.msra.mxu0 0.0
    %423 = vmatprep.subr.mxu0 0.0
    %424 = vmatpush1.msra.mxu0 0.0
    %425 = vmatprep.subr.mxu0 0.0
    %426 = vmatpush1.msra.mxu0 0.0
    %427 = vmatprep.subr.mxu0 0.0
    %428 = vmatpush1.msra.mxu0 0.0
    %429 = vmatprep.subr.mxu0 0.0
    %430 = vmatpush1.msra.mxu0 0.0
    %431 = vmatprep.subr.mxu0 0.0
    %432 = vmatpush1.msra.mxu0 0.0
    %433 = vmatprep.subr.mxu0 0.0
    %434 = vmatpush1.msra.mxu0 0.0
    %435 = vmatprep.subr.mxu0 0.0
    %436 = vmatpush1.msra.mxu0 0.0
    %437 = vmatprep.subr.mxu0 0.0
    %438 = vmatpush1.msra.mxu0 %v331
    %439 = vmatprep.subr.mxu0 0.0
    %440 = vmatpush1.msra.mxu0 %v330
    %441 = vmatprep.subr.mxu0 0.0
    %442 = vmatpush1.msra.mxu0 %v329
    %443 = vmatprep.subr.mxu0 0.0
    %444 = vmatpush1.msra.mxu0 %v328
    %445 = vmatprep.subr.mxu0 0.0
    %446 = vmatpush2.msra.mxu0 0.0
    %447 = vmatprep.subr.mxu0 0.0
    %448 = vmatpush2.msra.mxu0 0.0
    %449 = vmatprep.subr.mxu0 0.0
    %450 = vmatpush2.msra.mxu0 0.0
    %451 = vmatprep.subr.mxu0 0.0
    %452 = vmatpush2.msra.mxu0 0.0
    %453 = vmatprep.subr.mxu0 0.0
    %454 = vmatpush2.msra.mxu0 0.0
    %455 = vmatprep.subr.mxu0 0.0
    %456 = vmatpush2.msra.mxu0 0.0
    %457 = vmatprep.subr.mxu0 0.0
    %458 = vmatpush2.msra.mxu0 0.0
    %459 = vmatprep.subr.mxu0 0.0
    %460 = vmatpush2.msra.mxu0 0.0
    %461 = vmatprep.subr.mxu0 0.0
    %462 = vmatpush2.msra.mxu0 0.0
    %463 = vmatprep.subr.mxu0 0.0
    %464 = vmatpush2.msra.mxu0 0.0
    %465 = vmatprep.subr.mxu0 0.0
    %466 = vmatpush2.msra.mxu0 0.0
    %467 = vmatprep.subr.mxu0 0.0
    %468 = vmatpush2.msra.mxu0 0.0
    %469 = vmatprep.subr.mxu0 0.0
    %470 = vmatpush2.msra.mxu0 0.0
    %471 = vmatprep.subr.mxu0 0.0
    %472 = vmatpush2.msra.mxu0 0.0
    %473 = vmatprep.subr.mxu0 0.0
    %474 = vmatpush2.msra.mxu0 0.0
    %475 = vmatprep.subr.mxu0 0.0
    %476 = vmatpush2.msra.mxu0 0.0
    %477 = vmatprep.mubr.f32.mxu0 0.0
    %478 = vmatmul.mubr.f32.gmra.mxu0 %v411
    %v479 = vpop.f32.mrf.mxu0
    %v480 = vadd.f32 %v337, %v479
    %v481 = vpop.f32.mrf.mxu0
    %482 = vdwg.mxu0
    %v483 = vmax.f32 %v480, 0.0
    %v484 = vld [vmem:[%s5] sm:$0xff]
    %v485 = vld [vmem:[%s5 + $0x8] sm:$0xff]
    %v486 = vld [vmem:[%s6] sm:$0x1]
    %v488 = vlaneseq
    %v489 = vshrl.u32 %v488, 7
    %v490 = vsub.s32 0, %v489
    %v491 = vrot.slane %v486, %v490
    %vm493 = vcmask 130048
    %v495 = vsel %vm493, %v483, 0
    %497 = vmatprep.subr.mxu0 0.0
    %498 = vmatpush1.msra.mxu0 0.0
    %499 = vmatprep.subr.mxu0 0.0
    %500 = vmatpush1.msra.mxu0 0.0
    %501 = vmatprep.subr.mxu0 0.0
    %502 = vmatpush1.msra.mxu0 0.0
    %503 = vmatprep.subr.mxu0 0.0
    %504 = vmatpush1.msra.mxu0 0.0
    %505 = vmatprep.subr.mxu0 0.0
    %506 = vmatpush1.msra.mxu0 0.0
    %507 = vmatprep.subr.mxu0 0.0
    %508 = vmatpush1.msra.mxu0 0.0
    %509 = vmatprep.subr.mxu0 0.0
    %510 = vmatpush1.msra.mxu0 0.0
    %511 = vmatprep.subr.mxu0 0.0
    %512 = vmatpush1.msra.mxu0 0.0
    %513 = vmatprep.subr.mxu0 0.0
    %514 = vmatpush1.msra.mxu0 0.0
    %515 = vmatprep.subr.mxu0 0.0
    %516 = vmatpush1.msra.mxu0 0.0
    %517 = vmatprep.subr.mxu0 0.0
    %518 = vmatpush1.msra.mxu0 0.0
    %519 = vmatprep.subr.mxu0 0.0
    %520 = vmatpush1.msra.mxu0 0.0
    %521 = vmatprep.subr.mxu0 0.0
    %522 = vmatpush1.msra.mxu0 0.0
    %523 = vmatprep.subr.mxu0 0.0
    %524 = vmatpush1.msra.mxu0 0.0
    %525 = vmatprep.subr.mxu0 0.0
    %526 = vmatpush1.msra.mxu0 %v485
    %527 = vmatprep.subr.mxu0 0.0
    %528 = vmatpush1.msra.mxu0 %v484
    %529 = vmatprep.subr.mxu0 0.0
    %530 = vmatpush2.msra.mxu0 0.0
    %531 = vmatprep.subr.mxu0 0.0
    %532 = vmatpush2.msra.mxu0 0.0
    %533 = vmatprep.subr.mxu0 0.0
    %534 = vmatpush2.msra.mxu0 0.0
    %535 = vmatprep.subr.mxu0 0.0
    %536 = vmatpush2.msra.mxu0 0.0
    %537 = vmatprep.subr.mxu0 0.0
    %538 = vmatpush2.msra.mxu0 0.0
    %539 = vmatprep.subr.mxu0 0.0
    %540 = vmatpush2.msra.mxu0 0.0
    %541 = vmatprep.subr.mxu0 0.0
    %542 = vmatpush2.msra.mxu0 0.0
    %543 = vmatprep.subr.mxu0 0.0
    %544 = vmatpush2.msra.mxu0 0.0
    %545 = vmatprep.subr.mxu0 0.0
    %546 = vmatpush2.msra.mxu0 0.0
    %547 = vmatprep.subr.mxu0 0.0
    %548 = vmatpush2.msra.mxu0 0.0
    %549 = vmatprep.subr.mxu0 0.0
    %550 = vmatpush2.msra.mxu0 0.0
    %551 = vmatprep.subr.mxu0 0.0
    %552 = vmatpush2.msra.mxu0 0.0
    %553 = vmatprep.subr.mxu0 0.0
    %554 = vmatpush2.msra.mxu0 0.0
    %555 = vmatprep.subr.mxu0 0.0
    %556 = vmatpush2.msra.mxu0 0.0
    %557 = vmatprep.subr.mxu0 0.0
    %558 = vmatpush2.msra.mxu0 0.0
    %559 = vmatprep.subr.mxu0 0.0
    %560 = vmatpush2.msra.mxu0 0.0
    %561 = vmatprep.mubr.f32.mxu0 0.0
    %562 = vmatmul.mubr.f32.gmra.mxu0 %v495
    %v563 = vpop.f32.mrf.mxu0
    %v564 = vadd.f32 %v491, %v563
    %v565 = vpop.f32.mrf.mxu0
    %566 = vdwg.mxu0
    %v567 = vmax.f32 %v564, 0.0
    %v568 = vld [vmem:[%s7] sm:$0xff]
    %v569 = vld [vmem:[%s8] sm:$0x1]
    %v571 = vlaneseq
    %v572 = vshrl.u32 %v571, 7
    %v573 = vsub.s32 0, %v572
    %v574 = vrot.slane %v569, %v573
    %v577 = vsel %vm41, %v567, 0
    %579 = vmatprep.subr.mxu0 0.0
    %580 = vmatpush1.msra.mxu0 0.0
    %581 = vmatprep.subr.mxu0 0.0
    %582 = vmatpush1.msra.mxu0 0.0
    %583 = vmatprep.subr.mxu0 0.0
    %584 = vmatpush1.msra.mxu0 0.0
    %585 = vmatprep.subr.mxu0 0.0
    %586 = vmatpush1.msra.mxu0 0.0
    %587 = vmatprep.subr.mxu0 0.0
    %588 = vmatpush1.msra.mxu0 0.0
    %589 = vmatprep.subr.mxu0 0.0
    %590 = vmatpush1.msra.mxu0 0.0
    %591 = vmatprep.subr.mxu0 0.0
    %592 = vmatpush1.msra.mxu0 0.0
    %593 = vmatprep.subr.mxu0 0.0
    %594 = vmatpush1.msra.mxu0 0.0
    %595 = vmatprep.subr.mxu0 0.0
    %596 = vmatpush1.msra.mxu0 0.0
    %597 = vmatprep.subr.mxu0 0.0
    %598 = vmatpush1.msra.mxu0 0.0
    %599 = vmatprep.subr.mxu0 0.0
    %600 = vmatpush1.msra.mxu0 0.0
    %601 = vmatprep.subr.mxu0 0.0
    %602 = vmatpush1.msra.mxu0 0.0
    %603 = vmatprep.subr.mxu0 0.0
    %604 = vmatpush1.msra.mxu0 0.0
    %605 = vmatprep.subr.mxu0 0.0
    %606 = vmatpush1.msra.mxu0 0.0
    %607 = vmatprep.subr.mxu0 0.0
    %608 = vmatpush1.msra.mxu0 0.0
    %609 = vmatprep.subr.mxu0 0.0
    %610 = vmatpush1.msra.mxu0 %v568
    %611 = vmatprep.subr.mxu0 0.0
    %612 = vmatpush2.msra.mxu0 0.0
    %613 = vmatprep.subr.mxu0 0.0
    %614 = vmatpush2.msra.mxu0 0.0
    %615 = vmatprep.subr.mxu0 0.0
    %616 = vmatpush2.msra.mxu0 0.0
    %617 = vmatprep.subr.mxu0 0.0
    %618 = vmatpush2.msra.mxu0 0.0
    %619 = vmatprep.subr.mxu0 0.0
    %620 = vmatpush2.msra.mxu0 0.0
    %621 = vmatprep.subr.mxu0 0.0
    %622 = vmatpush2.msra.mxu0 0.0
    %623 = vmatprep.subr.mxu0 0.0
    %624 = vmatpush2.msra.mxu0 0.0
    %625 = vmatprep.subr.mxu0 0.0
    %626 = vmatpush2.msra.mxu0 0.0
    %627 = vmatprep.subr.mxu0 0.0
    %628 = vmatpush2.msra.mxu0 0.0
    %629 = vmatprep.subr.mxu0 0.0
    %630 = vmatpush2.msra.mxu0 0.0
    %631 = vmatprep.subr.mxu0 0.0
    %632 = vmatpush2.msra.mxu0 0.0
    %633 = vmatprep.subr.mxu0 0.0
    %634 = vmatpush2.msra.mxu0 0.0
    %635 = vmatprep.subr.mxu0 0.0
    %636 = vmatpush2.msra.mxu0 0.0
    %637 = vmatprep.subr.mxu0 0.0
    %638 = vmatpush2.msra.mxu0 0.0
    %639 = vmatprep.subr.mxu0 0.0
    %640 = vmatpush2.msra.mxu0 0.0
    %641 = vmatprep.subr.mxu0 0.0
    %642 = vmatpush2.msra.mxu0 0.0
    %643 = vmatprep.mubr.f32.mxu0 0.0
    %644 = vmatmul.mubr.f32.gmra.mxu0 %v577
    %v645 = vpop.f32.mrf.mxu0
    %v646 = vadd.f32 %v574, %v645
    %v647 = vpop.f32.mrf.mxu0
    %648 = vdwg.mxu0
    %649 = vst.msk [vmem:[#allocation2] sm:$0x3] %vm132, %v646
    // Predicated region
    $region38: #{encoder_forward.23} parent=1 // pred_check
      _
    $region39: #{encoder_forward.23} parent=1 // pred_check_branch
      %651 = sbr.rel (0) target = $region41
    $region40: #{encoder_forward.23} parent=1 // pred_region
      %s653 = ssub.s32 32, 32
      %654 = vsyncadd [#allocation3], %s653
      %s656 = sshll.u32 [#allocation2], 4
      %s657 = int_to_ptr.vmem [resolvable:$true] %s656
      %659 = dma.vmem_to_hbm [thread:$0]  %s657, 32, %s9, [#allocation3]
    $region41: #{encoder_forward.23} parent=1 // pred_fallthru
      _
    // Predicated region
    $region42: #{encoder_forward.23} parent=1 // pred_check
      _
    $region43: #{encoder_forward.23} parent=1 // pred_check_branch
      %661 = sbr.rel (0) target = $region45
    $region44: #{encoder_forward.23} parent=1 // pred_region
      %662 = dma.done [#allocation3], 32
    $region45: #{encoder_forward.23} parent=1 // pred_fallthru
      _
    %663 = vsyncpa [#allocation3], 1

</llo_original>
